<compile_context>
chip_gen: v6e
topology: v6e:2x2x1
jax: 0.10.0
libtpu: 0.0.40
codegen_flags: <defaults>
</compile_context>

<pallas_src>
import functools

import jax
import jax.numpy as jnp
from jax.experimental import pallas as pl
from jax.experimental.pallas import tpu as pltpu


# ----------------------------------------------------------------------------
# Pallas kernel: fused BasicBlock_Discrim forward, lane-dense (N*H, W*C) layout
# ----------------------------------------------------------------------------
def _basic_block_kernel(x_ref, w1_ref, w2s_ref, m1_ref, m2_ref,
                        g1_ref, b1_ref, g2_ref, b2_ref, bs_ref, o_ref,
                        *, N, H, W, Ci, Co):
    eps = 1e-5
    NH = N * H

    x = x_ref[...]                                   # (NH, W*Ci) f32, lane-dense

    def bn_relu(a, m_ref, g_ref, b_ref):
        # Single-pass training-mode BatchNorm + ReLU, fully lane-dense.
        # Per-channel mean / E[x^2] are obtained by one tiny (1,L)x(L,L) MXU
        # matmul against the channel-averaging matrix (broadcasts back to lanes).
        s = jnp.sum(a, axis=0, keepdims=True)                       # (1, L)
        sq = jnp.sum(a * a, axis=0, keepdims=True)                  # (1, L)
        mean = jnp.dot(s, m_ref[...], preferred_element_type=jnp.float32)
        ex2 = jnp.dot(sq, m_ref[...], preferred_element_type=jnp.float32)
        var = ex2 - mean * mean
        scale = g_ref[...] * jax.lax.rsqrt(var + eps)
        shift = b_ref[...] - mean * scale
        return jnp.maximum(a * scale + shift, 0.0)

    def im2col_taps(a, C):
        # a: (NH, W*C) lane-dense.  Returns the 9 shifted / zero-masked 3x3 taps
        # as bf16, tap order (dy, dx) row-major — matches the block-diag weights.
        L = W * C
        zrow = jnp.zeros((1, L), a.dtype)
        h_idx = jax.lax.broadcasted_iota(jnp.int32, (NH, 1), 0) % H
        up_mask = (h_idx > 0).astype(a.dtype)
        dn_mask = (h_idx < H - 1).astype(a.dtype)
        up = up_mask * jnp.concatenate([zrow, a[:-1, :]], axis=0)   # row h-1
        dn = dn_mask * jnp.concatenate([a[1:, :], zrow], axis=0)    # row h+1
        zc = jnp.zeros((NH, C), a.dtype)
        taps = []
        for rows in (up, a, dn):                                    # dy = 0, 1, 2
            padded = jnp.concatenate([zc, rows, zc], axis=1)        # (NH, L + 2C)
            for dx in range(3):                                     # lane shift by C
                taps.append(padded[:, dx * C: dx * C + L].astype(jnp.bfloat16))
        return taps

    # ---- bn1 (batch stats) + relu ----
    a1 = bn_relu(x, m1_ref, g1_ref, b1_ref)                         # (NH, W*Ci)

    # ---- conv1: all 9 taps fused into ONE lane-dense bf16 MXU matmul ----
    p1 = jnp.concatenate(im2col_taps(a1, Ci), axis=1)               # (NH, 9*W*Ci) bf16
    h1 = jnp.dot(p1, w1_ref[...], preferred_element_type=jnp.float32)  # (NH, W*Co) f32

    # ---- bn2 (batch stats) + relu ----
    a2 = bn_relu(h1, m2_ref, g2_ref, b2_ref)                        # (NH, W*Co)

    # ---- conv2 + fused 1x1 skip in ONE matmul (skip input appended on lanes) ----
    p2 = jnp.concatenate(im2col_taps(a2, Co) + [x.astype(jnp.bfloat16)], axis=1)
    out = jnp.dot(p2, w2s_ref[...], preferred_element_type=jnp.float32)  # (NH, W*Co)

    # skip-conv bias (lane-tiled), lane-dense unmasked store
    o_ref[...] = out + bs_ref[...]


# ----------------------------------------------------------------------------
# Parameter preparation (weight-only, plain JAX — done once per layer)
# ----------------------------------------------------------------------------
def _block_diag_conv3x3(w_hwio, Wd):
    # w_hwio: (3,3,Ci,Co). Returns (9*Wd*Ci, Wd*Co):
    #   out[tap*Wd*Ci + w*Ci + ci, w*Co + co] = w_hwio[dy, dx, ci, co], tap=dy*3+dx.
    KH, KW, Ci, Co = w_hwio.shape
    taps = w_hwio.reshape(KH * KW, Ci, Co)
    eye = jnp.eye(Wd, dtype=w_hwio.dtype)
    big = jnp.einsum('ab,kio->kaibo', eye, taps)
    return big.reshape(KH * KW * Wd * Ci, Wd * Co)


def _block_diag_1x1(ws_io, Wd):
    # ws_io: (Ci, Co). Returns (Wd*Ci, Wd*Co) block-diagonal over w.
    Ci, Co = ws_io.shape
    eye = jnp.eye(Wd, dtype=ws_io.dtype)
    big = jnp.einsum('ab,io->aibo', eye, ws_io)
    return big.reshape(Wd * Ci, Wd * Co)


def _channel_mean_matrix(Wd, C, count):
    # (Wd*C, Wd*C): 1/count where two lanes belong to the same channel.
    ch = jnp.arange(Wd * C, dtype=jnp.int32) % C
    return (ch[:, None] == ch[None, :]).astype(jnp.float32) / count


# ----------------------------------------------------------------------------
# Wrapper: NCHW in, NCHW out (PyTorch convention)
# ----------------------------------------------------------------------------
def basic_block_discrim(x_nchw, w1_oihw, g1, b1, w2_oihw, g2, b2, ws_oihw, bs):
    N, Ci, H, W = x_nchw.shape
    Co = w1_oihw.shape[0]
    NH, Lci, Lco = N * H, W * Ci, W * Co
    count = float(N * H * W)

    # activation: NCHW -> lane-dense (N*H, W*Ci)
    # TODO(synk): in a full model keep this lane-dense layout end-to-end and drop
    # the interface transposes (they exist only to match the PyTorch NCHW spec).
    x2d = jnp.transpose(x_nchw, (0, 2, 3, 1)).reshape(NH, Lci).astype(jnp.float32)

    # ---- weight prep (layout plumbing, computed once) ----
    w1_hwio = jnp.transpose(w1_oihw, (2, 3, 1, 0)).astype(jnp.float32)      # (3,3,Ci,Co)
    w2_hwio = jnp.transpose(w2_oihw, (2, 3, 1, 0)).astype(jnp.float32)      # (3,3,Co,Co)
    ws_io = jnp.transpose(ws_oihw.reshape(Co, Ci), (1, 0)).astype(jnp.float32)  # (Ci,Co)

    w1_big = _block_diag_conv3x3(w1_hwio, W).astype(jnp.bfloat16)           # (9*Lci, Lco)
    w2_big = _block_diag_conv3x3(w2_hwio, W)                                # (9*Lco, Lco)
    ws_big = _block_diag_1x1(ws_io, W)                                      # (Lci,  Lco)
    w2s_big = jnp.concatenate([w2_big, ws_big], axis=0).astype(jnp.bfloat16)

    m1 = _channel_mean_matrix(W, Ci, count)                                 # (Lci, Lci) f32
    m2 = _channel_mean_matrix(W, Co, count)                                 # (Lco, Lco) f32

    g1_l = jnp.tile(g1.astype(jnp.float32), W).reshape(1, Lci)
    b1_l = jnp.tile(b1.astype(jnp.float32), W).reshape(1, Lci)
    g2_l = jnp.tile(g2.astype(jnp.float32), W).reshape(1, Lco)
    b2_l = jnp.tile(b2.astype(jnp.float32), W).reshape(1, Lco)
    bs_l = jnp.tile(bs.astype(jnp.float32), W).reshape(1, Lco)

    kernel = functools.partial(_basic_block_kernel, N=N, H=H, W=W, Ci=Ci, Co=Co)
    vmem = pl.BlockSpec(memory_space=pltpu.MemorySpace.VMEM)

    # TODO(synk): for v7x a grid over rows (stats precomputed or two-pass BN)
    # would engage the second TensorCore; at this tiny size a single grid-less
    # invocation with everything VMEM-resident is the right choice.
    out2d = pl.pallas_call(
        kernel,
        out_shape=jax.ShapeDtypeStruct((NH, Lco), jnp.float32),
        in_specs=[vmem] * 10,
        out_specs=vmem,
    )(x2d, w1_big, w2s_big, m1, m2, g1_l, b1_l, g2_l, b2_l, bs_l)

    return jnp.transpose(out2d.reshape(N, H, W, Co), (0, 3, 1, 2))          # NCHW


# ----------------------------------------------------------------------------
# SpectralNorm weight preparation (parameter setup glue, plain JAX)
# ----------------------------------------------------------------------------
def spectral_normalize(w_oihw, key, n_iter=1):
    o = w_oihw.shape[0]
    w_mat = w_oihw.reshape(o, -1)
    u = jax.random.normal(key, (o,), jnp.float32)
    u = u / (jnp.linalg.norm(u) + 1e-12)
    v = None
    for _ in range(n_iter):
        v = w_mat.T @ u
        v = v / (jnp.linalg.norm(v) + 1e-12)
        u = w_mat @ v
        u = u / (jnp.linalg.norm(u) + 1e-12)
    sigma = u @ (w_mat @ v)
    return w_oihw / sigma


# ----------------------------------------------------------------------------
# Pure-JAX reference (NCHW / OIHW) for verification
# ----------------------------------------------------------------------------
def _ref_block(x, w1, g1, b1, w2, g2, b2, ws, bs):
    eps = 1e-5

    def bn(h, g, b):
        m = jnp.mean(h, axis=(0, 2, 3), keepdims=True)
        v = jnp.mean((h - m) ** 2, axis=(0, 2, 3), keepdims=True)
        return (h - m) * jax.lax.rsqrt(v + eps) * g.reshape(1, -1, 1, 1) + b.reshape(1, -1, 1, 1)

    def conv(h, w, pad):
        return jax.lax.conv_general_dilated(
            h, w, (1, 1), [(pad, pad), (pad, pad)],
            dimension_numbers=("NCHW", "OIHW", "NCHW"),
            precision=jax.lax.Precision.HIGHEST)

    out = jnp.maximum(bn(x, g1, b1), 0.0)
    out = conv(out, w1, 1)
    out = jnp.maximum(bn(out, g2, b2), 0.0)
    out = conv(out, w2, 1)
    res = conv(x, ws, 0) + bs.reshape(1, -1, 1, 1)
    return out + res


# ----------------------------------------------------------------------------
if __name__ == "__main__":
    key = jax.random.PRNGKey(0)
    ks = jax.random.split(key, 12)

    N, Cin, Cout, H, W = 2, 8, 16, 16, 16  # inplanes=8, planes=16

    x = jax.random.normal(ks[0], (N, Cin, H, W), jnp.float32)

    # conv weights (PyTorch OIHW), spectrally normalized
    w1 = spectral_normalize(jax.random.normal(ks[1], (Cout, Cin, 3, 3), jnp.float32) * 0.1, ks[5])
    w2 = spectral_normalize(jax.random.normal(ks[2], (Cout, Cout, 3, 3), jnp.float32) * 0.1, ks[6])
    ws = spectral_normalize(jax.random.normal(ks[3], (Cout, Cin, 1, 1), jnp.float32) * 0.1, ks[7])
    bs = jax.random.normal(ks[4], (Cout,), jnp.float32) * 0.1  # skip conv bias (not spectrally normalized)

    # BatchNorm affine params
    g1 = 1.0 + 0.1 * jax.random.normal(ks[8], (Cin,), jnp.float32)
    b1 = 0.1 * jax.random.normal(ks[9], (Cin,), jnp.float32)
    g2 = 1.0 + 0.1 * jax.random.normal(ks[10], (Cout,), jnp.float32)
    b2 = 0.1 * jax.random.normal(ks[11], (Cout,), jnp.float32)

    out = basic_block_discrim(x, w1, g1, b1, w2, g2, b2, ws, bs)
    out = jax.block_until_ready(out)

    assert out.shape == (N, Cout, H, W), out.shape

    ref = _ref_block(x, w1, g1, b1, w2, g2, b2, ws, bs)
    assert jnp.allclose(out, ref, atol=2e-2, rtol=2e-2), \
        float(jnp.max(jnp.abs(out - ref)))

    print("KERNEL_OK")
</pallas_src>

<mosaic_0001>
module attributes {stable_mosaic.version = 11 : i64} {
  func.func @_basic_block_kernel(%arg0: memref<32x128xf32, #tpu.memory_space<vmem>>, %arg1: memref<1152x256xbf16, #tpu.memory_space<vmem>>, %arg2: memref<2432x256xbf16, #tpu.memory_space<vmem>>, %arg3: memref<128x128xf32, #tpu.memory_space<vmem>>, %arg4: memref<256x256xf32, #tpu.memory_space<vmem>>, %arg5: memref<1x128xf32, #tpu.memory_space<vmem>>, %arg6: memref<1x128xf32, #tpu.memory_space<vmem>>, %arg7: memref<1x256xf32, #tpu.memory_space<vmem>>, %arg8: memref<1x256xf32, #tpu.memory_space<vmem>>, %arg9: memref<1x256xf32, #tpu.memory_space<vmem>>, %arg10: memref<32x256xf32, #tpu.memory_space<vmem>>) attributes {dimension_semantics = [], scalar_prefetch = 0 : i64, scratch_operands = 0 : i64, tpu.core_type = #tpu.core_type<tc>} {
    %c0 = arith.constant 0 : index
    %c0_0 = arith.constant 0 : index
    %0 = vector.load %arg0[%c0, %c0_0] : memref<32x128xf32, #tpu.memory_space<vmem>>, vector<32x128xf32>
    %cst = arith.constant dense<0.000000e+00> : vector<128xf32>
    %1 = vector.multi_reduction <add>, %0, %cst [0] : vector<32x128xf32> to vector<128xf32>
    %2 = vector.shape_cast %1 : vector<128xf32> to vector<1x128xf32>
    %3 = arith.mulf %0, %0 : vector<32x128xf32>
    %cst_1 = arith.constant dense<0.000000e+00> : vector<128xf32>
    %4 = vector.multi_reduction <add>, %3, %cst_1 [0] : vector<32x128xf32> to vector<128xf32>
    %5 = vector.shape_cast %4 : vector<128xf32> to vector<1x128xf32>
    %c0_2 = arith.constant 0 : index
    %c0_3 = arith.constant 0 : index
    %6 = vector.load %arg3[%c0_2, %c0_3] : memref<128x128xf32, #tpu.memory_space<vmem>>, vector<128x128xf32>
    %cst_4 = arith.constant dense<0.000000e+00> : vector<1x128xf32>
    %7 = tpu.matmul %2, %6, %cst_4 {dimension_numbers = #tpu.dot_dimension_numbers<[1], [0], [0], [1], [0, 0, 1, 1], [], []>} : vector<1x128xf32>, vector<128x128xf32>, vector<1x128xf32> -> vector<1x128xf32>
    %c0_5 = arith.constant 0 : index
    %c0_6 = arith.constant 0 : index
    %8 = vector.load %arg3[%c0_5, %c0_6] : memref<128x128xf32, #tpu.memory_space<vmem>>, vector<128x128xf32>
    %cst_7 = arith.constant dense<0.000000e+00> : vector<1x128xf32>
    %9 = tpu.matmul %5, %8, %cst_7 {dimension_numbers = #tpu.dot_dimension_numbers<[1], [0], [0], [1], [0, 0, 1, 1], [], []>} : vector<1x128xf32>, vector<128x128xf32>, vector<1x128xf32> -> vector<1x128xf32>
    %10 = arith.mulf %7, %7 : vector<1x128xf32>
    %11 = arith.subf %9, %10 : vector<1x128xf32>
    %c0_8 = arith.constant 0 : index
    %c0_9 = arith.constant 0 : index
    %12 = vector.load %arg5[%c0_8, %c0_9] : memref<1x128xf32, #tpu.memory_space<vmem>>, vector<1x128xf32>
    %cst_10 = arith.constant 9.99999974E-6 : f32
    %13 = vector.broadcast %cst_10 : f32 to vector<1x128xf32>
    %14 = arith.addf %11, %13 : vector<1x128xf32>
    %15 = math.rsqrt %14 : vector<1x128xf32>
    %16 = arith.mulf %12, %15 : vector<1x128xf32>
    %c0_11 = arith.constant 0 : index
    %c0_12 = arith.constant 0 : index
    %17 = vector.load %arg6[%c0_11, %c0_12] : memref<1x128xf32, #tpu.memory_space<vmem>>, vector<1x128xf32>
    %18 = arith.mulf %7, %16 : vector<1x128xf32>
    %19 = arith.subf %17, %18 : vector<1x128xf32>
    %20 = vector.broadcast %16 : vector<1x128xf32> to vector<32x128xf32>
    %21 = arith.mulf %0, %20 : vector<32x128xf32>
    %22 = vector.broadcast %19 : vector<1x128xf32> to vector<32x128xf32>
    %23 = arith.addf %21, %22 : vector<32x128xf32>
    %cst_13 = arith.constant 0.000000e+00 : f32
    %24 = vector.broadcast %cst_13 : f32 to vector<32x128xf32>
    %25 = arith.maximumf %23, %24 : vector<32x128xf32>
    %cst_14 = arith.constant 0.000000e+00 : f32
    %26 = vector.broadcast %cst_14 : f32 to vector<1x128xf32>
    %27 = tpu.iota {dimensions = array<i32: 0>} : vector<32x1xi32>
    %c16_i32 = arith.constant 16 : i32
    %c0_i32 = arith.constant 0 : i32
    %28 = arith.cmpi eq, %c16_i32, %c0_i32 : i32
    %c1_i32 = arith.constant 1 : i32
    %29 = arith.select %28, %c1_i32, %c16_i32 : i32
    %30 = vector.broadcast %29 : i32 to vector<32x1xi32>
    %31 = arith.remsi %27, %30 : vector<32x1xi32>
    %c0_i32_15 = arith.constant 0 : i32
    %32 = vector.broadcast %c0_i32_15 : i32 to vector<32x1xi32>
    %33 = arith.cmpi ne, %31, %32 : vector<32x1xi32>
    %c0_i32_16 = arith.constant 0 : i32
    %34 = vector.broadcast %c0_i32_16 : i32 to vector<32x1xi32>
    %35 = arith.cmpi slt, %31, %34 : vector<32x1xi32>
    %c0_i32_17 = arith.constant 0 : i32
    %36 = arith.cmpi slt, %29, %c0_i32_17 : i32
    %37 = vector.broadcast %36 : i1 to vector<32x1xi1>
    %38 = vector.broadcast %37 : vector<32x1xi1> to vector<32x1xi1>
    %39 = arith.xori %35, %38 : vector<32x1xi1>
    %40 = arith.andi %39, %33 : vector<32x1xi1>
    %41 = vector.broadcast %29 : i32 to vector<32x1xi32>
    %42 = arith.addi %31, %41 : vector<32x1xi32>
    %43 = arith.select %40, %42, %31 : vector<32x1xi1>, vector<32x1xi32>
    %c0_i32_18 = arith.constant 0 : i32
    %44 = vector.broadcast %c0_i32_18 : i32 to vector<32x1xi32>
    %45 = arith.cmpi sgt, %43, %44 : vector<32x1xi32>
    %46 = arith.extui %45 : vector<32x1xi1> to vector<32x1xi32>
    %47 = arith.sitofp %46 : vector<32x1xi32> to vector<32x1xf32>
    %c15_i32 = arith.constant 15 : i32
    %48 = vector.broadcast %c15_i32 : i32 to vector<32x1xi32>
    %49 = arith.cmpi slt, %43, %48 : vector<32x1xi32>
    %50 = arith.extui %49 : vector<32x1xi1> to vector<32x1xi32>
    %51 = arith.sitofp %50 : vector<32x1xi32> to vector<32x1xf32>
    %52 = vector.extract_strided_slice %25 {offsets = [0, 0], sizes = [31, 128], strides = [1, 1]} : vector<32x128xf32> to vector<31x128xf32>
    %53 = tpu.concatenate %26, %52 in 0 : vector<1x128xf32>, vector<31x128xf32> -> vector<32x128xf32>
    %54 = vector.broadcast %47 : vector<32x1xf32> to vector<32x128xf32>
    %55 = arith.mulf %54, %53 : vector<32x128xf32>
    %56 = vector.extract_strided_slice %25 {offsets = [1, 0], sizes = [31, 128], strides = [1, 1]} : vector<32x128xf32> to vector<31x128xf32>
    %57 = tpu.concatenate %56, %26 in 0 : vector<31x128xf32>, vector<1x128xf32> -> vector<32x128xf32>
    %58 = vector.broadcast %51 : vector<32x1xf32> to vector<32x128xf32>
    %59 = arith.mulf %58, %57 : vector<32x128xf32>
    %cst_19 = arith.constant 0.000000e+00 : f32
    %60 = vector.broadcast %cst_19 : f32 to vector<32x8xf32>
    %61 = tpu.concatenate %60, %55, %60 in 1 : vector<32x8xf32>, vector<32x128xf32>, vector<32x8xf32> -> vector<32x144xf32>
    %62 = vector.extract_strided_slice %61 {offsets = [0, 0], sizes = [32, 128], strides = [1, 1]} : vector<32x144xf32> to vector<32x128xf32>
    %63 = arith.truncf %62 : vector<32x128xf32> to vector<32x128xbf16>
    %64 = vector.extract_strided_slice %61 {offsets = [0, 8], sizes = [32, 128], strides = [1, 1]} : vector<32x144xf32> to vector<32x128xf32>
    %65 = arith.truncf %64 : vector<32x128xf32> to vector<32x128xbf16>
    %66 = vector.extract_strided_slice %61 {offsets = [0, 16], sizes = [32, 128], strides = [1, 1]} : vector<32x144xf32> to vector<32x128xf32>
    %67 = arith.truncf %66 : vector<32x128xf32> to vector<32x128xbf16>
    %68 = tpu.concatenate %60, %25, %60 in 1 : vector<32x8xf32>, vector<32x128xf32>, vector<32x8xf32> -> vector<32x144xf32>
    %69 = vector.extract_strided_slice %68 {offsets = [0, 0], sizes = [32, 128], strides = [1, 1]} : vector<32x144xf32> to vector<32x128xf32>
    %70 = arith.truncf %69 : vector<32x128xf32> to vector<32x128xbf16>
    %71 = vector.extract_strided_slice %68 {offsets = [0, 8], sizes = [32, 128], strides = [1, 1]} : vector<32x144xf32> to vector<32x128xf32>
    %72 = arith.truncf %71 : vector<32x128xf32> to vector<32x128xbf16>
    %73 = vector.extract_strided_slice %68 {offsets = [0, 16], sizes = [32, 128], strides = [1, 1]} : vector<32x144xf32> to vector<32x128xf32>
    %74 = arith.truncf %73 : vector<32x128xf32> to vector<32x128xbf16>
    %75 = tpu.concatenate %60, %59, %60 in 1 : vector<32x8xf32>, vector<32x128xf32>, vector<32x8xf32> -> vector<32x144xf32>
    %76 = vector.extract_strided_slice %75 {offsets = [0, 0], sizes = [32, 128], strides = [1, 1]} : vector<32x144xf32> to vector<32x128xf32>
    %77 = arith.truncf %76 : vector<32x128xf32> to vector<32x128xbf16>
    %78 = vector.extract_strided_slice %75 {offsets = [0, 8], sizes = [32, 128], strides = [1, 1]} : vector<32x144xf32> to vector<32x128xf32>
    %79 = arith.truncf %78 : vector<32x128xf32> to vector<32x128xbf16>
    %80 = vector.extract_strided_slice %75 {offsets = [0, 16], sizes = [32, 128], strides = [1, 1]} : vector<32x144xf32> to vector<32x128xf32>
    %81 = arith.truncf %80 : vector<32x128xf32> to vector<32x128xbf16>
    %82 = tpu.concatenate %63, %65, %67, %70, %72, %74, %77, %79, %81 in 1 : vector<32x128xbf16>, vector<32x128xbf16>, vector<32x128xbf16>, vector<32x128xbf16>, vector<32x128xbf16>, vector<32x128xbf16>, vector<32x128xbf16>, vector<32x128xbf16>, vector<32x128xbf16> -> vector<32x1152xbf16>
    %c0_20 = arith.constant 0 : index
    %c0_21 = arith.constant 0 : index
    %83 = vector.load %arg1[%c0_20, %c0_21] : memref<1152x256xbf16, #tpu.memory_space<vmem>>, vector<1152x256xbf16>
    %cst_22 = arith.constant dense<0.000000e+00> : vector<32x256xf32>
    %84 = tpu.matmul %82, %83, %cst_22 {dimension_numbers = #tpu.dot_dimension_numbers<[1], [0], [0], [1], [0, 0, 1, 1], [], []>} : vector<32x1152xbf16>, vector<1152x256xbf16>, vector<32x256xf32> -> vector<32x256xf32>
    %cst_23 = arith.constant dense<0.000000e+00> : vector<256xf32>
    %85 = vector.multi_reduction <add>, %84, %cst_23 [0] : vector<32x256xf32> to vector<256xf32>
    %86 = vector.shape_cast %85 : vector<256xf32> to vector<1x256xf32>
    %87 = arith.mulf %84, %84 : vector<32x256xf32>
    %cst_24 = arith.constant dense<0.000000e+00> : vector<256xf32>
    %88 = vector.multi_reduction <add>, %87, %cst_24 [0] : vector<32x256xf32> to vector<256xf32>
    %89 = vector.shape_cast %88 : vector<256xf32> to vector<1x256xf32>
    %c0_25 = arith.constant 0 : index
    %c0_26 = arith.constant 0 : index
    %90 = vector.load %arg4[%c0_25, %c0_26] : memref<256x256xf32, #tpu.memory_space<vmem>>, vector<256x256xf32>
    %cst_27 = arith.constant dense<0.000000e+00> : vector<1x256xf32>
    %91 = tpu.matmul %86, %90, %cst_27 {dimension_numbers = #tpu.dot_dimension_numbers<[1], [0], [0], [1], [0, 0, 1, 1], [], []>} : vector<1x256xf32>, vector<256x256xf32>, vector<1x256xf32> -> vector<1x256xf32>
    %c0_28 = arith.constant 0 : index
    %c0_29 = arith.constant 0 : index
    %92 = vector.load %arg4[%c0_28, %c0_29] : memref<256x256xf32, #tpu.memory_space<vmem>>, vector<256x256xf32>
    %cst_30 = arith.constant dense<0.000000e+00> : vector<1x256xf32>
    %93 = tpu.matmul %89, %92, %cst_30 {dimension_numbers = #tpu.dot_dimension_numbers<[1], [0], [0], [1], [0, 0, 1, 1], [], []>} : vector<1x256xf32>, vector<256x256xf32>, vector<1x256xf32> -> vector<1x256xf32>
    %94 = arith.mulf %91, %91 : vector<1x256xf32>
    %95 = arith.subf %93, %94 : vector<1x256xf32>
    %c0_31 = arith.constant 0 : index
    %c0_32 = arith.constant 0 : index
    %96 = vector.load %arg7[%c0_31, %c0_32] : memref<1x256xf32, #tpu.memory_space<vmem>>, vector<1x256xf32>
    %cst_33 = arith.constant 9.99999974E-6 : f32
    %97 = vector.broadcast %cst_33 : f32 to vector<1x256xf32>
    %98 = arith.addf %95, %97 : vector<1x256xf32>
    %99 = math.rsqrt %98 : vector<1x256xf32>
    %100 = arith.mulf %96, %99 : vector<1x256xf32>
    %c0_34 = arith.constant 0 : index
    %c0_35 = arith.constant 0 : index
    %101 = vector.load %arg8[%c0_34, %c0_35] : memref<1x256xf32, #tpu.memory_space<vmem>>, vector<1x256xf32>
    %102 = arith.mulf %91, %100 : vector<1x256xf32>
    %103 = arith.subf %101, %102 : vector<1x256xf32>
    %104 = vector.broadcast %100 : vector<1x256xf32> to vector<32x256xf32>
    %105 = arith.mulf %84, %104 : vector<32x256xf32>
    %106 = vector.broadcast %103 : vector<1x256xf32> to vector<32x256xf32>
    %107 = arith.addf %105, %106 : vector<32x256xf32>
    %cst_36 = arith.constant 0.000000e+00 : f32
    %108 = vector.broadcast %cst_36 : f32 to vector<32x256xf32>
    %109 = arith.maximumf %107, %108 : vector<32x256xf32>
    %cst_37 = arith.constant 0.000000e+00 : f32
    %110 = vector.broadcast %cst_37 : f32 to vector<1x256xf32>
    %111 = tpu.iota {dimensions = array<i32: 0>} : vector<32x1xi32>
    %c16_i32_38 = arith.constant 16 : i32
    %c0_i32_39 = arith.constant 0 : i32
    %112 = arith.cmpi eq, %c16_i32_38, %c0_i32_39 : i32
    %c1_i32_40 = arith.constant 1 : i32
    %113 = arith.select %112, %c1_i32_40, %c16_i32_38 : i32
    %114 = vector.broadcast %113 : i32 to vector<32x1xi32>
    %115 = arith.remsi %111, %114 : vector<32x1xi32>
    %c0_i32_41 = arith.constant 0 : i32
    %116 = vector.broadcast %c0_i32_41 : i32 to vector<32x1xi32>
    %117 = arith.cmpi ne, %115, %116 : vector<32x1xi32>
    %c0_i32_42 = arith.constant 0 : i32
    %118 = vector.broadcast %c0_i32_42 : i32 to vector<32x1xi32>
    %119 = arith.cmpi slt, %115, %118 : vector<32x1xi32>
    %c0_i32_43 = arith.constant 0 : i32
    %120 = arith.cmpi slt, %113, %c0_i32_43 : i32
    %121 = vector.broadcast %120 : i1 to vector<32x1xi1>
    %122 = vector.broadcast %121 : vector<32x1xi1> to vector<32x1xi1>
    %123 = arith.xori %119, %122 : vector<32x1xi1>
    %124 = arith.andi %123, %117 : vector<32x1xi1>
    %125 = vector.broadcast %113 : i32 to vector<32x1xi32>
    %126 = arith.addi %115, %125 : vector<32x1xi32>
    %127 = arith.select %124, %126, %115 : vector<32x1xi1>, vector<32x1xi32>
    %c0_i32_44 = arith.constant 0 : i32
    %128 = vector.broadcast %c0_i32_44 : i32 to vector<32x1xi32>
    %129 = arith.cmpi sgt, %127, %128 : vector<32x1xi32>
    %130 = arith.extui %129 : vector<32x1xi1> to vector<32x1xi32>
    %131 = arith.sitofp %130 : vector<32x1xi32> to vector<32x1xf32>
    %c15_i32_45 = arith.constant 15 : i32
    %132 = vector.broadcast %c15_i32_45 : i32 to vector<32x1xi32>
    %133 = arith.cmpi slt, %127, %132 : vector<32x1xi32>
    %134 = arith.extui %133 : vector<32x1xi1> to vector<32x1xi32>
    %135 = arith.sitofp %134 : vector<32x1xi32> to vector<32x1xf32>
    %136 = vector.extract_strided_slice %109 {offsets = [0, 0], sizes = [31, 256], strides = [1, 1]} : vector<32x256xf32> to vector<31x256xf32>
    %137 = tpu.concatenate %110, %136 in 0 : vector<1x256xf32>, vector<31x256xf32> -> vector<32x256xf32>
    %138 = vector.broadcast %131 : vector<32x1xf32> to vector<32x256xf32>
    %139 = arith.mulf %138, %137 : vector<32x256xf32>
    %140 = vector.extract_strided_slice %109 {offsets = [1, 0], sizes = [31, 256], strides = [1, 1]} : vector<32x256xf32> to vector<31x256xf32>
    %141 = tpu.concatenate %140, %110 in 0 : vector<31x256xf32>, vector<1x256xf32> -> vector<32x256xf32>
    %142 = vector.broadcast %135 : vector<32x1xf32> to vector<32x256xf32>
    %143 = arith.mulf %142, %141 : vector<32x256xf32>
    %cst_46 = arith.constant 0.000000e+00 : f32
    %144 = vector.broadcast %cst_46 : f32 to vector<32x16xf32>
    %145 = tpu.concatenate %144, %139, %144 in 1 : vector<32x16xf32>, vector<32x256xf32>, vector<32x16xf32> -> vector<32x288xf32>
    %146 = vector.extract_strided_slice %145 {offsets = [0, 0], sizes = [32, 256], strides = [1, 1]} : vector<32x288xf32> to vector<32x256xf32>
    %147 = arith.truncf %146 : vector<32x256xf32> to vector<32x256xbf16>
    %148 = vector.extract_strided_slice %145 {offsets = [0, 16], sizes = [32, 256], strides = [1, 1]} : vector<32x288xf32> to vector<32x256xf32>
    %149 = arith.truncf %148 : vector<32x256xf32> to vector<32x256xbf16>
    %150 = vector.extract_strided_slice %145 {offsets = [0, 32], sizes = [32, 256], strides = [1, 1]} : vector<32x288xf32> to vector<32x256xf32>
    %151 = arith.truncf %150 : vector<32x256xf32> to vector<32x256xbf16>
    %152 = tpu.concatenate %144, %109, %144 in 1 : vector<32x16xf32>, vector<32x256xf32>, vector<32x16xf32> -> vector<32x288xf32>
    %153 = vector.extract_strided_slice %152 {offsets = [0, 0], sizes = [32, 256], strides = [1, 1]} : vector<32x288xf32> to vector<32x256xf32>
    %154 = arith.truncf %153 : vector<32x256xf32> to vector<32x256xbf16>
    %155 = vector.extract_strided_slice %152 {offsets = [0, 16], sizes = [32, 256], strides = [1, 1]} : vector<32x288xf32> to vector<32x256xf32>
    %156 = arith.truncf %155 : vector<32x256xf32> to vector<32x256xbf16>
    %157 = vector.extract_strided_slice %152 {offsets = [0, 32], sizes = [32, 256], strides = [1, 1]} : vector<32x288xf32> to vector<32x256xf32>
    %158 = arith.truncf %157 : vector<32x256xf32> to vector<32x256xbf16>
    %159 = tpu.concatenate %144, %143, %144 in 1 : vector<32x16xf32>, vector<32x256xf32>, vector<32x16xf32> -> vector<32x288xf32>
    %160 = vector.extract_strided_slice %159 {offsets = [0, 0], sizes = [32, 256], strides = [1, 1]} : vector<32x288xf32> to vector<32x256xf32>
    %161 = arith.truncf %160 : vector<32x256xf32> to vector<32x256xbf16>
    %162 = vector.extract_strided_slice %159 {offsets = [0, 16], sizes = [32, 256], strides = [1, 1]} : vector<32x288xf32> to vector<32x256xf32>
    %163 = arith.truncf %162 : vector<32x256xf32> to vector<32x256xbf16>
    %164 = vector.extract_strided_slice %159 {offsets = [0, 32], sizes = [32, 256], strides = [1, 1]} : vector<32x288xf32> to vector<32x256xf32>
    %165 = arith.truncf %164 : vector<32x256xf32> to vector<32x256xbf16>
    %166 = arith.truncf %0 : vector<32x128xf32> to vector<32x128xbf16>
    %167 = tpu.concatenate %147, %149, %151, %154, %156, %158, %161, %163, %165, %166 in 1 : vector<32x256xbf16>, vector<32x256xbf16>, vector<32x256xbf16>, vector<32x256xbf16>, vector<32x256xbf16>, vector<32x256xbf16>, vector<32x256xbf16>, vector<32x256xbf16>, vector<32x256xbf16>, vector<32x128xbf16> -> vector<32x2432xbf16>
    %c0_47 = arith.constant 0 : index
    %c0_48 = arith.constant 0 : index
    %168 = vector.load %arg2[%c0_47, %c0_48] : memref<2432x256xbf16, #tpu.memory_space<vmem>>, vector<2432x256xbf16>
    %cst_49 = arith.constant dense<0.000000e+00> : vector<32x256xf32>
    %169 = tpu.matmul %167, %168, %cst_49 {dimension_numbers = #tpu.dot_dimension_numbers<[1], [0], [0], [1], [0, 0, 1, 1], [], []>} : vector<32x2432xbf16>, vector<2432x256xbf16>, vector<32x256xf32> -> vector<32x256xf32>
    %c0_50 = arith.constant 0 : index
    %c0_51 = arith.constant 0 : index
    %170 = vector.load %arg9[%c0_50, %c0_51] : memref<1x256xf32, #tpu.memory_space<vmem>>, vector<1x256xf32>
    %171 = vector.broadcast %170 : vector<1x256xf32> to vector<32x256xf32>
    %172 = arith.addf %169, %171 : vector<32x256xf32>
    %c0_52 = arith.constant 0 : index
    %c0_53 = arith.constant 0 : index
    %173 = vector.load %arg10[%c0_52, %c0_53] : memref<32x256xf32, #tpu.memory_space<vmem>>, vector<32x256xf32>
    tpu.vector_store %arg10[%c0_52, %c0_53], %172 {strides = array<i32>} : memref<32x256xf32, #tpu.memory_space<vmem>>, vector<32x256xf32>,
    return
  }
}

</mosaic_0001>

<llo_original>
// kernel: tpu_custom_call.1
$region0: #{tpu_custom_call.1}
  #allocation0 [shape = 'u32[]', space=smem, size = 0x4, offset = 0x4, fixed_abs, tag = 'smem constant byte address 0x4 - core index']
  #allocation1 [shape = 'u32[144,128]{1,0:T(1,128)}', space=vmem, size = 0x12000, scoped, tag = 'internal scratch']
  %s0 = inlined_call_operand.hbm [shape: f32[32,128], index: 0, kind: input, shape index: {}]
  %s1 = inlined_call_operand.hbm [shape: bf16[1152,256], index: 1, kind: input, shape index: {}]
  %s2 = inlined_call_operand.hbm [shape: bf16[2432,256], index: 2, kind: input, shape index: {}]
  %s3 = inlined_call_operand.hbm [shape: f32[128,128], index: 3, kind: input, shape index: {}]
  %s4 = inlined_call_operand.hbm [shape: f32[256,256], index: 4, kind: input, shape index: {}]
  %s5 = inlined_call_operand.hbm [shape: f32[1,128], index: 5, kind: input, shape index: {}]
  %s6 = inlined_call_operand.hbm [shape: f32[1,128], index: 6, kind: input, shape index: {}]
  %s7 = inlined_call_operand.hbm [shape: f32[1,256], index: 7, kind: input, shape index: {}]
  %s8 = inlined_call_operand.hbm [shape: f32[1,256], index: 8, kind: input, shape index: {}]
  %s9 = inlined_call_operand.hbm [shape: f32[1,256], index: 9, kind: input, shape index: {}]
  %s10 = inlined_call_operand.hbm [shape: f32[32,256], index: 10, kind: output, shape index: {}]
  %s11 = sld [smem:[#allocation0]]
  $region90: #{tpu_custom_call.1} parent=0
    _
  %s13 = ssub.s32 1, %s11
  %s14 = scalar_select 0, %s13, %s11
  $region1: #{tpu_custom_call.1} parent=0
    #allocation2 [shape = 'u8[16384]{0}', space=vmem, size = 0x4000, scoped, tag = 'input window, operand 0, single buffered']
    #allocation3 [shape = 's32[1]{0}', space=sflag, size = 0x4, scoped, tag = 'scoped memory for tpu_custom_call.1']
    #allocation4 [shape = 's32[1]{0}', space=sflag, size = 0x4, scoped, tag = 'scoped memory for tpu_custom_call.1']
    #allocation5 [shape = 'u8[589824]{0}', space=vmem, size = 0x90000, scoped, tag = 'input window, operand 1, single buffered']
    #allocation6 [shape = 's32[1]{0}', space=sflag, size = 0x4, scoped, tag = 'scoped memory for tpu_custom_call.1']
    #allocation7 [shape = 'u8[1245184]{0}', space=vmem, size = 0x130000, scoped, tag = 'input window, operand 2, single buffered']
    #allocation8 [shape = 'u8[65536]{0}', space=vmem, size = 0x10000, scoped, tag = 'input window, operand 3, single buffered']
    #allocation9 [shape = 's32[1]{0}', space=sflag, size = 0x4, scoped, tag = 'scoped memory for tpu_custom_call.1']
    #allocation10 [shape = 'u8[262144]{0}', space=vmem, size = 0x40000, scoped, tag = 'input window, operand 4, single buffered']
    #allocation11 [shape = 'u8[512]{0}', space=vmem, size = 0x400, scoped, tag = 'input window, operand 5, single buffered']
    #allocation12 [shape = 's32[1]{0}', space=sflag, size = 0x4, scoped, tag = 'scoped memory for tpu_custom_call.1']
    #allocation13 [shape = 'u8[512]{0}', space=vmem, size = 0x400, scoped, tag = 'input window, operand 6, single buffered']
    #allocation14 [shape = 'u8[1024]{0}', space=vmem, size = 0x400, scoped, tag = 'input window, operand 7, single buffered']
    #allocation15 [shape = 's32[1]{0}', space=sflag, size = 0x4, scoped, tag = 'scoped memory for tpu_custom_call.1']
    #allocation16 [shape = 'u8[1024]{0}', space=vmem, size = 0x400, scoped, tag = 'input window, operand 8, single buffered']
    #allocation17 [shape = 'u8[1024]{0}', space=vmem, size = 0x400, scoped, tag = 'input window, operand 9, single buffered']
    #allocation18 [shape = 's32[1]{0}', space=sflag, size = 0x4, scoped, tag = 'scoped memory for tpu_custom_call.1']
    #allocation19 [shape = 'u8[32768]{0}', space=vmem, size = 0x8000, scoped, tag = 'output window, operand 0, single buffered']
    %15 = vsyncpa [#allocation3], 0
    %16 = vsyncpa [#allocation6], 0
    %17 = vsyncpa [#allocation9], 0
    %18 = vsyncpa [#allocation12], 0
    %19 = vsyncpa [#allocation15], 0
    %20 = vsyncpa [#allocation18], 0
    %21 = vsyncpa [#allocation4], 0
    // Predicated region
    $region2: #{tpu_custom_call.1} parent=1 // pred_check
      _
    $region3: #{tpu_custom_call.1} parent=1 // pred_check_branch
      %23 = sbr.rel (0) target = $region5
    $region4: #{tpu_custom_call.1} parent=1 // pred_region
      %s25 = ssub.s32 512, 512
      %26 = vsyncadd [#allocation3], %s25
      %s27 = sshll.u32 [#allocation2], 4
      %s28 = int_to_ptr.vmem [resolvable:$true] %s27
      %33 = dma.hbm_to_vmem [thread:$0]  %s0, 512, %s28, [#allocation3], 128, 128, 8
    $region5: #{tpu_custom_call.1} parent=1 // pred_fallthru
      _
    // Predicated region
    $region6: #{tpu_custom_call.1} parent=1 // pred_check
      _
    $region7: #{tpu_custom_call.1} parent=1 // pred_check_branch
      %35 = sbr.rel (0) target = $region9
    $region8: #{tpu_custom_call.1} parent=1 // pred_region
      %s37 = ssub.s32 18432, 18432
      %38 = vsyncadd [#allocation6], %s37
      %s39 = sshll.u32 [#allocation5], 4
      %s40 = int_to_ptr.vmem [resolvable:$true] %s39
      %45 = dma.hbm_to_vmem [thread:$0]  %s1, 18432, %s40, [#allocation6], 128, 128, 8
    $region9: #{tpu_custom_call.1} parent=1 // pred_fallthru
      _
    // Predicated region
    $region10: #{tpu_custom_call.1} parent=1 // pred_check
      _
    $region11: #{tpu_custom_call.1} parent=1 // pred_check_branch
      %47 = sbr.rel (0) target = $region13
    $region12: #{tpu_custom_call.1} parent=1 // pred_region
      %s49 = ssub.s32 38912, 38912
      %50 = vsyncadd [#allocation6], %s49
      %s51 = sshll.u32 [#allocation7], 4
      %s52 = int_to_ptr.vmem [resolvable:$true] %s51
      %57 = dma.hbm_to_vmem [thread:$0]  %s2, 38912, %s52, [#allocation6], 128, 128, 8
    $region13: #{tpu_custom_call.1} parent=1 // pred_fallthru
      _
    // Predicated region
    $region14: #{tpu_custom_call.1} parent=1 // pred_check
      _
    $region15: #{tpu_custom_call.1} parent=1 // pred_check_branch
      %59 = sbr.rel (0) target = $region17
    $region16: #{tpu_custom_call.1} parent=1 // pred_region
      %s61 = ssub.s32 2048, 2048
      %62 = vsyncadd [#allocation9], %s61
      %s63 = sshll.u32 [#allocation8], 4
      %s64 = int_to_ptr.vmem [resolvable:$true] %s63
      %69 = dma.hbm_to_vmem [thread:$0]  %s3, 2048, %s64, [#allocation9], 128, 128, 8
    $region17: #{tpu_custom_call.1} parent=1 // pred_fallthru
      _
    // Predicated region
    $region18: #{tpu_custom_call.1} parent=1 // pred_check
      _
    $region19: #{tpu_custom_call.1} parent=1 // pred_check_branch
      %71 = sbr.rel (0) target = $region21
    $region20: #{tpu_custom_call.1} parent=1 // pred_region
      %s73 = ssub.s32 8192, 8192
      %74 = vsyncadd [#allocation9], %s73
      %s75 = sshll.u32 [#allocation10], 4
      %s76 = int_to_ptr.vmem [resolvable:$true] %s75
      %81 = dma.hbm_to_vmem [thread:$0]  %s4, 8192, %s76, [#allocation9], 256, 256, 16
    $region21: #{tpu_custom_call.1} parent=1 // pred_fallthru
      _
    // Predicated region
    $region22: #{tpu_custom_call.1} parent=1 // pred_check
      _
    $region23: #{tpu_custom_call.1} parent=1 // pred_check_branch
      %83 = sbr.rel (0) target = $region25
    $region24: #{tpu_custom_call.1} parent=1 // pred_region
      %s85 = ssub.s32 16, 16
      %86 = vsyncadd [#allocation12], %s85
      %s88 = sshll.u32 [#allocation11], 4
      %s89 = int_to_ptr.vmem [resolvable:$true] %s88
      %91 = dma.hbm_to_vmem [thread:$0]  %s5, 16, %s89, [#allocation12]
    $region25: #{tpu_custom_call.1} parent=1 // pred_fallthru
      _
    // Predicated region
    $region26: #{tpu_custom_call.1} parent=1 // pred_check
      _
    $region27: #{tpu_custom_call.1} parent=1 // pred_check_branch
      %93 = sbr.rel (0) target = $region29
    $region28: #{tpu_custom_call.1} parent=1 // pred_region
      %s95 = ssub.s32 16, 16
      %96 = vsyncadd [#allocation12], %s95
      %s98 = sshll.u32 [#allocation13], 4
      %s99 = int_to_ptr.vmem [resolvable:$true] %s98
      %101 = dma.hbm_to_vmem [thread:$0]  %s6, 16, %s99, [#allocation12]
    $region29: #{tpu_custom_call.1} parent=1 // pred_fallthru
      _
    // Predicated region
    $region30: #{tpu_custom_call.1} parent=1 // pred_check
      _
    $region31: #{tpu_custom_call.1} parent=1 // pred_check_branch
      %103 = sbr.rel (0) target = $region33
    $region32: #{tpu_custom_call.1} parent=1 // pred_region
      %s105 = ssub.s32 32, 32
      %106 = vsyncadd [#allocation15], %s105
      %s108 = sshll.u32 [#allocation14], 4
      %s109 = int_to_ptr.vmem [resolvable:$true] %s108
      %111 = dma.hbm_to_vmem [thread:$0]  %s7, 32, %s109, [#allocation15]
    $region33: #{tpu_custom_call.1} parent=1 // pred_fallthru
      _
    // Predicated region
    $region34: #{tpu_custom_call.1} parent=1 // pred_check
      _
    $region35: #{tpu_custom_call.1} parent=1 // pred_check_branch
      %113 = sbr.rel (0) target = $region37
    $region36: #{tpu_custom_call.1} parent=1 // pred_region
      %s115 = ssub.s32 32, 32
      %116 = vsyncadd [#allocation15], %s115
      %s118 = sshll.u32 [#allocation16], 4
      %s119 = int_to_ptr.vmem [resolvable:$true] %s118
      %121 = dma.hbm_to_vmem [thread:$0]  %s8, 32, %s119, [#allocation15]
    $region37: #{tpu_custom_call.1} parent=1 // pred_fallthru
      _
    // Predicated region
    $region38: #{tpu_custom_call.1} parent=1 // pred_check
      _
    $region39: #{tpu_custom_call.1} parent=1 // pred_check_branch
      %123 = sbr.rel (0) target = $region41
    $region40: #{tpu_custom_call.1} parent=1 // pred_region
      %s125 = ssub.s32 32, 32
      %126 = vsyncadd [#allocation18], %s125
      %s128 = sshll.u32 [#allocation17], 4
      %s129 = int_to_ptr.vmem [resolvable:$true] %s128
      %131 = dma.hbm_to_vmem [thread:$0]  %s9, 32, %s129, [#allocation18]
    $region41: #{tpu_custom_call.1} parent=1 // pred_fallthru
      _
    // Predicated region
    $region42: #{tpu_custom_call.1} parent=1 // pred_check
      _
    $region43: #{tpu_custom_call.1} parent=1 // pred_check_branch
      %133 = sbr.rel (0) target = $region45
    $region44: #{tpu_custom_call.1} parent=1 // pred_region
      %134 = dma.done [#allocation3], 512
    $region45: #{tpu_custom_call.1} parent=1 // pred_fallthru
      _
    // Predicated region
    $region46: #{tpu_custom_call.1} parent=1 // pred_check
      _
    $region47: #{tpu_custom_call.1} parent=1 // pred_check_branch
      %136 = sbr.rel (0) target = $region49
    $region48: #{tpu_custom_call.1} parent=1 // pred_region
      %137 = dma.done [#allocation6], 18432
    $region49: #{tpu_custom_call.1} parent=1 // pred_fallthru
      _
    // Predicated region
    $region50: #{tpu_custom_call.1} parent=1 // pred_check
      _
    $region51: #{tpu_custom_call.1} parent=1 // pred_check_branch
      %139 = sbr.rel (0) target = $region53
    $region52: #{tpu_custom_call.1} parent=1 // pred_region
      %140 = dma.done [#allocation6], 38912
    $region53: #{tpu_custom_call.1} parent=1 // pred_fallthru
      _
    // Predicated region
    $region54: #{tpu_custom_call.1} parent=1 // pred_check
      _
    $region55: #{tpu_custom_call.1} parent=1 // pred_check_branch
      %142 = sbr.rel (0) target = $region57
    $region56: #{tpu_custom_call.1} parent=1 // pred_region
      %143 = dma.done [#allocation9], 2048
    $region57: #{tpu_custom_call.1} parent=1 // pred_fallthru
      _
    // Predicated region
    $region58: #{tpu_custom_call.1} parent=1 // pred_check
      _
    $region59: #{tpu_custom_call.1} parent=1 // pred_check_branch
      %145 = sbr.rel (0) target = $region61
    $region60: #{tpu_custom_call.1} parent=1 // pred_region
      %146 = dma.done [#allocation9], 8192
    $region61: #{tpu_custom_call.1} parent=1 // pred_fallthru
      _
    // Predicated region
    $region62: #{tpu_custom_call.1} parent=1 // pred_check
      _
    $region63: #{tpu_custom_call.1} parent=1 // pred_check_branch
      %148 = sbr.rel (0) target = $region65
    $region64: #{tpu_custom_call.1} parent=1 // pred_region
      %149 = dma.done [#allocation12], 16
    $region65: #{tpu_custom_call.1} parent=1 // pred_fallthru
      _
    // Predicated region
    $region66: #{tpu_custom_call.1} parent=1 // pred_check
      _
    $region67: #{tpu_custom_call.1} parent=1 // pred_check_branch
      %151 = sbr.rel (0) target = $region69
    $region68: #{tpu_custom_call.1} parent=1 // pred_region
      %152 = dma.done [#allocation12], 16
    $region69: #{tpu_custom_call.1} parent=1 // pred_fallthru
      _
    // Predicated region
    $region70: #{tpu_custom_call.1} parent=1 // pred_check
      _
    $region71: #{tpu_custom_call.1} parent=1 // pred_check_branch
      %154 = sbr.rel (0) target = $region73
    $region72: #{tpu_custom_call.1} parent=1 // pred_region
      %155 = dma.done [#allocation15], 32
    $region73: #{tpu_custom_call.1} parent=1 // pred_fallthru
      _
    // Predicated region
    $region74: #{tpu_custom_call.1} parent=1 // pred_check
      _
    $region75: #{tpu_custom_call.1} parent=1 // pred_check_branch
      %157 = sbr.rel (0) target = $region77
    $region76: #{tpu_custom_call.1} parent=1 // pred_region
      %158 = dma.done [#allocation15], 32
    $region77: #{tpu_custom_call.1} parent=1 // pred_fallthru
      _
    // Predicated region
    $region78: #{tpu_custom_call.1} parent=1 // pred_check
      _
    $region79: #{tpu_custom_call.1} parent=1 // pred_check_branch
      %160 = sbr.rel (0) target = $region81
    $region80: #{tpu_custom_call.1} parent=1 // pred_region
      %161 = dma.done [#allocation18], 32
    $region81: #{tpu_custom_call.1} parent=1 // pred_fallthru
      _
    %v163 = vld [vmem:[#allocation2] sm:$0xff]
    %v164 = vld [vmem:[#allocation2 + $0x8] sm:$0xff]
    %v165 = vld [vmem:[#allocation2 + $0x10] sm:$0xff]
    %v166 = vld [vmem:[#allocation2 + $0x18] sm:$0xff]
    %v167 = vadd.f32 %v163, %v164
    %v168 = vadd.f32 %v167, %v165
    %v169 = vadd.f32 %v168, %v166
    %v170 = vrot.slane %v169, 4
    %v171 = vadd.f32 %v169, %v170
    %v172 = vrot.slane %v171, 2
    %v173 = vadd.f32 %v171, %v172
    %v174 = vrot.slane %v173, 1
    %v175 = vadd.f32 %v173, %v174
    %v176 = vmul.f32 %v163, %v163
    %v177 = vmul.f32 %v164, %v164
    %v178 = vmul.f32 %v165, %v165
    %v179 = vmul.f32 %v166, %v166
    %v180 = vadd.f32 %v176, %v177
    %v181 = vadd.f32 %v180, %v178
    %v182 = vadd.f32 %v181, %v179
    %v183 = vrot.slane %v182, 4
    %v184 = vadd.f32 %v182, %v183
    %v185 = vrot.slane %v184, 2
    %v186 = vadd.f32 %v184, %v185
    %v187 = vrot.slane %v186, 1
    %v188 = vadd.f32 %v186, %v187
    %v189 = vld [vmem:[#allocation8] sm:$0xff]
    %v190 = vld [vmem:[#allocation8 + $0x8] sm:$0xff]
    %v191 = vld [vmem:[#allocation8 + $0x10] sm:$0xff]
    %v192 = vld [vmem:[#allocation8 + $0x18] sm:$0xff]
    %v193 = vld [vmem:[#allocation8 + $0x20] sm:$0xff]
    %v194 = vld [vmem:[#allocation8 + $0x28] sm:$0xff]
    %v195 = vld [vmem:[#allocation8 + $0x30] sm:$0xff]
    %v196 = vld [vmem:[#allocation8 + $0x38] sm:$0xff]
    %v197 = vld [vmem:[#allocation8 + $0x40] sm:$0xff]
    %v198 = vld [vmem:[#allocation8 + $0x48] sm:$0xff]
    %v199 = vld [vmem:[#allocation8 + $0x50] sm:$0xff]
    %v200 = vld [vmem:[#allocation8 + $0x58] sm:$0xff]
    %v201 = vld [vmem:[#allocation8 + $0x60] sm:$0xff]
    %v202 = vld [vmem:[#allocation8 + $0x68] sm:$0xff]
    %v203 = vld [vmem:[#allocation8 + $0x70] sm:$0xff]
    %v204 = vld [vmem:[#allocation8 + $0x78] sm:$0xff]
    %205 = vmatprep.subr.mxu0 0.0
    %206 = vmatpush1.msra.mxu0 %v204
    %207 = vmatprep.subr.mxu0 0.0
    %208 = vmatpush1.msra.mxu0 %v203
    %209 = vmatprep.subr.mxu0 0.0
    %210 = vmatpush1.msra.mxu0 %v202
    %211 = vmatprep.subr.mxu0 0.0
    %212 = vmatpush1.msra.mxu0 %v201
    %213 = vmatprep.subr.mxu0 0.0
    %214 = vmatpush1.msra.mxu0 %v200
    %215 = vmatprep.subr.mxu0 0.0
    %216 = vmatpush1.msra.mxu0 %v199
    %217 = vmatprep.subr.mxu0 0.0
    %218 = vmatpush1.msra.mxu0 %v198
    %219 = vmatprep.subr.mxu0 0.0
    %220 = vmatpush1.msra.mxu0 %v197
    %221 = vmatprep.subr.mxu0 0.0
    %222 = vmatpush1.msra.mxu0 %v196
    %223 = vmatprep.subr.mxu0 0.0
    %224 = vmatpush1.msra.mxu0 %v195
    %225 = vmatprep.subr.mxu0 0.0
    %226 = vmatpush1.msra.mxu0 %v194
    %227 = vmatprep.subr.mxu0 0.0
    %228 = vmatpush1.msra.mxu0 %v193
    %229 = vmatprep.subr.mxu0 0.0
    %230 = vmatpush1.msra.mxu0 %v192
    %231 = vmatprep.subr.mxu0 0.0
    %232 = vmatpush1.msra.mxu0 %v191
    %233 = vmatprep.subr.mxu0 0.0
    %234 = vmatpush1.msra.mxu0 %v190
    %235 = vmatprep.subr.mxu0 0.0
    %236 = vmatpush1.msra.mxu0 %v189
    %237 = vmatprep.subr.mxu0 0.0
    %238 = vmatpush2.msra.mxu0 0.0
    %239 = vmatprep.subr.mxu0 0.0
    %240 = vmatpush2.msra.mxu0 0.0
    %241 = vmatprep.subr.mxu0 0.0
    %242 = vmatpush2.msra.mxu0 0.0
    %243 = vmatprep.subr.mxu0 0.0
    %244 = vmatpush2.msra.mxu0 0.0
    %245 = vmatprep.subr.mxu0 0.0
    %246 = vmatpush2.msra.mxu0 0.0
    %247 = vmatprep.subr.mxu0 0.0
    %248 = vmatpush2.msra.mxu0 0.0
    %249 = vmatprep.subr.mxu0 0.0
    %250 = vmatpush2.msra.mxu0 0.0
    %251 = vmatprep.subr.mxu0 0.0
    %252 = vmatpush2.msra.mxu0 0.0
    %253 = vmatprep.subr.mxu0 0.0
    %254 = vmatpush2.msra.mxu0 0.0
    %255 = vmatprep.subr.mxu0 0.0
    %256 = vmatpush2.msra.mxu0 0.0
    %257 = vmatprep.subr.mxu0 0.0
    %258 = vmatpush2.msra.mxu0 0.0
    %259 = vmatprep.subr.mxu0 0.0
    %260 = vmatpush2.msra.mxu0 0.0
    %261 = vmatprep.subr.mxu0 0.0
    %262 = vmatpush2.msra.mxu0 0.0
    %263 = vmatprep.subr.mxu0 0.0
    %264 = vmatpush2.msra.mxu0 0.0
    %265 = vmatprep.subr.mxu0 0.0
    %266 = vmatpush2.msra.mxu0 0.0
    %267 = vmatprep.subr.mxu0 0.0
    %268 = vmatpush2.msra.mxu0 0.0
    %269 = vmatprep.mubr.f32.mxu0 0.0
    %270 = vmatmul.mubr.f32.gmra.mxu0 %v175
    %v271 = vpop.f32.mrf.mxu0
    %v272 = vadd.f32 0.0, %v271
    %v273 = vpop.f32.mrf.mxu0
    %274 = vdwg.mxu0
    %275 = vmatprep.subr.mxu0 0.0
    %276 = vmatpush1.msra.mxu0 %v204
    %277 = vmatprep.subr.mxu0 0.0
    %278 = vmatpush1.msra.mxu0 %v203
    %279 = vmatprep.subr.mxu0 0.0
    %280 = vmatpush1.msra.mxu0 %v202
    %281 = vmatprep.subr.mxu0 0.0
    %282 = vmatpush1.msra.mxu0 %v201
    %283 = vmatprep.subr.mxu0 0.0
    %284 = vmatpush1.msra.mxu0 %v200
    %285 = vmatprep.subr.mxu0 0.0
    %286 = vmatpush1.msra.mxu0 %v199
    %287 = vmatprep.subr.mxu0 0.0
    %288 = vmatpush1.msra.mxu0 %v198
    %289 = vmatprep.subr.mxu0 0.0
    %290 = vmatpush1.msra.mxu0 %v197
    %291 = vmatprep.subr.mxu0 0.0
    %292 = vmatpush1.msra.mxu0 %v196
    %293 = vmatprep.subr.mxu0 0.0
    %294 = vmatpush1.msra.mxu0 %v195
    %295 = vmatprep.subr.mxu0 0.0
    %296 = vmatpush1.msra.mxu0 %v194
    %297 = vmatprep.subr.mxu0 0.0
    %298 = vmatpush1.msra.mxu0 %v193
    %299 = vmatprep.subr.mxu0 0.0
    %300 = vmatpush1.msra.mxu0 %v192
    %301 = vmatprep.subr.mxu0 0.0
    %302 = vmatpush1.msra.mxu0 %v191
    %303 = vmatprep.subr.mxu0 0.0
    %304 = vmatpush1.msra.mxu0 %v190
    %305 = vmatprep.subr.mxu0 0.0
    %306 = vmatpush1.msra.mxu0 %v189
    %307 = vmatprep.subr.mxu0 0.0
    %308 = vmatpush2.msra.mxu0 0.0
    %309 = vmatprep.subr.mxu0 0.0
    %310 = vmatpush2.msra.mxu0 0.0
    %311 = vmatprep.subr.mxu0 0.0
    %312 = vmatpush2.msra.mxu0 0.0
    %313 = vmatprep.subr.mxu0 0.0
    %314 = vmatpush2.msra.mxu0 0.0
    %315 = vmatprep.subr.mxu0 0.0
    %316 = vmatpush2.msra.mxu0 0.0
    %317 = vmatprep.subr.mxu0 0.0
    %318 = vmatpush2.msra.mxu0 0.0
    %319 = vmatprep.subr.mxu0 0.0
    %320 = vmatpush2.msra.mxu0 0.0
    %321 = vmatprep.subr.mxu0 0.0
    %322 = vmatpush2.msra.mxu0 0.0
    %323 = vmatprep.subr.mxu0 0.0
    %324 = vmatpush2.msra.mxu0 0.0
    %325 = vmatprep.subr.mxu0 0.0
    %326 = vmatpush2.msra.mxu0 0.0
    %327 = vmatprep.subr.mxu0 0.0
    %328 = vmatpush2.msra.mxu0 0.0
    %329 = vmatprep.subr.mxu0 0.0
    %330 = vmatpush2.msra.mxu0 0.0
    %331 = vmatprep.subr.mxu0 0.0
    %332 = vmatpush2.msra.mxu0 0.0
    %333 = vmatprep.subr.mxu0 0.0
    %334 = vmatpush2.msra.mxu0 0.0
    %335 = vmatprep.subr.mxu0 0.0
    %336 = vmatpush2.msra.mxu0 0.0
    %337 = vmatprep.subr.mxu0 0.0
    %338 = vmatpush2.msra.mxu0 0.0
    %339 = vmatprep.mubr.f32.mxu0 0.0
    %340 = vmatmul.mubr.f32.gmra.mxu0 %v188
    %v341 = vpop.f32.mrf.mxu0
    %v342 = vadd.f32 0.0, %v341
    %v343 = vpop.f32.mrf.mxu0
    %344 = vdwg.mxu0
    %v345 = vmul.f32 %v272, %v272
    %v346 = vsub.f32 %v342, %v345
    %v347 = vld [vmem:[#allocation11] sm:$0x1]
    %v348 = vadd.f32 %v346, 1e-05
    %v349 = vrsqrt.pop %v348
    %v350 = vmul.f32 %v347, %v349
    %v351 = vld [vmem:[#allocation13] sm:$0x1]
    %v352 = vmul.f32 %v272, %v350
    %v353 = vsub.f32 %v351, %v352
    %v355 = vlaneseq
    %v356 = vshrl.u32 %v355, 7
    %v357 = vsub.s32 0, %v356
    %v358 = vrot.slane %v350, %v357
    %v360 = vmul.f32 %v163, %v358
    %v361 = vmul.f32 %v164, %v358
    %v362 = vmul.f32 %v165, %v358
    %v363 = vmul.f32 %v166, %v358
    %v365 = vlaneseq
    %v366 = vshrl.u32 %v365, 7
    %v367 = vsub.s32 0, %v366
    %v368 = vrot.slane %v353, %v367
    %v370 = vadd.f32 %v360, %v368
    %v371 = vadd.f32 %v361, %v368
    %v372 = vadd.f32 %v362, %v368
    %v373 = vadd.f32 %v363, %v368
    %v374 = vmax.f32 %v370, 0.0
    %v375 = vmax.f32 %v371, 0.0
    %v376 = vmax.f32 %v372, 0.0
    %v377 = vmax.f32 %v373, 0.0
    %v378 = vlaneseq
    %v379 = vshrl.u32 %v378, 7
    %v380 = vadd.s32 %v379, 8
    %v381 = vadd.s32 %v379, 16
    %v382 = vadd.s32 %v379, 24
    %vm383 = vcmp.lt.s32.totalorder %v379, 0
    %v384 = vsub.s32 0, %v379
    %v385 = vsel %vm383, %v384, %v379
    %v386 = vshrl.u32 %v385, 4
    %v387 = vand.u32 %v385, 15
    %v388 = vsub.s32 0, %v387
    %v389 = vsel %vm383, %v388, %v387
    %vm390 = vcmp.lt.s32.totalorder %v380, 0
    %v391 = vsub.s32 0, %v380
    %v392 = vsel %vm390, %v391, %v380
    %v393 = vshrl.u32 %v392, 4
    %v394 = vand.u32 %v392, 15
    %v395 = vsub.s32 0, %v394
    %v396 = vsel %vm390, %v395, %v394
    %vm397 = vcmp.lt.s32.totalorder %v381, 0
    %v398 = vsub.s32 0, %v381
    %v399 = vsel %vm397, %v398, %v381
    %v400 = vshrl.u32 %v399, 4
    %v401 = vand.u32 %v399, 15
    %v402 = vsub.s32 0, %v401
    %v403 = vsel %vm397, %v402, %v401
    %vm404 = vcmp.lt.s32.totalorder %v382, 0
    %v405 = vsub.s32 0, %v382
    %v406 = vsel %vm404, %v405, %v382
    %v407 = vshrl.u32 %v406, 4
    %v408 = vand.u32 %v406, 15
    %v409 = vsub.s32 0, %v408
    %v410 = vsel %vm404, %v409, %v408
    %vm411 = vcmp.ne.s32.totalorder %v389, 0
    %vm412 = vcmp.ne.s32.totalorder %v396, 0
    %vm413 = vcmp.ne.s32.totalorder %v403, 0
    %vm414 = vcmp.ne.s32.totalorder %v410, 0
    %vm415 = vcmp.lt.s32.totalorder %v389, 0
    %vm416 = vcmp.lt.s32.totalorder %v396, 0
    %vm417 = vcmp.lt.s32.totalorder %v403, 0
    %vm418 = vcmp.lt.s32.totalorder %v410, 0
    %vm419 = vmand %vm415, %vm411
    %vm420 = vmand %vm416, %vm412
    %vm421 = vmand %vm417, %vm413
    %vm422 = vmand %vm418, %vm414
    %v423 = vadd.s32 %v389, 16
    %v424 = vadd.s32 %v396, 16
    %v425 = vadd.s32 %v403, 16
    %v426 = vadd.s32 %v410, 16
    %v427 = vsel %vm419, %v423, %v389
    %v428 = vsel %vm420, %v424, %v396
    %v429 = vsel %vm421, %v425, %v403
    %v430 = vsel %vm422, %v426, %v410
    %vm431 = vcmp.gt.s32.totalorder %v427, 0
    %vm432 = vcmp.gt.s32.totalorder %v428, 0
    %vm433 = vcmp.gt.s32.totalorder %v429, 0
    %vm434 = vcmp.gt.s32.totalorder %v430, 0
    %v435 = vsel %vm431, 1, 0
    %v436 = vsel %vm432, 1, 0
    %v437 = vsel %vm433, 1, 0
    %v438 = vsel %vm434, 1, 0
    %v439 = vcvt.s32.f32 %v435
    %v440 = vcvt.s32.f32 %v436
    %v441 = vcvt.s32.f32 %v437
    %v442 = vcvt.s32.f32 %v438
    %vm443 = vcmp.lt.s32.totalorder %v427, 15
    %vm444 = vcmp.lt.s32.totalorder %v428, 15
    %vm445 = vcmp.lt.s32.totalorder %v429, 15
    %vm446 = vcmp.lt.s32.totalorder %v430, 15
    %v447 = vsel %vm443, 1, 0
    %v448 = vsel %vm444, 1, 0
    %v449 = vsel %vm445, 1, 0
    %v450 = vsel %vm446, 1, 0
    %v451 = vcvt.s32.f32 %v447
    %v452 = vcvt.s32.f32 %v448
    %v453 = vcvt.s32.f32 %v449
    %v454 = vcvt.s32.f32 %v450
    %vm459 = vcmask 1040384
    %v460 = vrot.slane %v374, 7
    %v461 = vrot.slane %v375, 7
    %v462 = vsel %vm459, %v460, %v461
    %v463 = vrot.slane %v376, 7
    %v464 = vsel %vm459, %v461, %v463
    %v465 = vrot.slane %v377, 7
    %v466 = vsel %vm459, %v463, %v465
    %v471 = vsel %vm459, 0.0, %v460
    %v472 = vmul.f32 %v439, %v471
    %v473 = vmul.f32 %v440, %v462
    %v474 = vmul.f32 %v441, %v464
    %v475 = vmul.f32 %v442, %v466
    %vm476 = vcmask 1046528
    %v477 = vrot.slane %v374, 1
    %v478 = vrot.slane %v375, 1
    %v479 = vsel %vm476, %v477, %v478
    %v480 = vrot.slane %v376, 1
    %v481 = vsel %vm476, %v478, %v480
    %v482 = vrot.slane %v377, 1
    %v483 = vsel %vm476, %v480, %v482
    %v488 = vsel %vm476, %v482, 0.0
    %v489 = vmul.f32 %v451, %v479
    %v490 = vmul.f32 %v452, %v481
    %v491 = vmul.f32 %v453, %v483
    %v492 = vmul.f32 %v454, %v488
    %497 = vrot.lane.b32.xlu0 %v472, 8
    %v498 = vpop.permute.xlu0 %497
    %499 = vrot.lane.b32.xlu0 %v473, 8
    %v500 = vpop.permute.xlu0 %499
    %501 = vrot.lane.b32.xlu0 %v474, 8
    %v502 = vpop.permute.xlu0 %501
    %503 = vrot.lane.b32.xlu0 %v475, 8
    %v504 = vpop.permute.xlu0 %503
    %vm509 = vcmask 64512
    %v510 = vsel %vm509, 0.0, %v498
    %v511 = vsel %vm509, 0.0, %v500
    %v512 = vsel %vm509, 0.0, %v502
    %v513 = vsel %vm509, 0.0, %v504
    %v514 = vsel %vm509, %v498, 0.0
    %v515 = vsel %vm509, %v500, 0.0
    %v516 = vsel %vm509, %v502, 0.0
    %v517 = vsel %vm509, %v504, 0.0
    %v518 = vpack.c.bf16 %v511, %v510
    %v519 = vpack.c.bf16 %v513, %v512
    %v520 = vpack.c.bf16 %v515, %v514
    %v521 = vpack.c.bf16 %v517, %v516
    %522 = vrot.lane.b32.xlu0 %v374, 8
    %v523 = vpop.permute.xlu0 %522
    %524 = vrot.lane.b32.xlu0 %v375, 8
    %v525 = vpop.permute.xlu0 %524
    %526 = vrot.lane.b32.xlu0 %v376, 8
    %v527 = vpop.permute.xlu0 %526
    %528 = vrot.lane.b32.xlu0 %v377, 8
    %v529 = vpop.permute.xlu0 %528
    %v534 = vsel %vm509, 0.0, %v523
    %v535 = vsel %vm509, 0.0, %v525
    %v536 = vsel %vm509, 0.0, %v527
    %v537 = vsel %vm509, 0.0, %v529
    %v538 = vsel %vm509, %v523, 0.0
    %v539 = vsel %vm509, %v525, 0.0
    %v540 = vsel %vm509, %v527, 0.0
    %v541 = vsel %vm509, %v529, 0.0
    %v542 = vpack.c.bf16 %v535, %v534
    %v543 = vpack.c.bf16 %v537, %v536
    %v544 = vpack.c.bf16 %v539, %v538
    %v545 = vpack.c.bf16 %v541, %v540
    %550 = vrot.lane.b32.xlu0 %v489, 8
    %v551 = vpop.permute.xlu0 %550
    %552 = vrot.lane.b32.xlu0 %v490, 8
    %v553 = vpop.permute.xlu0 %552
    %554 = vrot.lane.b32.xlu0 %v491, 8
    %v555 = vpop.permute.xlu0 %554
    %556 = vrot.lane.b32.xlu0 %v492, 8
    %v557 = vpop.permute.xlu0 %556
    %v562 = vsel %vm509, 0.0, %v551
    %v563 = vsel %vm509, 0.0, %v553
    %v564 = vsel %vm509, 0.0, %v555
    %v565 = vsel %vm509, 0.0, %v557
    %v566 = vsel %vm509, %v551, 0.0
    %v567 = vsel %vm509, %v553, 0.0
    %v568 = vsel %vm509, %v555, 0.0
    %v569 = vsel %vm509, %v557, 0.0
    %v570 = vpack.c.bf16 %v563, %v562
    %v571 = vpack.c.bf16 %v565, %v564
    %v572 = vpack.c.bf16 %v567, %v566
    %v573 = vpack.c.bf16 %v569, %v568
    %578 = vrot.lane.b32.xlu0 %v518, 120
    %v579 = vpop.permute.xlu0 %578
    %580 = vrot.lane.b32.xlu0 %v520, 120
    %v581 = vpop.permute.xlu0 %580
    %582 = vrot.lane.b32.xlu0 %v519, 120
    %v583 = vpop.permute.xlu0 %582
    %584 = vrot.lane.b32.xlu0 %v521, 120
    %v585 = vpop.permute.xlu0 %584
    %vm586 = vcmask 982016
    %v587 = vsel %vm586, %v579, %v581
    %v588 = vsel %vm586, %v583, %v585
    %591 = vrot.lane.b32.xlu0 %v518, 112
    %v592 = vpop.permute.xlu0 %591
    %593 = vrot.lane.b32.xlu0 %v520, 112
    %v594 = vpop.permute.xlu0 %593
    %595 = vrot.lane.b32.xlu0 %v519, 112
    %v596 = vpop.permute.xlu0 %595
    %597 = vrot.lane.b32.xlu0 %v521, 112
    %v598 = vpop.permute.xlu0 %597
    %vm599 = vcmask 916480
    %v600 = vsel %vm599, %v592, %v594
    %v601 = vsel %vm599, %v596, %v598
    %608 = vrot.lane.b32.xlu0 %v542, 120
    %v609 = vpop.permute.xlu0 %608
    %610 = vrot.lane.b32.xlu0 %v544, 120
    %v611 = vpop.permute.xlu0 %610
    %612 = vrot.lane.b32.xlu0 %v543, 120
    %v613 = vpop.permute.xlu0 %612
    %614 = vrot.lane.b32.xlu0 %v545, 120
    %v615 = vpop.permute.xlu0 %614
    %v616 = vsel %vm586, %v609, %v611
    %v617 = vsel %vm586, %v613, %v615
    %620 = vrot.lane.b32.xlu0 %v542, 112
    %v621 = vpop.permute.xlu0 %620
    %622 = vrot.lane.b32.xlu0 %v544, 112
    %v623 = vpop.permute.xlu0 %622
    %624 = vrot.lane.b32.xlu0 %v543, 112
    %v625 = vpop.permute.xlu0 %624
    %626 = vrot.lane.b32.xlu0 %v545, 112
    %v627 = vpop.permute.xlu0 %626
    %v628 = vsel %vm599, %v621, %v623
    %v629 = vsel %vm599, %v625, %v627
    %636 = vrot.lane.b32.xlu0 %v570, 120
    %v637 = vpop.permute.xlu0 %636
    %638 = vrot.lane.b32.xlu0 %v572, 120
    %v639 = vpop.permute.xlu0 %638
    %640 = vrot.lane.b32.xlu0 %v571, 120
    %v641 = vpop.permute.xlu0 %640
    %642 = vrot.lane.b32.xlu0 %v573, 120
    %v643 = vpop.permute.xlu0 %642
    %v644 = vsel %vm586, %v637, %v639
    %v645 = vsel %vm586, %v641, %v643
    %648 = vrot.lane.b32.xlu0 %v570, 112
    %v649 = vpop.permute.xlu0 %648
    %650 = vrot.lane.b32.xlu0 %v572, 112
    %v651 = vpop.permute.xlu0 %650
    %652 = vrot.lane.b32.xlu0 %v571, 112
    %v653 = vpop.permute.xlu0 %652
    %654 = vrot.lane.b32.xlu0 %v573, 112
    %v655 = vpop.permute.xlu0 %654
    %v656 = vsel %vm599, %v649, %v651
    %v657 = vsel %vm599, %v653, %v655
    %v660 = vld [vmem:[#allocation5] sm:$0xff]
    %v661 = vld [vmem:[#allocation5 + $0x8] sm:$0xff]
    %v662 = vld [vmem:[#allocation5 + $0x10] sm:$0xff]
    %v663 = vld [vmem:[#allocation5 + $0x18] sm:$0xff]
    %v664 = vld [vmem:[#allocation5 + $0x20] sm:$0xff]
    %v665 = vld [vmem:[#allocation5 + $0x28] sm:$0xff]
    %v666 = vld [vmem:[#allocation5 + $0x30] sm:$0xff]
    %v667 = vld [vmem:[#allocation5 + $0x38] sm:$0xff]
    %v668 = vld [vmem:[#allocation5 + $0x40] sm:$0xff]
    %v669 = vld [vmem:[#allocation5 + $0x48] sm:$0xff]
    %v670 = vld [vmem:[#allocation5 + $0x50] sm:$0xff]
    %v671 = vld [vmem:[#allocation5 + $0x58] sm:$0xff]
    %v672 = vld [vmem:[#allocation5 + $0x60] sm:$0xff]
    %v673 = vld [vmem:[#allocation5 + $0x68] sm:$0xff]
    %v674 = vld [vmem:[#allocation5 + $0x70] sm:$0xff]
    %v675 = vld [vmem:[#allocation5 + $0x78] sm:$0xff]
    %v676 = vld [vmem:[#allocation5 + $0x80] sm:$0xff]
    %v677 = vld [vmem:[#allocation5 + $0x88] sm:$0xff]
    %v678 = vld [vmem:[#allocation5 + $0x90] sm:$0xff]
    %v679 = vld [vmem:[#allocation5 + $0x98] sm:$0xff]
    %v680 = vld [vmem:[#allocation5 + $0xa0] sm:$0xff]
    %v681 = vld [vmem:[#allocation5 + $0xa8] sm:$0xff]
    %v682 = vld [vmem:[#allocation5 + $0xb0] sm:$0xff]
    %v683 = vld [vmem:[#allocation5 + $0xb8] sm:$0xff]
    %v684 = vld [vmem:[#allocation5 + $0xc0] sm:$0xff]
    %v685 = vld [vmem:[#allocation5 + $0xc8] sm:$0xff]
    %v686 = vld [vmem:[#allocation5 + $0xd0] sm:$0xff]
    %v687 = vld [vmem:[#allocation5 + $0xd8] sm:$0xff]
    %v688 = vld [vmem:[#allocation5 + $0xe0] sm:$0xff]
    %v689 = vld [vmem:[#allocation5 + $0xe8] sm:$0xff]
    %v690 = vld [vmem:[#allocation5 + $0xf0] sm:$0xff]
    %v691 = vld [vmem:[#allocation5 + $0xf8] sm:$0xff]
    %v692 = vld [vmem:[#allocation5 + $0x100] sm:$0xff]
    %v693 = vld [vmem:[#allocation5 + $0x108] sm:$0xff]
    %v694 = vld [vmem:[#allocation5 + $0x110] sm:$0xff]
    %v695 = vld [vmem:[#allocation5 + $0x118] sm:$0xff]
    %v696 = vld [vmem:[#allocation5 + $0x120] sm:$0xff]
    %v697 = vld [vmem:[#allocation5 + $0x128] sm:$0xff]
    %v698 = vld [vmem:[#allocation5 + $0x130] sm:$0xff]
    %v699 = vld [vmem:[#allocation5 + $0x138] sm:$0xff]
    %v700 = vld [vmem:[#allocation5 + $0x140] sm:$0xff]
    %v701 = vld [vmem:[#allocation5 + $0x148] sm:$0xff]
    %v702 = vld [vmem:[#allocation5 + $0x150] sm:$0xff]
    %v703 = vld [vmem:[#allocation5 + $0x158] sm:$0xff]
    %v704 = vld [vmem:[#allocation5 + $0x160] sm:$0xff]
    %v705 = vld [vmem:[#allocation5 + $0x168] sm:$0xff]
    %v706 = vld [vmem:[#allocation5 + $0x170] sm:$0xff]
    %v707 = vld [vmem:[#allocation5 + $0x178] sm:$0xff]
    %v708 = vld [vmem:[#allocation5 + $0x180] sm:$0xff]
    %v709 = vld [vmem:[#allocation5 + $0x188] sm:$0xff]
    %v710 = vld [vmem:[#allocation5 + $0x190] sm:$0xff]
    %v711 = vld [vmem:[#allocation5 + $0x198] sm:$0xff]
    %v712 = vld [vmem:[#allocation5 + $0x1a0] sm:$0xff]
    %v713 = vld [vmem:[#allocation5 + $0x1a8] sm:$0xff]
    %v714 = vld [vmem:[#allocation5 + $0x1b0] sm:$0xff]
    %v715 = vld [vmem:[#allocation5 + $0x1b8] sm:$0xff]
    %v716 = vld [vmem:[#allocation5 + $0x1c0] sm:$0xff]
    %v717 = vld [vmem:[#allocation5 + $0x1c8] sm:$0xff]
    %v718 = vld [vmem:[#allocation5 + $0x1d0] sm:$0xff]
    %v719 = vld [vmem:[#allocation5 + $0x1d8] sm:$0xff]
    %v720 = vld [vmem:[#allocation5 + $0x1e0] sm:$0xff]
    %v721 = vld [vmem:[#allocation5 + $0x1e8] sm:$0xff]
    %v722 = vld [vmem:[#allocation5 + $0x1f0] sm:$0xff]
    %v723 = vld [vmem:[#allocation5 + $0x1f8] sm:$0xff]
    %v724 = vld [vmem:[#allocation5 + $0x200] sm:$0xff]
    %v725 = vld [vmem:[#allocation5 + $0x208] sm:$0xff]
    %v726 = vld [vmem:[#allocation5 + $0x210] sm:$0xff]
    %v727 = vld [vmem:[#allocation5 + $0x218] sm:$0xff]
    %v728 = vld [vmem:[#allocation5 + $0x220] sm:$0xff]
    %v729 = vld [vmem:[#allocation5 + $0x228] sm:$0xff]
    %v730 = vld [vmem:[#allocation5 + $0x230] sm:$0xff]
    %v731 = vld [vmem:[#allocation5 + $0x238] sm:$0xff]
    %v732 = vld [vmem:[#allocation5 + $0x240] sm:$0xff]
    %v733 = vld [vmem:[#allocation5 + $0x248] sm:$0xff]
    %v734 = vld [vmem:[#allocation5 + $0x250] sm:$0xff]
    %v735 = vld [vmem:[#allocation5 + $0x258] sm:$0xff]
    %v736 = vld [vmem:[#allocation5 + $0x260] sm:$0xff]
    %v737 = vld [vmem:[#allocation5 + $0x268] sm:$0xff]
    %v738 = vld [vmem:[#allocation5 + $0x270] sm:$0xff]
    %v739 = vld [vmem:[#allocation5 + $0x278] sm:$0xff]
    %v740 = vld [vmem:[#allocation5 + $0x280] sm:$0xff]
    %v741 = vld [vmem:[#allocation5 + $0x288] sm:$0xff]
    %v742 = vld [vmem:[#allocation5 + $0x290] sm:$0xff]
    %v743 = vld [vmem:[#allocation5 + $0x298] sm:$0xff]
    %v744 = vld [vmem:[#allocation5 + $0x2a0] sm:$0xff]
    %v745 = vld [vmem:[#allocation5 + $0x2a8] sm:$0xff]
    %v746 = vld [vmem:[#allocation5 + $0x2b0] sm:$0xff]
    %v747 = vld [vmem:[#allocation5 + $0x2b8] sm:$0xff]
    %v748 = vld [vmem:[#allocation5 + $0x2c0] sm:$0xff]
    %v749 = vld [vmem:[#allocation5 + $0x2c8] sm:$0xff]
    %v750 = vld [vmem:[#allocation5 + $0x2d0] sm:$0xff]
    %v751 = vld [vmem:[#allocation5 + $0x2d8] sm:$0xff]
    %v752 = vld [vmem:[#allocation5 + $0x2e0] sm:$0xff]
    %v753 = vld [vmem:[#allocation5 + $0x2e8] sm:$0xff]
    %v754 = vld [vmem:[#allocation5 + $0x2f0] sm:$0xff]
    %v755 = vld [vmem:[#allocation5 + $0x2f8] sm:$0xff]
    %v756 = vld [vmem:[#allocation5 + $0x300] sm:$0xff]
    %v757 = vld [vmem:[#allocation5 + $0x308] sm:$0xff]
    %v758 = vld [vmem:[#allocation5 + $0x310] sm:$0xff]
    %v759 = vld [vmem:[#allocation5 + $0x318] sm:$0xff]
    %v760 = vld [vmem:[#allocation5 + $0x320] sm:$0xff]
    %v761 = vld [vmem:[#allocation5 + $0x328] sm:$0xff]
    %v762 = vld [vmem:[#allocation5 + $0x330] sm:$0xff]
    %v763 = vld [vmem:[#allocation5 + $0x338] sm:$0xff]
    %v764 = vld [vmem:[#allocation5 + $0x340] sm:$0xff]
    %v765 = vld [vmem:[#allocation5 + $0x348] sm:$0xff]
    %v766 = vld [vmem:[#allocation5 + $0x350] sm:$0xff]
    %v767 = vld [vmem:[#allocation5 + $0x358] sm:$0xff]
    %v768 = vld [vmem:[#allocation5 + $0x360] sm:$0xff]
    %v769 = vld [vmem:[#allocation5 + $0x368] sm:$0xff]
    %v770 = vld [vmem:[#allocation5 + $0x370] sm:$0xff]
    %v771 = vld [vmem:[#allocation5 + $0x378] sm:$0xff]
    %v772 = vld [vmem:[#allocation5 + $0x380] sm:$0xff]
    %v773 = vld [vmem:[#allocation5 + $0x388] sm:$0xff]
    %v774 = vld [vmem:[#allocation5 + $0x390] sm:$0xff]
    %v775 = vld [vmem:[#allocation5 + $0x398] sm:$0xff]
    %v776 = vld [vmem:[#allocation5 + $0x3a0] sm:$0xff]
    %v777 = vld [vmem:[#allocation5 + $0x3a8] sm:$0xff]
    %v778 = vld [vmem:[#allocation5 + $0x3b0] sm:$0xff]
    %v779 = vld [vmem:[#allocation5 + $0x3b8] sm:$0xff]
    %v780 = vld [vmem:[#allocation5 + $0x3c0] sm:$0xff]
    %v781 = vld [vmem:[#allocation5 + $0x3c8] sm:$0xff]
    %v782 = vld [vmem:[#allocation5 + $0x3d0] sm:$0xff]
    %v783 = vld [vmem:[#allocation5 + $0x3d8] sm:$0xff]
    %v784 = vld [vmem:[#allocation5 + $0x3e0] sm:$0xff]
    %v785 = vld [vmem:[#allocation5 + $0x3e8] sm:$0xff]
    %v786 = vld [vmem:[#allocation5 + $0x3f0] sm:$0xff]
    %v787 = vld [vmem:[#allocation5 + $0x3f8] sm:$0xff]
    %v788 = vld [vmem:[#allocation5 + $0x400] sm:$0xff]
    %v789 = vld [vmem:[#allocation5 + $0x408] sm:$0xff]
    %v790 = vld [vmem:[#allocation5 + $0x410] sm:$0xff]
    %v791 = vld [vmem:[#allocation5 + $0x418] sm:$0xff]
    %v792 = vld [vmem:[#allocation5 + $0x420] sm:$0xff]
    %v793 = vld [vmem:[#allocation5 + $0x428] sm:$0xff]
    %v794 = vld [vmem:[#allocation5 + $0x430] sm:$0xff]
    %v795 = vld [vmem:[#allocation5 + $0x438] sm:$0xff]
    %v796 = vld [vmem:[#allocation5 + $0x440] sm:$0xff]
    %v797 = vld [vmem:[#allocation5 + $0x448] sm:$0xff]
    %v798 = vld [vmem:[#allocation5 + $0x450] sm:$0xff]
    %v799 = vld [vmem:[#allocation5 + $0x458] sm:$0xff]
    %v800 = vld [vmem:[#allocation5 + $0x460] sm:$0xff]
    %v801 = vld [vmem:[#allocation5 + $0x468] sm:$0xff]
    %v802 = vld [vmem:[#allocation5 + $0x470] sm:$0xff]
    %v803 = vld [vmem:[#allocation5 + $0x478] sm:$0xff]
    %v948 = vunpack.c.l.b16 %v660
    %v949 = vunpack.c.h.b16 %v660
    %v950 = vunpack.c.l.b16 %v661
    %v951 = vunpack.c.h.b16 %v661
    %v952 = vunpack.c.l.b16 %v662
    %v953 = vunpack.c.h.b16 %v662
    %v954 = vunpack.c.l.b16 %v663
    %v955 = vunpack.c.h.b16 %v663
    %v956 = vunpack.c.l.b16 %v664
    %v957 = vunpack.c.h.b16 %v664
    %v958 = vunpack.c.l.b16 %v665
    %v959 = vunpack.c.h.b16 %v665
    %v960 = vunpack.c.l.b16 %v666
    %v961 = vunpack.c.h.b16 %v666
    %v962 = vunpack.c.l.b16 %v667
    %v963 = vunpack.c.h.b16 %v667
    %v964 = vunpack.c.l.b16 %v668
    %v965 = vunpack.c.h.b16 %v668
    %v966 = vunpack.c.l.b16 %v669
    %v967 = vunpack.c.h.b16 %v669
    %v968 = vunpack.c.l.b16 %v670
    %v969 = vunpack.c.h.b16 %v670
    %v970 = vunpack.c.l.b16 %v671
    %v971 = vunpack.c.h.b16 %v671
    %v972 = vunpack.c.l.b16 %v672
    %v973 = vunpack.c.h.b16 %v672
    %v974 = vunpack.c.l.b16 %v673
    %v975 = vunpack.c.h.b16 %v673
    %v976 = vunpack.c.l.b16 %v674
    %v977 = vunpack.c.h.b16 %v674
    %v978 = vunpack.c.l.b16 %v675
    %v979 = vunpack.c.h.b16 %v675
    %v980 = vunpack.c.l.b16 %v676
    %v981 = vunpack.c.h.b16 %v676
    %v982 = vunpack.c.l.b16 %v677
    %v983 = vunpack.c.h.b16 %v677
    %v984 = vunpack.c.l.b16 %v678
    %v985 = vunpack.c.h.b16 %v678
    %v986 = vunpack.c.l.b16 %v679
    %v987 = vunpack.c.h.b16 %v679
    %v988 = vunpack.c.l.b16 %v680
    %v989 = vunpack.c.h.b16 %v680
    %v990 = vunpack.c.l.b16 %v681
    %v991 = vunpack.c.h.b16 %v681
    %v992 = vunpack.c.l.b16 %v682
    %v993 = vunpack.c.h.b16 %v682
    %v994 = vunpack.c.l.b16 %v683
    %v995 = vunpack.c.h.b16 %v683
    %v996 = vunpack.c.l.b16 %v684
    %v997 = vunpack.c.h.b16 %v684
    %v998 = vunpack.c.l.b16 %v685
    %v999 = vunpack.c.h.b16 %v685
    %v1000 = vunpack.c.l.b16 %v686
    %v1001 = vunpack.c.h.b16 %v686
    %v1002 = vunpack.c.l.b16 %v687
    %v1003 = vunpack.c.h.b16 %v687
    %v1004 = vunpack.c.l.b16 %v688
    %v1005 = vunpack.c.h.b16 %v688
    %v1006 = vunpack.c.l.b16 %v689
    %v1007 = vunpack.c.h.b16 %v689
    %v1008 = vunpack.c.l.b16 %v690
    %v1009 = vunpack.c.h.b16 %v690
    %v1010 = vunpack.c.l.b16 %v691
    %v1011 = vunpack.c.h.b16 %v691
    %v1012 = vunpack.c.l.b16 %v692
    %v1013 = vunpack.c.h.b16 %v692
    %v1014 = vunpack.c.l.b16 %v693
    %v1015 = vunpack.c.h.b16 %v693
    %v1016 = vunpack.c.l.b16 %v694
    %v1017 = vunpack.c.h.b16 %v694
    %v1018 = vunpack.c.l.b16 %v695
    %v1019 = vunpack.c.h.b16 %v695
    %v1020 = vunpack.c.l.b16 %v696
    %v1021 = vunpack.c.h.b16 %v696
    %v1022 = vunpack.c.l.b16 %v697
    %v1023 = vunpack.c.h.b16 %v697
    %v1024 = vunpack.c.l.b16 %v698
    %v1025 = vunpack.c.h.b16 %v698
    %v1026 = vunpack.c.l.b16 %v699
    %v1027 = vunpack.c.h.b16 %v699
    %v1028 = vunpack.c.l.b16 %v700
    %v1029 = vunpack.c.h.b16 %v700
    %v1030 = vunpack.c.l.b16 %v701
    %v1031 = vunpack.c.h.b16 %v701
    %v1032 = vunpack.c.l.b16 %v702
    %v1033 = vunpack.c.h.b16 %v702
    %v1034 = vunpack.c.l.b16 %v703
    %v1035 = vunpack.c.h.b16 %v703
    %v1036 = vunpack.c.l.b16 %v704
    %v1037 = vunpack.c.h.b16 %v704
    %v1038 = vunpack.c.l.b16 %v705
    %v1039 = vunpack.c.h.b16 %v705
    %v1040 = vunpack.c.l.b16 %v706
    %v1041 = vunpack.c.h.b16 %v706
    %v1042 = vunpack.c.l.b16 %v707
    %v1043 = vunpack.c.h.b16 %v707
    %v1044 = vunpack.c.l.b16 %v708
    %v1045 = vunpack.c.h.b16 %v708
    %v1046 = vunpack.c.l.b16 %v709
    %v1047 = vunpack.c.h.b16 %v709
    %v1048 = vunpack.c.l.b16 %v710
    %v1049 = vunpack.c.h.b16 %v710
    %v1050 = vunpack.c.l.b16 %v711
    %v1051 = vunpack.c.h.b16 %v711
    %v1052 = vunpack.c.l.b16 %v712
    %v1053 = vunpack.c.h.b16 %v712
    %v1054 = vunpack.c.l.b16 %v713
    %v1055 = vunpack.c.h.b16 %v713
    %v1056 = vunpack.c.l.b16 %v714
    %v1057 = vunpack.c.h.b16 %v714
    %v1058 = vunpack.c.l.b16 %v715
    %v1059 = vunpack.c.h.b16 %v715
    %v1060 = vunpack.c.l.b16 %v716
    %v1061 = vunpack.c.h.b16 %v716
    %v1062 = vunpack.c.l.b16 %v717
    %v1063 = vunpack.c.h.b16 %v717
    %v1064 = vunpack.c.l.b16 %v718
    %v1065 = vunpack.c.h.b16 %v718
    %v1066 = vunpack.c.l.b16 %v719
    %v1067 = vunpack.c.h.b16 %v719
    %v1068 = vunpack.c.l.b16 %v720
    %v1069 = vunpack.c.h.b16 %v720
    %v1070 = vunpack.c.l.b16 %v721
    %v1071 = vunpack.c.h.b16 %v721
    %v1072 = vunpack.c.l.b16 %v722
    %v1073 = vunpack.c.h.b16 %v722
    %v1074 = vunpack.c.l.b16 %v723
    %v1075 = vunpack.c.h.b16 %v723
    %v1076 = vunpack.c.l.b16 %v724
    %v1077 = vunpack.c.h.b16 %v724
    %v1078 = vunpack.c.l.b16 %v725
    %v1079 = vunpack.c.h.b16 %v725
    %v1080 = vunpack.c.l.b16 %v726
    %v1081 = vunpack.c.h.b16 %v726
    %v1082 = vunpack.c.l.b16 %v727
    %v1083 = vunpack.c.h.b16 %v727
    %v1084 = vunpack.c.l.b16 %v728
    %v1085 = vunpack.c.h.b16 %v728
    %v1086 = vunpack.c.l.b16 %v729
    %v1087 = vunpack.c.h.b16 %v729
    %v1088 = vunpack.c.l.b16 %v730
    %v1089 = vunpack.c.h.b16 %v730
    %v1090 = vunpack.c.l.b16 %v731
    %v1091 = vunpack.c.h.b16 %v731
    %v1092 = vunpack.c.l.b16 %v732
    %v1093 = vunpack.c.h.b16 %v732
    %v1094 = vunpack.c.l.b16 %v733
    %v1095 = vunpack.c.h.b16 %v733
    %v1096 = vunpack.c.l.b16 %v734
    %v1097 = vunpack.c.h.b16 %v734
    %v1098 = vunpack.c.l.b16 %v735
    %v1099 = vunpack.c.h.b16 %v735
    %v1100 = vunpack.c.l.b16 %v736
    %v1101 = vunpack.c.h.b16 %v736
    %v1102 = vunpack.c.l.b16 %v737
    %v1103 = vunpack.c.h.b16 %v737
    %v1104 = vunpack.c.l.b16 %v738
    %v1105 = vunpack.c.h.b16 %v738
    %v1106 = vunpack.c.l.b16 %v739
    %v1107 = vunpack.c.h.b16 %v739
    %v1108 = vunpack.c.l.b16 %v740
    %v1109 = vunpack.c.h.b16 %v740
    %v1110 = vunpack.c.l.b16 %v741
    %v1111 = vunpack.c.h.b16 %v741
    %v1112 = vunpack.c.l.b16 %v742
    %v1113 = vunpack.c.h.b16 %v742
    %v1114 = vunpack.c.l.b16 %v743
    %v1115 = vunpack.c.h.b16 %v743
    %v1116 = vunpack.c.l.b16 %v744
    %v1117 = vunpack.c.h.b16 %v744
    %v1118 = vunpack.c.l.b16 %v745
    %v1119 = vunpack.c.h.b16 %v745
    %v1120 = vunpack.c.l.b16 %v746
    %v1121 = vunpack.c.h.b16 %v746
    %v1122 = vunpack.c.l.b16 %v747
    %v1123 = vunpack.c.h.b16 %v747
    %v1124 = vunpack.c.l.b16 %v748
    %v1125 = vunpack.c.h.b16 %v748
    %v1126 = vunpack.c.l.b16 %v749
    %v1127 = vunpack.c.h.b16 %v749
    %v1128 = vunpack.c.l.b16 %v750
    %v1129 = vunpack.c.h.b16 %v750
    %v1130 = vunpack.c.l.b16 %v751
    %v1131 = vunpack.c.h.b16 %v751
    %v1132 = vunpack.c.l.b16 %v752
    %v1133 = vunpack.c.h.b16 %v752
    %v1134 = vunpack.c.l.b16 %v753
    %v1135 = vunpack.c.h.b16 %v753
    %v1136 = vunpack.c.l.b16 %v754
    %v1137 = vunpack.c.h.b16 %v754
    %v1138 = vunpack.c.l.b16 %v755
    %v1139 = vunpack.c.h.b16 %v755
    %v1140 = vunpack.c.l.b16 %v756
    %v1141 = vunpack.c.h.b16 %v756
    %v1142 = vunpack.c.l.b16 %v757
    %v1143 = vunpack.c.h.b16 %v757
    %v1144 = vunpack.c.l.b16 %v758
    %v1145 = vunpack.c.h.b16 %v758
    %v1146 = vunpack.c.l.b16 %v759
    %v1147 = vunpack.c.h.b16 %v759
    %v1148 = vunpack.c.l.b16 %v760
    %v1149 = vunpack.c.h.b16 %v760
    %v1150 = vunpack.c.l.b16 %v761
    %v1151 = vunpack.c.h.b16 %v761
    %v1152 = vunpack.c.l.b16 %v762
    %v1153 = vunpack.c.h.b16 %v762
    %v1154 = vunpack.c.l.b16 %v763
    %v1155 = vunpack.c.h.b16 %v763
    %v1156 = vunpack.c.l.b16 %v764
    %v1157 = vunpack.c.h.b16 %v764
    %v1158 = vunpack.c.l.b16 %v765
    %v1159 = vunpack.c.h.b16 %v765
    %v1160 = vunpack.c.l.b16 %v766
    %v1161 = vunpack.c.h.b16 %v766
    %v1162 = vunpack.c.l.b16 %v767
    %v1163 = vunpack.c.h.b16 %v767
    %v1164 = vunpack.c.l.b16 %v768
    %v1165 = vunpack.c.h.b16 %v768
    %v1166 = vunpack.c.l.b16 %v769
    %v1167 = vunpack.c.h.b16 %v769
    %v1168 = vunpack.c.l.b16 %v770
    %v1169 = vunpack.c.h.b16 %v770
    %v1170 = vunpack.c.l.b16 %v771
    %v1171 = vunpack.c.h.b16 %v771
    %v1172 = vunpack.c.l.b16 %v772
    %v1173 = vunpack.c.h.b16 %v772
    %v1174 = vunpack.c.l.b16 %v773
    %v1175 = vunpack.c.h.b16 %v773
    %v1176 = vunpack.c.l.b16 %v774
    %v1177 = vunpack.c.h.b16 %v774
    %v1178 = vunpack.c.l.b16 %v775
    %v1179 = vunpack.c.h.b16 %v775
    %v1180 = vunpack.c.l.b16 %v776
    %v1181 = vunpack.c.h.b16 %v776
    %v1182 = vunpack.c.l.b16 %v777
    %v1183 = vunpack.c.h.b16 %v777
    %v1184 = vunpack.c.l.b16 %v778
    %v1185 = vunpack.c.h.b16 %v778
    %v1186 = vunpack.c.l.b16 %v779
    %v1187 = vunpack.c.h.b16 %v779
    %v1188 = vunpack.c.l.b16 %v780
    %v1189 = vunpack.c.h.b16 %v780
    %v1190 = vunpack.c.l.b16 %v781
    %v1191 = vunpack.c.h.b16 %v781
    %v1192 = vunpack.c.l.b16 %v782
    %v1193 = vunpack.c.h.b16 %v782
    %v1194 = vunpack.c.l.b16 %v783
    %v1195 = vunpack.c.h.b16 %v783
    %v1196 = vunpack.c.l.b16 %v784
    %v1197 = vunpack.c.h.b16 %v784
    %v1198 = vunpack.c.l.b16 %v785
    %v1199 = vunpack.c.h.b16 %v785
    %v1200 = vunpack.c.l.b16 %v786
    %v1201 = vunpack.c.h.b16 %v786
    %v1202 = vunpack.c.l.b16 %v787
    %v1203 = vunpack.c.h.b16 %v787
    %v1204 = vunpack.c.l.b16 %v788
    %v1205 = vunpack.c.h.b16 %v788
    %v1206 = vunpack.c.l.b16 %v789
    %v1207 = vunpack.c.h.b16 %v789
    %v1208 = vunpack.c.l.b16 %v790
    %v1209 = vunpack.c.h.b16 %v790
    %v1210 = vunpack.c.l.b16 %v791
    %v1211 = vunpack.c.h.b16 %v791
    %v1212 = vunpack.c.l.b16 %v792
    %v1213 = vunpack.c.h.b16 %v792
    %v1214 = vunpack.c.l.b16 %v793
    %v1215 = vunpack.c.h.b16 %v793
    %v1216 = vunpack.c.l.b16 %v794
    %v1217 = vunpack.c.h.b16 %v794
    %v1218 = vunpack.c.l.b16 %v795
    %v1219 = vunpack.c.h.b16 %v795
    %v1220 = vunpack.c.l.b16 %v796
    %v1221 = vunpack.c.h.b16 %v796
    %v1222 = vunpack.c.l.b16 %v797
    %v1223 = vunpack.c.h.b16 %v797
    %v1224 = vunpack.c.l.b16 %v798
    %v1225 = vunpack.c.h.b16 %v798
    %v1226 = vunpack.c.l.b16 %v799
    %v1227 = vunpack.c.h.b16 %v799
    %v1228 = vunpack.c.l.b16 %v800
    %v1229 = vunpack.c.h.b16 %v800
    %v1230 = vunpack.c.l.b16 %v801
    %v1231 = vunpack.c.h.b16 %v801
    %v1232 = vunpack.c.l.b16 %v802
    %v1233 = vunpack.c.h.b16 %v802
    %v1234 = vunpack.c.l.b16 %v803
    %v1235 = vunpack.c.h.b16 %v803
    %v1236 = vpack.c.b16 %v950, %v948
    %v1237 = vpack.c.b16 %v951, %v949
    %v1238 = vpack.c.b16 %v954, %v952
    %v1239 = vpack.c.b16 %v955, %v953
    %v1240 = vpack.c.b16 %v958, %v956
    %v1241 = vpack.c.b16 %v959, %v957
    %v1242 = vpack.c.b16 %v962, %v960
    %v1243 = vpack.c.b16 %v963, %v961
    %v1244 = vpack.c.b16 %v966, %v964
    %v1245 = vpack.c.b16 %v967, %v965
    %v1246 = vpack.c.b16 %v970, %v968
    %v1247 = vpack.c.b16 %v971, %v969
    %v1248 = vpack.c.b16 %v974, %v972
    %v1249 = vpack.c.b16 %v975, %v973
    %v1250 = vpack.c.b16 %v978, %v976
    %v1251 = vpack.c.b16 %v979, %v977
    %v1252 = vpack.c.b16 %v982, %v980
    %v1253 = vpack.c.b16 %v983, %v981
    %v1254 = vpack.c.b16 %v986, %v984
    %v1255 = vpack.c.b16 %v987, %v985
    %v1256 = vpack.c.b16 %v990, %v988
    %v1257 = vpack.c.b16 %v991, %v989
    %v1258 = vpack.c.b16 %v994, %v992
    %v1259 = vpack.c.b16 %v995, %v993
    %v1260 = vpack.c.b16 %v998, %v996
    %v1261 = vpack.c.b16 %v999, %v997
    %v1262 = vpack.c.b16 %v1002, %v1000
    %v1263 = vpack.c.b16 %v1003, %v1001
    %v1264 = vpack.c.b16 %v1006, %v1004
    %v1265 = vpack.c.b16 %v1007, %v1005
    %v1266 = vpack.c.b16 %v1010, %v1008
    %v1267 = vpack.c.b16 %v1011, %v1009
    %v1268 = vpack.c.b16 %v1014, %v1012
    %v1269 = vpack.c.b16 %v1015, %v1013
    %v1270 = vpack.c.b16 %v1018, %v1016
    %v1271 = vpack.c.b16 %v1019, %v1017
    %v1272 = vpack.c.b16 %v1022, %v1020
    %v1273 = vpack.c.b16 %v1023, %v1021
    %v1274 = vpack.c.b16 %v1026, %v1024
    %v1275 = vpack.c.b16 %v1027, %v1025
    %v1276 = vpack.c.b16 %v1030, %v1028
    %v1277 = vpack.c.b16 %v1031, %v1029
    %v1278 = vpack.c.b16 %v1034, %v1032
    %v1279 = vpack.c.b16 %v1035, %v1033
    %v1280 = vpack.c.b16 %v1038, %v1036
    %v1281 = vpack.c.b16 %v1039, %v1037
    %v1282 = vpack.c.b16 %v1042, %v1040
    %v1283 = vpack.c.b16 %v1043, %v1041
    %v1284 = vpack.c.b16 %v1046, %v1044
    %v1285 = vpack.c.b16 %v1047, %v1045
    %v1286 = vpack.c.b16 %v1050, %v1048
    %v1287 = vpack.c.b16 %v1051, %v1049
    %v1288 = vpack.c.b16 %v1054, %v1052
    %v1289 = vpack.c.b16 %v1055, %v1053
    %v1290 = vpack.c.b16 %v1058, %v1056
    %v1291 = vpack.c.b16 %v1059, %v1057
    %v1292 = vpack.c.b16 %v1062, %v1060
    %v1293 = vpack.c.b16 %v1063, %v1061
    %v1294 = vpack.c.b16 %v1066, %v1064
    %v1295 = vpack.c.b16 %v1067, %v1065
    %v1296 = vpack.c.b16 %v1070, %v1068
    %v1297 = vpack.c.b16 %v1071, %v1069
    %v1298 = vpack.c.b16 %v1074, %v1072
    %v1299 = vpack.c.b16 %v1075, %v1073
    %v1300 = vpack.c.b16 %v1078, %v1076
    %v1301 = vpack.c.b16 %v1079, %v1077
    %v1302 = vpack.c.b16 %v1082, %v1080
    %v1303 = vpack.c.b16 %v1083, %v1081
    %v1304 = vpack.c.b16 %v1086, %v1084
    %v1305 = vpack.c.b16 %v1087, %v1085
    %v1306 = vpack.c.b16 %v1090, %v1088
    %v1307 = vpack.c.b16 %v1091, %v1089
    %v1308 = vpack.c.b16 %v1094, %v1092
    %v1309 = vpack.c.b16 %v1095, %v1093
    %v1310 = vpack.c.b16 %v1098, %v1096
    %v1311 = vpack.c.b16 %v1099, %v1097
    %v1312 = vpack.c.b16 %v1102, %v1100
    %v1313 = vpack.c.b16 %v1103, %v1101
    %v1314 = vpack.c.b16 %v1106, %v1104
    %v1315 = vpack.c.b16 %v1107, %v1105
    %v1316 = vpack.c.b16 %v1110, %v1108
    %v1317 = vpack.c.b16 %v1111, %v1109
    %v1318 = vpack.c.b16 %v1114, %v1112
    %v1319 = vpack.c.b16 %v1115, %v1113
    %v1320 = vpack.c.b16 %v1118, %v1116
    %v1321 = vpack.c.b16 %v1119, %v1117
    %v1322 = vpack.c.b16 %v1122, %v1120
    %v1323 = vpack.c.b16 %v1123, %v1121
    %v1324 = vpack.c.b16 %v1126, %v1124
    %v1325 = vpack.c.b16 %v1127, %v1125
    %v1326 = vpack.c.b16 %v1130, %v1128
    %v1327 = vpack.c.b16 %v1131, %v1129
    %v1328 = vpack.c.b16 %v1134, %v1132
    %v1329 = vpack.c.b16 %v1135, %v1133
    %v1330 = vpack.c.b16 %v1138, %v1136
    %v1331 = vpack.c.b16 %v1139, %v1137
    %v1332 = vpack.c.b16 %v1142, %v1140
    %v1333 = vpack.c.b16 %v1143, %v1141
    %v1334 = vpack.c.b16 %v1146, %v1144
    %v1335 = vpack.c.b16 %v1147, %v1145
    %v1336 = vpack.c.b16 %v1150, %v1148
    %v1337 = vpack.c.b16 %v1151, %v1149
    %v1338 = vpack.c.b16 %v1154, %v1152
    %v1339 = vpack.c.b16 %v1155, %v1153
    %v1340 = vpack.c.b16 %v1158, %v1156
    %v1341 = vpack.c.b16 %v1159, %v1157
    %v1342 = vpack.c.b16 %v1162, %v1160
    %v1343 = vpack.c.b16 %v1163, %v1161
    %v1344 = vpack.c.b16 %v1166, %v1164
    %v1345 = vpack.c.b16 %v1167, %v1165
    %v1346 = vpack.c.b16 %v1170, %v1168
    %v1347 = vpack.c.b16 %v1171, %v1169
    %v1348 = vpack.c.b16 %v1174, %v1172
    %v1349 = vpack.c.b16 %v1175, %v1173
    %v1350 = vpack.c.b16 %v1178, %v1176
    %v1351 = vpack.c.b16 %v1179, %v1177
    %v1352 = vpack.c.b16 %v1182, %v1180
    %v1353 = vpack.c.b16 %v1183, %v1181
    %v1354 = vpack.c.b16 %v1186, %v1184
    %v1355 = vpack.c.b16 %v1187, %v1185
    %v1356 = vpack.c.b16 %v1190, %v1188
    %v1357 = vpack.c.b16 %v1191, %v1189
    %v1358 = vpack.c.b16 %v1194, %v1192
    %v1359 = vpack.c.b16 %v1195, %v1193
    %v1360 = vpack.c.b16 %v1198, %v1196
    %v1361 = vpack.c.b16 %v1199, %v1197
    %v1362 = vpack.c.b16 %v1202, %v1200
    %v1363 = vpack.c.b16 %v1203, %v1201
    %v1364 = vpack.c.b16 %v1206, %v1204
    %v1365 = vpack.c.b16 %v1207, %v1205
    %v1366 = vpack.c.b16 %v1210, %v1208
    %v1367 = vpack.c.b16 %v1211, %v1209
    %v1368 = vpack.c.b16 %v1214, %v1212
    %v1369 = vpack.c.b16 %v1215, %v1213
    %v1370 = vpack.c.b16 %v1218, %v1216
    %v1371 = vpack.c.b16 %v1219, %v1217
    %v1372 = vpack.c.b16 %v1222, %v1220
    %v1373 = vpack.c.b16 %v1223, %v1221
    %v1374 = vpack.c.b16 %v1226, %v1224
    %v1375 = vpack.c.b16 %v1227, %v1225
    %v1376 = vpack.c.b16 %v1230, %v1228
    %v1377 = vpack.c.b16 %v1231, %v1229
    %v1378 = vpack.c.b16 %v1234, %v1232
    %v1379 = vpack.c.b16 %v1235, %v1233
    %1524 = vmatprep.subr.bf16.mxu0 %v1251
    %1525 = vmatpush1.bf16.msra.mxu0 %v1250
    %1526 = vmatprep.subr.bf16.mxu0 %v1249
    %1527 = vmatpush1.bf16.msra.mxu0 %v1248
    %1528 = vmatprep.subr.bf16.mxu0 %v1247
    %1529 = vmatpush1.bf16.msra.mxu0 %v1246
    %1530 = vmatprep.subr.bf16.mxu0 %v1245
    %1531 = vmatpush1.bf16.msra.mxu0 %v1244
    %1532 = vmatprep.subr.bf16.mxu0 %v1243
    %1533 = vmatpush1.bf16.msra.mxu0 %v1242
    %1534 = vmatprep.subr.bf16.mxu0 %v1241
    %1535 = vmatpush1.bf16.msra.mxu0 %v1240
    %1536 = vmatprep.subr.bf16.mxu0 %v1239
    %1537 = vmatpush1.bf16.msra.mxu0 %v1238
    %1538 = vmatprep.subr.bf16.mxu0 %v1237
    %1539 = vmatpush1.bf16.msra.mxu0 %v1236
    %1540 = vmatprep.subr.bf16.mxu0 %v1267
    %1541 = vmatpush2.bf16.msra.mxu0 %v1266
    %1542 = vmatprep.subr.bf16.mxu0 %v1265
    %1543 = vmatpush2.bf16.msra.mxu0 %v1264
    %1544 = vmatprep.subr.bf16.mxu0 %v1263
    %1545 = vmatpush2.bf16.msra.mxu0 %v1262
    %1546 = vmatprep.subr.bf16.mxu0 %v1261
    %1547 = vmatpush2.bf16.msra.mxu0 %v1260
    %1548 = vmatprep.subr.bf16.mxu0 %v1259
    %1549 = vmatpush2.bf16.msra.mxu0 %v1258
    %1550 = vmatprep.subr.bf16.mxu0 %v1257
    %1551 = vmatpush2.bf16.msra.mxu0 %v1256
    %1552 = vmatprep.subr.bf16.mxu0 %v1255
    %1553 = vmatpush2.bf16.msra.mxu0 %v1254
    %1554 = vmatprep.subr.bf16.mxu0 %v1253
    %1555 = vmatpush2.bf16.msra.mxu0 %v1252
    %1556 = vmatprep.mubr.bf16.mxu0 %v587
    %1557 = vmatmul.mubr.bf16.gmra.mxu0 %v518
    %v1558 = vpop.f32.mrf.mxu0
    %v1559 = vadd.f32 0.0, %v1558
    %v1560 = vpop.f32.mrf.mxu0
    %v1561 = vadd.f32 0.0, %v1560
    %v1562 = vpop.f32.mrf.mxu0
    %v1563 = vadd.f32 0.0, %v1562
    %v1564 = vpop.f32.mrf.mxu0
    %v1565 = vadd.f32 0.0, %v1564
    %1566 = vmatprep.mubr.bf16.mxu0 %v588
    %1567 = vmatmul.mubr.bf16.gmra.mxu0 %v519
    %v1568 = vpop.f32.mrf.mxu0
    %v1569 = vadd.f32 0.0, %v1568
    %v1570 = vpop.f32.mrf.mxu0
    %v1571 = vadd.f32 0.0, %v1570
    %v1572 = vpop.f32.mrf.mxu0
    %v1573 = vadd.f32 0.0, %v1572
    %v1574 = vpop.f32.mrf.mxu0
    %v1575 = vadd.f32 0.0, %v1574
    %1576 = vdwg.mxu0
    %1577 = vmatprep.subr.bf16.mxu0 %v1283
    %1578 = vmatpush1.bf16.msra.mxu0 %v1282
    %1579 = vmatprep.subr.bf16.mxu0 %v1281
    %1580 = vmatpush1.bf16.msra.mxu0 %v1280
    %1581 = vmatprep.subr.bf16.mxu0 %v1279
    %1582 = vmatpush1.bf16.msra.mxu0 %v1278
    %1583 = vmatprep.subr.bf16.mxu0 %v1277
    %1584 = vmatpush1.bf16.msra.mxu0 %v1276
    %1585 = vmatprep.subr.bf16.mxu0 %v1275
    %1586 = vmatpush1.bf16.msra.mxu0 %v1274
    %1587 = vmatprep.subr.bf16.mxu0 %v1273
    %1588 = vmatpush1.bf16.msra.mxu0 %v1272
    %1589 = vmatprep.subr.bf16.mxu0 %v1271
    %1590 = vmatpush1.bf16.msra.mxu0 %v1270
    %1591 = vmatprep.subr.bf16.mxu0 %v1269
    %1592 = vmatpush1.bf16.msra.mxu0 %v1268
    %1593 = vmatprep.subr.bf16.mxu0 %v1299
    %1594 = vmatpush2.bf16.msra.mxu0 %v1298
    %1595 = vmatprep.subr.bf16.mxu0 %v1297
    %1596 = vmatpush2.bf16.msra.mxu0 %v1296
    %1597 = vmatprep.subr.bf16.mxu0 %v1295
    %1598 = vmatpush2.bf16.msra.mxu0 %v1294
    %1599 = vmatprep.subr.bf16.mxu0 %v1293
    %1600 = vmatpush2.bf16.msra.mxu0 %v1292
    %1601 = vmatprep.subr.bf16.mxu0 %v1291
    %1602 = vmatpush2.bf16.msra.mxu0 %v1290
    %1603 = vmatprep.subr.bf16.mxu0 %v1289
    %1604 = vmatpush2.bf16.msra.mxu0 %v1288
    %1605 = vmatprep.subr.bf16.mxu0 %v1287
    %1606 = vmatpush2.bf16.msra.mxu0 %v1286
    %1607 = vmatprep.subr.bf16.mxu0 %v1285
    %1608 = vmatpush2.bf16.msra.mxu0 %v1284
    %1609 = vmatprep.mubr.bf16.mxu0 %v542
    %1610 = vmatmul.mubr.bf16.gmra.mxu0 %v600
    %v1611 = vpop.f32.mrf.mxu0
    %v1612 = vadd.f32 %v1559, %v1611
    %v1613 = vpop.f32.mrf.mxu0
    %v1614 = vadd.f32 %v1561, %v1613
    %v1615 = vpop.f32.mrf.mxu0
    %v1616 = vadd.f32 %v1563, %v1615
    %v1617 = vpop.f32.mrf.mxu0
    %v1618 = vadd.f32 %v1565, %v1617
    %1619 = vmatprep.mubr.bf16.mxu0 %v543
    %1620 = vmatmul.mubr.bf16.gmra.mxu0 %v601
    %v1621 = vpop.f32.mrf.mxu0
    %v1622 = vadd.f32 %v1569, %v1621
    %v1623 = vpop.f32.mrf.mxu0
    %v1624 = vadd.f32 %v1571, %v1623
    %v1625 = vpop.f32.mrf.mxu0
    %v1626 = vadd.f32 %v1573, %v1625
    %v1627 = vpop.f32.mrf.mxu0
    %v1628 = vadd.f32 %v1575, %v1627
    %1629 = vdwg.mxu0
    %1630 = vmatprep.subr.bf16.mxu0 %v1315
    %1631 = vmatpush1.bf16.msra.mxu0 %v1314
    %1632 = vmatprep.subr.bf16.mxu0 %v1313
    %1633 = vmatpush1.bf16.msra.mxu0 %v1312
    %1634 = vmatprep.subr.bf16.mxu0 %v1311
    %1635 = vmatpush1.bf16.msra.mxu0 %v1310
    %1636 = vmatprep.subr.bf16.mxu0 %v1309
    %1637 = vmatpush1.bf16.msra.mxu0 %v1308
    %1638 = vmatprep.subr.bf16.mxu0 %v1307
    %1639 = vmatpush1.bf16.msra.mxu0 %v1306
    %1640 = vmatprep.subr.bf16.mxu0 %v1305
    %1641 = vmatpush1.bf16.msra.mxu0 %v1304
    %1642 = vmatprep.subr.bf16.mxu0 %v1303
    %1643 = vmatpush1.bf16.msra.mxu0 %v1302
    %1644 = vmatprep.subr.bf16.mxu0 %v1301
    %1645 = vmatpush1.bf16.msra.mxu0 %v1300
    %1646 = vmatprep.subr.bf16.mxu0 %v1331
    %1647 = vmatpush2.bf16.msra.mxu0 %v1330
    %1648 = vmatprep.subr.bf16.mxu0 %v1329
    %1649 = vmatpush2.bf16.msra.mxu0 %v1328
    %1650 = vmatprep.subr.bf16.mxu0 %v1327
    %1651 = vmatpush2.bf16.msra.mxu0 %v1326
    %1652 = vmatprep.subr.bf16.mxu0 %v1325
    %1653 = vmatpush2.bf16.msra.mxu0 %v1324
    %1654 = vmatprep.subr.bf16.mxu0 %v1323
    %1655 = vmatpush2.bf16.msra.mxu0 %v1322
    %1656 = vmatprep.subr.bf16.mxu0 %v1321
    %1657 = vmatpush2.bf16.msra.mxu0 %v1320
    %1658 = vmatprep.subr.bf16.mxu0 %v1319
    %1659 = vmatpush2.bf16.msra.mxu0 %v1318
    %1660 = vmatprep.subr.bf16.mxu0 %v1317
    %1661 = vmatpush2.bf16.msra.mxu0 %v1316
    %1662 = vmatprep.mubr.bf16.mxu0 %v628
    %1663 = vmatmul.mubr.bf16.gmra.mxu0 %v616
    %v1664 = vpop.f32.mrf.mxu0
    %v1665 = vadd.f32 %v1612, %v1664
    %v1666 = vpop.f32.mrf.mxu0
    %v1667 = vadd.f32 %v1614, %v1666
    %v1668 = vpop.f32.mrf.mxu0
    %v1669 = vadd.f32 %v1616, %v1668
    %v1670 = vpop.f32.mrf.mxu0
    %v1671 = vadd.f32 %v1618, %v1670
    %1672 = vmatprep.mubr.bf16.mxu0 %v629
    %1673 = vmatmul.mubr.bf16.gmra.mxu0 %v617
    %v1674 = vpop.f32.mrf.mxu0
    %v1675 = vadd.f32 %v1622, %v1674
    %v1676 = vpop.f32.mrf.mxu0
    %v1677 = vadd.f32 %v1624, %v1676
    %v1678 = vpop.f32.mrf.mxu0
    %v1679 = vadd.f32 %v1626, %v1678
    %v1680 = vpop.f32.mrf.mxu0
    %v1681 = vadd.f32 %v1628, %v1680
    %1682 = vdwg.mxu0
    %1683 = vmatprep.subr.bf16.mxu0 %v1347
    %1684 = vmatpush1.bf16.msra.mxu0 %v1346
    %1685 = vmatprep.subr.bf16.mxu0 %v1345
    %1686 = vmatpush1.bf16.msra.mxu0 %v1344
    %1687 = vmatprep.subr.bf16.mxu0 %v1343
    %1688 = vmatpush1.bf16.msra.mxu0 %v1342
    %1689 = vmatprep.subr.bf16.mxu0 %v1341
    %1690 = vmatpush1.bf16.msra.mxu0 %v1340
    %1691 = vmatprep.subr.bf16.mxu0 %v1339
    %1692 = vmatpush1.bf16.msra.mxu0 %v1338
    %1693 = vmatprep.subr.bf16.mxu0 %v1337
    %1694 = vmatpush1.bf16.msra.mxu0 %v1336
    %1695 = vmatprep.subr.bf16.mxu0 %v1335
    %1696 = vmatpush1.bf16.msra.mxu0 %v1334
    %1697 = vmatprep.subr.bf16.mxu0 %v1333
    %1698 = vmatpush1.bf16.msra.mxu0 %v1332
    %1699 = vmatprep.subr.bf16.mxu0 %v1363
    %1700 = vmatpush2.bf16.msra.mxu0 %v1362
    %1701 = vmatprep.subr.bf16.mxu0 %v1361
    %1702 = vmatpush2.bf16.msra.mxu0 %v1360
    %1703 = vmatprep.subr.bf16.mxu0 %v1359
    %1704 = vmatpush2.bf16.msra.mxu0 %v1358
    %1705 = vmatprep.subr.bf16.mxu0 %v1357
    %1706 = vmatpush2.bf16.msra.mxu0 %v1356
    %1707 = vmatprep.subr.bf16.mxu0 %v1355
    %1708 = vmatpush2.bf16.msra.mxu0 %v1354
    %1709 = vmatprep.subr.bf16.mxu0 %v1353
    %1710 = vmatpush2.bf16.msra.mxu0 %v1352
    %1711 = vmatprep.subr.bf16.mxu0 %v1351
    %1712 = vmatpush2.bf16.msra.mxu0 %v1350
    %1713 = vmatprep.subr.bf16.mxu0 %v1349
    %1714 = vmatpush2.bf16.msra.mxu0 %v1348
    %1715 = vmatprep.mubr.bf16.mxu0 %v644
    %1716 = vmatmul.mubr.bf16.gmra.mxu0 %v570
    %v1717 = vpop.f32.mrf.mxu0
    %v1718 = vadd.f32 %v1665, %v1717
    %v1719 = vpop.f32.mrf.mxu0
    %v1720 = vadd.f32 %v1667, %v1719
    %v1721 = vpop.f32.mrf.mxu0
    %v1722 = vadd.f32 %v1669, %v1721
    %v1723 = vpop.f32.mrf.mxu0
    %v1724 = vadd.f32 %v1671, %v1723
    %1725 = vmatprep.mubr.bf16.mxu0 %v645
    %1726 = vmatmul.mubr.bf16.gmra.mxu0 %v571
    %v1727 = vpop.f32.mrf.mxu0
    %v1728 = vadd.f32 %v1675, %v1727
    %v1729 = vpop.f32.mrf.mxu0
    %v1730 = vadd.f32 %v1677, %v1729
    %v1731 = vpop.f32.mrf.mxu0
    %v1732 = vadd.f32 %v1679, %v1731
    %v1733 = vpop.f32.mrf.mxu0
    %v1734 = vadd.f32 %v1681, %v1733
    %1735 = vdwg.mxu0
    %1736 = vmatprep.subr.bf16.mxu0 %v1379
    %1737 = vmatpush1.bf16.msra.mxu0 %v1378
    %1738 = vmatprep.subr.bf16.mxu0 %v1377
    %1739 = vmatpush1.bf16.msra.mxu0 %v1376
    %1740 = vmatprep.subr.bf16.mxu0 %v1375
    %1741 = vmatpush1.bf16.msra.mxu0 %v1374
    %1742 = vmatprep.subr.bf16.mxu0 %v1373
    %1743 = vmatpush1.bf16.msra.mxu0 %v1372
    %1744 = vmatprep.subr.bf16.mxu0 %v1371
    %1745 = vmatpush1.bf16.msra.mxu0 %v1370
    %1746 = vmatprep.subr.bf16.mxu0 %v1369
    %1747 = vmatpush1.bf16.msra.mxu0 %v1368
    %1748 = vmatprep.subr.bf16.mxu0 %v1367
    %1749 = vmatpush1.bf16.msra.mxu0 %v1366
    %1750 = vmatprep.subr.bf16.mxu0 %v1365
    %1751 = vmatpush1.bf16.msra.mxu0 %v1364
    %1752 = vmatprep.subr.bf16.mxu0 0
    %1753 = vmatpush2.bf16.msra.mxu0 0
    %1754 = vmatprep.subr.bf16.mxu0 0
    %1755 = vmatpush2.bf16.msra.mxu0 0
    %1756 = vmatprep.subr.bf16.mxu0 0
    %1757 = vmatpush2.bf16.msra.mxu0 0
    %1758 = vmatprep.subr.bf16.mxu0 0
    %1759 = vmatpush2.bf16.msra.mxu0 0
    %1760 = vmatprep.subr.bf16.mxu0 0
    %1761 = vmatpush2.bf16.msra.mxu0 0
    %1762 = vmatprep.subr.bf16.mxu0 0
    %1763 = vmatpush2.bf16.msra.mxu0 0
    %1764 = vmatprep.subr.bf16.mxu0 0
    %1765 = vmatpush2.bf16.msra.mxu0 0
    %1766 = vmatprep.subr.bf16.mxu0 0
    %1767 = vmatpush2.bf16.msra.mxu0 0
    %1768 = vmatprep.mubr.bf16.mxu0 0
    %1769 = vmatmul.mubr.bf16.gmra.mxu0 %v656
    %v1770 = vpop.f32.mrf.mxu0
    %v1771 = vadd.f32 %v1718, %v1770
    %v1772 = vpop.f32.mrf.mxu0
    %v1773 = vadd.f32 %v1720, %v1772
    %v1774 = vpop.f32.mrf.mxu0
    %v1775 = vadd.f32 %v1722, %v1774
    %v1776 = vpop.f32.mrf.mxu0
    %v1777 = vadd.f32 %v1724, %v1776
    %1778 = vmatprep.mubr.bf16.mxu0 0
    %1779 = vmatmul.mubr.bf16.gmra.mxu0 %v657
    %v1780 = vpop.f32.mrf.mxu0
    %v1781 = vadd.f32 %v1728, %v1780
    %v1782 = vpop.f32.mrf.mxu0
    %v1783 = vadd.f32 %v1730, %v1782
    %v1784 = vpop.f32.mrf.mxu0
    %v1785 = vadd.f32 %v1732, %v1784
    %v1786 = vpop.f32.mrf.mxu0
    %v1787 = vadd.f32 %v1734, %v1786
    %1788 = vdwg.mxu0
    %v1789 = vadd.f32 %v1771, %v1775
    %v1790 = vadd.f32 %v1789, %v1781
    %v1791 = vadd.f32 %v1790, %v1785
    %v1792 = vrot.slane %v1791, 4
    %v1793 = vadd.f32 %v1791, %v1792
    %v1794 = vrot.slane %v1793, 2
    %v1795 = vadd.f32 %v1793, %v1794
    %v1796 = vrot.slane %v1795, 1
    %v1797 = vadd.f32 %v1795, %v1796
    %v1798 = vadd.f32 %v1773, %v1777
    %v1799 = vadd.f32 %v1798, %v1783
    %v1800 = vadd.f32 %v1799, %v1787
    %v1801 = vrot.slane %v1800, 4
    %v1802 = vadd.f32 %v1800, %v1801
    %v1803 = vrot.slane %v1802, 2
    %v1804 = vadd.f32 %v1802, %v1803
    %v1805 = vrot.slane %v1804, 1
    %v1806 = vadd.f32 %v1804, %v1805
    %v1807 = vmul.f32 %v1771, %v1771
    %v1808 = vmul.f32 %v1773, %v1773
    %v1809 = vmul.f32 %v1775, %v1775
    %v1810 = vmul.f32 %v1777, %v1777
    %v1811 = vmul.f32 %v1781, %v1781
    %v1812 = vmul.f32 %v1783, %v1783
    %v1813 = vmul.f32 %v1785, %v1785
    %v1814 = vmul.f32 %v1787, %v1787
    %v1815 = vadd.f32 %v1807, %v1809
    %v1816 = vadd.f32 %v1815, %v1811
    %v1817 = vadd.f32 %v1816, %v1813
    %v1818 = vrot.slane %v1817, 4
    %v1819 = vadd.f32 %v1817, %v1818
    %v1820 = vrot.slane %v1819, 2
    %v1821 = vadd.f32 %v1819, %v1820
    %v1822 = vrot.slane %v1821, 1
    %v1823 = vadd.f32 %v1821, %v1822
    %v1824 = vadd.f32 %v1808, %v1810
    %v1825 = vadd.f32 %v1824, %v1812
    %v1826 = vadd.f32 %v1825, %v1814
    %v1827 = vrot.slane %v1826, 4
    %v1828 = vadd.f32 %v1826, %v1827
    %v1829 = vrot.slane %v1828, 2
    %v1830 = vadd.f32 %v1828, %v1829
    %v1831 = vrot.slane %v1830, 1
    %v1832 = vadd.f32 %v1830, %v1831
    %v1833 = vld [vmem:[#allocation10] sm:$0xff]
    %v1834 = vld [vmem:[#allocation10 + $0x8] sm:$0xff]
    %v1835 = vld [vmem:[#allocation10 + $0x10] sm:$0xff]
    %v1836 = vld [vmem:[#allocation10 + $0x18] sm:$0xff]
    %v1837 = vld [vmem:[#allocation10 + $0x20] sm:$0xff]
    %v1838 = vld [vmem:[#allocation10 + $0x28] sm:$0xff]
    %v1839 = vld [vmem:[#allocation10 + $0x30] sm:$0xff]
    %v1840 = vld [vmem:[#allocation10 + $0x38] sm:$0xff]
    %v1841 = vld [vmem:[#allocation10 + $0x40] sm:$0xff]
    %v1842 = vld [vmem:[#allocation10 + $0x48] sm:$0xff]
    %v1843 = vld [vmem:[#allocation10 + $0x50] sm:$0xff]
    %v1844 = vld [vmem:[#allocation10 + $0x58] sm:$0xff]
    %v1845 = vld [vmem:[#allocation10 + $0x60] sm:$0xff]
    %v1846 = vld [vmem:[#allocation10 + $0x68] sm:$0xff]
    %v1847 = vld [vmem:[#allocation10 + $0x70] sm:$0xff]
    %v1848 = vld [vmem:[#allocation10 + $0x78] sm:$0xff]
    %v1849 = vld [vmem:[#allocation10 + $0x80] sm:$0xff]
    %v1850 = vld [vmem:[#allocation10 + $0x88] sm:$0xff]
    %v1851 = vld [vmem:[#allocation10 + $0x90] sm:$0xff]
    %v1852 = vld [vmem:[#allocation10 + $0x98] sm:$0xff]
    %v1853 = vld [vmem:[#allocation10 + $0xa0] sm:$0xff]
    %v1854 = vld [vmem:[#allocation10 + $0xa8] sm:$0xff]
    %v1855 = vld [vmem:[#allocation10 + $0xb0] sm:$0xff]
    %v1856 = vld [vmem:[#allocation10 + $0xb8] sm:$0xff]
    %v1857 = vld [vmem:[#allocation10 + $0xc0] sm:$0xff]
    %v1858 = vld [vmem:[#allocation10 + $0xc8] sm:$0xff]
    %v1859 = vld [vmem:[#allocation10 + $0xd0] sm:$0xff]
    %v1860 = vld [vmem:[#allocation10 + $0xd8] sm:$0xff]
    %v1861 = vld [vmem:[#allocation10 + $0xe0] sm:$0xff]
    %v1862 = vld [vmem:[#allocation10 + $0xe8] sm:$0xff]
    %v1863 = vld [vmem:[#allocation10 + $0xf0] sm:$0xff]
    %v1864 = vld [vmem:[#allocation10 + $0xf8] sm:$0xff]
    %v1865 = vld [vmem:[#allocation10 + $0x100] sm:$0xff]
    %v1866 = vld [vmem:[#allocation10 + $0x108] sm:$0xff]
    %v1867 = vld [vmem:[#allocation10 + $0x110] sm:$0xff]
    %v1868 = vld [vmem:[#allocation10 + $0x118] sm:$0xff]
    %v1869 = vld [vmem:[#allocation10 + $0x120] sm:$0xff]
    %v1870 = vld [vmem:[#allocation10 + $0x128] sm:$0xff]
    %v1871 = vld [vmem:[#allocation10 + $0x130] sm:$0xff]
    %v1872 = vld [vmem:[#allocation10 + $0x138] sm:$0xff]
    %v1873 = vld [vmem:[#allocation10 + $0x140] sm:$0xff]
    %v1874 = vld [vmem:[#allocation10 + $0x148] sm:$0xff]
    %v1875 = vld [vmem:[#allocation10 + $0x150] sm:$0xff]
    %v1876 = vld [vmem:[#allocation10 + $0x158] sm:$0xff]
    %v1877 = vld [vmem:[#allocation10 + $0x160] sm:$0xff]
    %v1878 = vld [vmem:[#allocation10 + $0x168] sm:$0xff]
    %v1879 = vld [vmem:[#allocation10 + $0x170] sm:$0xff]
    %v1880 = vld [vmem:[#allocation10 + $0x178] sm:$0xff]
    %v1881 = vld [vmem:[#allocation10 + $0x180] sm:$0xff]
    %v1882 = vld [vmem:[#allocation10 + $0x188] sm:$0xff]
    %v1883 = vld [vmem:[#allocation10 + $0x190] sm:$0xff]
    %v1884 = vld [vmem:[#allocation10 + $0x198] sm:$0xff]
    %v1885 = vld [vmem:[#allocation10 + $0x1a0] sm:$0xff]
    %v1886 = vld [vmem:[#allocation10 + $0x1a8] sm:$0xff]
    %v1887 = vld [vmem:[#allocation10 + $0x1b0] sm:$0xff]
    %v1888 = vld [vmem:[#allocation10 + $0x1b8] sm:$0xff]
    %v1889 = vld [vmem:[#allocation10 + $0x1c0] sm:$0xff]
    %v1890 = vld [vmem:[#allocation10 + $0x1c8] sm:$0xff]
    %v1891 = vld [vmem:[#allocation10 + $0x1d0] sm:$0xff]
    %v1892 = vld [vmem:[#allocation10 + $0x1d8] sm:$0xff]
    %v1893 = vld [vmem:[#allocation10 + $0x1e0] sm:$0xff]
    %v1894 = vld [vmem:[#allocation10 + $0x1e8] sm:$0xff]
    %v1895 = vld [vmem:[#allocation10 + $0x1f0] sm:$0xff]
    %v1896 = vld [vmem:[#allocation10 + $0x1f8] sm:$0xff]
    %1897 = vmatprep.subr.mxu0 %v1864
    %1898 = vmatpush1.msra.mxu0 %v1863
    %1899 = vmatprep.subr.mxu0 %v1862
    %1900 = vmatpush1.msra.mxu0 %v1861
    %1901 = vmatprep.subr.mxu0 %v1860
    %1902 = vmatpush1.msra.mxu0 %v1859
    %1903 = vmatprep.subr.mxu0 %v1858
    %1904 = vmatpush1.msra.mxu0 %v1857
    %1905 = vmatprep.subr.mxu0 %v1856
    %1906 = vmatpush1.msra.mxu0 %v1855
    %1907 = vmatprep.subr.mxu0 %v1854
    %1908 = vmatpush1.msra.mxu0 %v1853
    %1909 = vmatprep.subr.mxu0 %v1852
    %1910 = vmatpush1.msra.mxu0 %v1851
    %1911 = vmatprep.subr.mxu0 %v1850
    %1912 = vmatpush1.msra.mxu0 %v1849
    %1913 = vmatprep.subr.mxu0 %v1848
    %1914 = vmatpush1.msra.mxu0 %v1847
    %1915 = vmatprep.subr.mxu0 %v1846
    %1916 = vmatpush1.msra.mxu0 %v1845
    %1917 = vmatprep.subr.mxu0 %v1844
    %1918 = vmatpush1.msra.mxu0 %v1843
    %1919 = vmatprep.subr.mxu0 %v1842
    %1920 = vmatpush1.msra.mxu0 %v1841
    %1921 = vmatprep.subr.mxu0 %v1840
    %1922 = vmatpush1.msra.mxu0 %v1839
    %1923 = vmatprep.subr.mxu0 %v1838
    %1924 = vmatpush1.msra.mxu0 %v1837
    %1925 = vmatprep.subr.mxu0 %v1836
    %1926 = vmatpush1.msra.mxu0 %v1835
    %1927 = vmatprep.subr.mxu0 %v1834
    %1928 = vmatpush1.msra.mxu0 %v1833
    %1929 = vmatprep.subr.mxu0 %v1896
    %1930 = vmatpush2.msra.mxu0 %v1895
    %1931 = vmatprep.subr.mxu0 %v1894
    %1932 = vmatpush2.msra.mxu0 %v1893
    %1933 = vmatprep.subr.mxu0 %v1892
    %1934 = vmatpush2.msra.mxu0 %v1891
    %1935 = vmatprep.subr.mxu0 %v1890
    %1936 = vmatpush2.msra.mxu0 %v1889
    %1937 = vmatprep.subr.mxu0 %v1888
    %1938 = vmatpush2.msra.mxu0 %v1887
    %1939 = vmatprep.subr.mxu0 %v1886
    %1940 = vmatpush2.msra.mxu0 %v1885
    %1941 = vmatprep.subr.mxu0 %v1884
    %1942 = vmatpush2.msra.mxu0 %v1883
    %1943 = vmatprep.subr.mxu0 %v1882
    %1944 = vmatpush2.msra.mxu0 %v1881
    %1945 = vmatprep.subr.mxu0 %v1880
    %1946 = vmatpush2.msra.mxu0 %v1879
    %1947 = vmatprep.subr.mxu0 %v1878
    %1948 = vmatpush2.msra.mxu0 %v1877
    %1949 = vmatprep.subr.mxu0 %v1876
    %1950 = vmatpush2.msra.mxu0 %v1875
    %1951 = vmatprep.subr.mxu0 %v1874
    %1952 = vmatpush2.msra.mxu0 %v1873
    %1953 = vmatprep.subr.mxu0 %v1872
    %1954 = vmatpush2.msra.mxu0 %v1871
    %1955 = vmatprep.subr.mxu0 %v1870
    %1956 = vmatpush2.msra.mxu0 %v1869
    %1957 = vmatprep.subr.mxu0 %v1868
    %1958 = vmatpush2.msra.mxu0 %v1867
    %1959 = vmatprep.subr.mxu0 %v1866
    %1960 = vmatpush2.msra.mxu0 %v1865
    %1961 = vmatprep.mubr.f32.mxu0 %v1806
    %1962 = vmatmul.mubr.f32.gmra.mxu0 %v1797
    %v1963 = vpop.f32.mrf.mxu0
    %v1964 = vadd.f32 0.0, %v1963
    %v1965 = vpop.f32.mrf.mxu0
    %v1966 = vadd.f32 0.0, %v1965
    %1967 = vdwg.mxu0
    %1968 = vmatprep.subr.mxu0 %v1864
    %1969 = vmatpush1.msra.mxu0 %v1863
    %1970 = vmatprep.subr.mxu0 %v1862
    %1971 = vmatpush1.msra.mxu0 %v1861
    %1972 = vmatprep.subr.mxu0 %v1860
    %1973 = vmatpush1.msra.mxu0 %v1859
    %1974 = vmatprep.subr.mxu0 %v1858
    %1975 = vmatpush1.msra.mxu0 %v1857
    %1976 = vmatprep.subr.mxu0 %v1856
    %1977 = vmatpush1.msra.mxu0 %v1855
    %1978 = vmatprep.subr.mxu0 %v1854
    %1979 = vmatpush1.msra.mxu0 %v1853
    %1980 = vmatprep.subr.mxu0 %v1852
    %1981 = vmatpush1.msra.mxu0 %v1851
    %1982 = vmatprep.subr.mxu0 %v1850
    %1983 = vmatpush1.msra.mxu0 %v1849
    %1984 = vmatprep.subr.mxu0 %v1848
    %1985 = vmatpush1.msra.mxu0 %v1847
    %1986 = vmatprep.subr.mxu0 %v1846
    %1987 = vmatpush1.msra.mxu0 %v1845
    %1988 = vmatprep.subr.mxu0 %v1844
    %1989 = vmatpush1.msra.mxu0 %v1843
    %1990 = vmatprep.subr.mxu0 %v1842
    %1991 = vmatpush1.msra.mxu0 %v1841
    %1992 = vmatprep.subr.mxu0 %v1840
    %1993 = vmatpush1.msra.mxu0 %v1839
    %1994 = vmatprep.subr.mxu0 %v1838
    %1995 = vmatpush1.msra.mxu0 %v1837
    %1996 = vmatprep.subr.mxu0 %v1836
    %1997 = vmatpush1.msra.mxu0 %v1835
    %1998 = vmatprep.subr.mxu0 %v1834
    %1999 = vmatpush1.msra.mxu0 %v1833
    %2000 = vmatprep.subr.mxu0 %v1896
    %2001 = vmatpush2.msra.mxu0 %v1895
    %2002 = vmatprep.subr.mxu0 %v1894
    %2003 = vmatpush2.msra.mxu0 %v1893
    %2004 = vmatprep.subr.mxu0 %v1892
    %2005 = vmatpush2.msra.mxu0 %v1891
    %2006 = vmatprep.subr.mxu0 %v1890
    %2007 = vmatpush2.msra.mxu0 %v1889
    %2008 = vmatprep.subr.mxu0 %v1888
    %2009 = vmatpush2.msra.mxu0 %v1887
    %2010 = vmatprep.subr.mxu0 %v1886
    %2011 = vmatpush2.msra.mxu0 %v1885
    %2012 = vmatprep.subr.mxu0 %v1884
    %2013 = vmatpush2.msra.mxu0 %v1883
    %2014 = vmatprep.subr.mxu0 %v1882
    %2015 = vmatpush2.msra.mxu0 %v1881
    %2016 = vmatprep.subr.mxu0 %v1880
    %2017 = vmatpush2.msra.mxu0 %v1879
    %2018 = vmatprep.subr.mxu0 %v1878
    %2019 = vmatpush2.msra.mxu0 %v1877
    %2020 = vmatprep.subr.mxu0 %v1876
    %2021 = vmatpush2.msra.mxu0 %v1875
    %2022 = vmatprep.subr.mxu0 %v1874
    %2023 = vmatpush2.msra.mxu0 %v1873
    %2024 = vmatprep.subr.mxu0 %v1872
    %2025 = vmatpush2.msra.mxu0 %v1871
    %2026 = vmatprep.subr.mxu0 %v1870
    %2027 = vmatpush2.msra.mxu0 %v1869
    %2028 = vmatprep.subr.mxu0 %v1868
    %2029 = vmatpush2.msra.mxu0 %v1867
    %2030 = vmatprep.subr.mxu0 %v1866
    %2031 = vmatpush2.msra.mxu0 %v1865
    %2032 = vmatprep.mubr.f32.mxu0 %v1832
    %2033 = vmatmul.mubr.f32.gmra.mxu0 %v1823
    %v2034 = vpop.f32.mrf.mxu0
    %v2035 = vadd.f32 0.0, %v2034
    %v2036 = vpop.f32.mrf.mxu0
    %v2037 = vadd.f32 0.0, %v2036
    %2038 = vdwg.mxu0
    %v2039 = vmul.f32 %v1964, %v1964
    %v2040 = vmul.f32 %v1966, %v1966
    %v2041 = vsub.f32 %v2035, %v2039
    %v2042 = vsub.f32 %v2037, %v2040
    %v2043 = vld [vmem:[#allocation14] sm:$0x3]
    %v2044 = vadd.f32 %v2041, 1e-05
    %v2045 = vadd.f32 %v2042, 1e-05
    %v2046 = vrsqrt.pop %v2044
    %v2047 = vrsqrt.pop %v2045
    %v2050 = vcombine.low %v2046, %v2047
    %v2052 = vunpack.c.l.s4 1966171168
    %v2053 = vunpack.c.0.s8 %v2052
    %v2054 = vlaneseq
    %v2055 = vshrl.u32 %v2054, 7
    %v2056 = vsub.s32 %v2053, %v2055
    %v2057 = vrot.slane %v2050, %v2056
    %v2059 = vunpack.c.l.s4 1966171168
    %v2060 = vunpack.c.0.s8 %v2059
    %v2061 = vlaneseq
    %v2062 = vshrl.u32 %v2061, 7
    %v2063 = vsub.s32 %v2060, %v2062
    %v2064 = vrot.slane %v2057, %v2063
    %v2066 = vmul.f32 %v2043, %v2064
    %v2067 = vld [vmem:[#allocation16] sm:$0x3]
    %v2069 = vlaneseq
    %v2070 = vshrl.u32 %v2069, 7
    %v2071 = vsub.s32 0, %v2070
    %v2072 = vrot.slane %v2066, %v2071
    %v2073 = vlaneseq
    %v2074 = vshrl.u32 %v2073, 7
    %v2075 = vsub.s32 1, %v2074
    %v2076 = vrot.slane %v2066, %v2075
    %v2079 = vmul.f32 %v1964, %v2072
    %v2080 = vmul.f32 %v1966, %v2076
    %v2083 = vcombine.low %v2079, %v2080
    %v2085 = vunpack.c.l.s4 1966171168
    %v2086 = vunpack.c.0.s8 %v2085
    %v2087 = vlaneseq
    %v2088 = vshrl.u32 %v2087, 7
    %v2089 = vsub.s32 %v2086, %v2088
    %v2090 = vrot.slane %v2083, %v2089
    %v2092 = vunpack.c.l.s4 1966171168
    %v2093 = vunpack.c.0.s8 %v2092
    %v2094 = vlaneseq
    %v2095 = vshrl.u32 %v2094, 7
    %v2096 = vsub.s32 %v2093, %v2095
    %v2097 = vrot.slane %v2090, %v2096
    %v2099 = vsub.f32 %v2067, %v2097
    %v2100 = vmul.f32 %v1771, %v2072
    %v2101 = vmul.f32 %v1773, %v2076
    %v2102 = vmul.f32 %v1775, %v2072
    %v2103 = vmul.f32 %v1777, %v2076
    %v2104 = vmul.f32 %v1781, %v2072
    %v2105 = vmul.f32 %v1783, %v2076
    %v2106 = vmul.f32 %v1785, %v2072
    %v2107 = vmul.f32 %v1787, %v2076
    %v2109 = vlaneseq
    %v2110 = vshrl.u32 %v2109, 7
    %v2111 = vsub.s32 0, %v2110
    %v2112 = vrot.slane %v2099, %v2111
    %v2113 = vlaneseq
    %v2114 = vshrl.u32 %v2113, 7
    %v2115 = vsub.s32 1, %v2114
    %v2116 = vrot.slane %v2099, %v2115
    %v2119 = vadd.f32 %v2100, %v2112
    %v2120 = vadd.f32 %v2101, %v2116
    %v2121 = vadd.f32 %v2102, %v2112
    %v2122 = vadd.f32 %v2103, %v2116
    %v2123 = vadd.f32 %v2104, %v2112
    %v2124 = vadd.f32 %v2105, %v2116
    %v2125 = vadd.f32 %v2106, %v2112
    %v2126 = vadd.f32 %v2107, %v2116
    %v2127 = vmax.f32 %v2119, 0.0
    %v2128 = vmax.f32 %v2120, 0.0
    %v2129 = vmax.f32 %v2121, 0.0
    %v2130 = vmax.f32 %v2122, 0.0
    %v2131 = vmax.f32 %v2123, 0.0
    %v2132 = vmax.f32 %v2124, 0.0
    %v2133 = vmax.f32 %v2125, 0.0
    %v2134 = vmax.f32 %v2126, 0.0
    %v2143 = vrot.slane %v2127, 7
    %v2144 = vrot.slane %v2128, 7
    %v2145 = vrot.slane %v2129, 7
    %v2146 = vsel %vm459, %v2143, %v2145
    %v2147 = vrot.slane %v2130, 7
    %v2148 = vsel %vm459, %v2144, %v2147
    %v2149 = vrot.slane %v2131, 7
    %v2150 = vsel %vm459, %v2145, %v2149
    %v2151 = vrot.slane %v2132, 7
    %v2152 = vsel %vm459, %v2147, %v2151
    %v2153 = vrot.slane %v2133, 7
    %v2154 = vsel %vm459, %v2149, %v2153
    %v2155 = vrot.slane %v2134, 7
    %v2156 = vsel %vm459, %v2151, %v2155
    %v2165 = vsel %vm459, 0.0, %v2143
    %v2166 = vsel %vm459, 0.0, %v2144
    %v2167 = vmul.f32 %v439, %v2165
    %v2168 = vmul.f32 %v439, %v2166
    %v2169 = vmul.f32 %v440, %v2146
    %v2170 = vmul.f32 %v440, %v2148
    %v2171 = vmul.f32 %v441, %v2150
    %v2172 = vmul.f32 %v441, %v2152
    %v2173 = vmul.f32 %v442, %v2154
    %v2174 = vmul.f32 %v442, %v2156
    %v2175 = vrot.slane %v2127, 1
    %v2176 = vrot.slane %v2129, 1
    %v2177 = vsel %vm476, %v2175, %v2176
    %v2178 = vrot.slane %v2128, 1
    %v2179 = vrot.slane %v2130, 1
    %v2180 = vsel %vm476, %v2178, %v2179
    %v2181 = vrot.slane %v2131, 1
    %v2182 = vsel %vm476, %v2176, %v2181
    %v2183 = vrot.slane %v2132, 1
    %v2184 = vsel %vm476, %v2179, %v2183
    %v2185 = vrot.slane %v2133, 1
    %v2186 = vsel %vm476, %v2181, %v2185
    %v2187 = vrot.slane %v2134, 1
    %v2188 = vsel %vm476, %v2183, %v2187
    %v2197 = vsel %vm476, %v2185, 0.0
    %v2198 = vsel %vm476, %v2187, 0.0
    %v2199 = vmul.f32 %v451, %v2177
    %v2200 = vmul.f32 %v451, %v2180
    %v2201 = vmul.f32 %v452, %v2182
    %v2202 = vmul.f32 %v452, %v2184
    %v2203 = vmul.f32 %v453, %v2186
    %v2204 = vmul.f32 %v453, %v2188
    %v2205 = vmul.f32 %v454, %v2197
    %v2206 = vmul.f32 %v454, %v2198
    %2215 = vrot.lane.b32.xlu0 %v2167, 16
    %v2216 = vpop.permute.xlu0 %2215
    %2217 = vrot.lane.b32.xlu0 %v2168, 16
    %v2218 = vpop.permute.xlu0 %2217
    %2219 = vrot.lane.b32.xlu0 %v2169, 16
    %v2220 = vpop.permute.xlu0 %2219
    %2221 = vrot.lane.b32.xlu0 %v2170, 16
    %v2222 = vpop.permute.xlu0 %2221
    %2223 = vrot.lane.b32.xlu0 %v2171, 16
    %v2224 = vpop.permute.xlu0 %2223
    %2225 = vrot.lane.b32.xlu0 %v2172, 16
    %v2226 = vpop.permute.xlu0 %2225
    %2227 = vrot.lane.b32.xlu0 %v2173, 16
    %v2228 = vpop.permute.xlu0 %2227
    %2229 = vrot.lane.b32.xlu0 %v2174, 16
    %v2230 = vpop.permute.xlu0 %2229
    %vm2231 = vcmask 130048
    %v2232 = vsel %vm2231, %v2216, %v2218
    %v2233 = vsel %vm2231, %v2220, %v2222
    %v2234 = vsel %vm2231, %v2224, %v2226
    %v2235 = vsel %vm2231, %v2228, %v2230
    %v2248 = vsel %vm2231, 0.0, %v2216
    %v2249 = vsel %vm2231, 0.0, %v2220
    %v2250 = vsel %vm2231, 0.0, %v2224
    %v2251 = vsel %vm2231, 0.0, %v2228
    %v2252 = vsel %vm2231, %v2218, 0.0
    %v2253 = vsel %vm2231, %v2222, 0.0
    %v2254 = vsel %vm2231, %v2226, 0.0
    %v2255 = vsel %vm2231, %v2230, 0.0
    %v2256 = vpack.c.bf16 %v2249, %v2248
    %v2257 = vpack.c.bf16 %v2233, %v2232
    %v2258 = vpack.c.bf16 %v2251, %v2250
    %v2259 = vpack.c.bf16 %v2235, %v2234
    %v2260 = vpack.c.bf16 %v2253, %v2252
    %v2261 = vpack.c.bf16 %v2255, %v2254
    %2262 = vrot.lane.b32.xlu0 %v2127, 16
    %v2263 = vpop.permute.xlu0 %2262
    %2264 = vrot.lane.b32.xlu0 %v2128, 16
    %v2265 = vpop.permute.xlu0 %2264
    %2266 = vrot.lane.b32.xlu0 %v2129, 16
    %v2267 = vpop.permute.xlu0 %2266
    %2268 = vrot.lane.b32.xlu0 %v2130, 16
    %v2269 = vpop.permute.xlu0 %2268
    %2270 = vrot.lane.b32.xlu0 %v2131, 16
    %v2271 = vpop.permute.xlu0 %2270
    %2272 = vrot.lane.b32.xlu0 %v2132, 16
    %v2273 = vpop.permute.xlu0 %2272
    %2274 = vrot.lane.b32.xlu0 %v2133, 16
    %v2275 = vpop.permute.xlu0 %2274
    %2276 = vrot.lane.b32.xlu0 %v2134, 16
    %v2277 = vpop.permute.xlu0 %2276
    %v2278 = vsel %vm2231, %v2263, %v2265
    %v2279 = vsel %vm2231, %v2267, %v2269
    %v2280 = vsel %vm2231, %v2271, %v2273
    %v2281 = vsel %vm2231, %v2275, %v2277
    %v2294 = vsel %vm2231, 0.0, %v2263
    %v2295 = vsel %vm2231, 0.0, %v2267
    %v2296 = vsel %vm2231, 0.0, %v2271
    %v2297 = vsel %vm2231, 0.0, %v2275
    %v2298 = vsel %vm2231, %v2265, 0.0
    %v2299 = vsel %vm2231, %v2269, 0.0
    %v2300 = vsel %vm2231, %v2273, 0.0
    %v2301 = vsel %vm2231, %v2277, 0.0
    %v2302 = vpack.c.bf16 %v2295, %v2294
    %v2303 = vpack.c.bf16 %v2279, %v2278
    %v2304 = vpack.c.bf16 %v2297, %v2296
    %v2305 = vpack.c.bf16 %v2281, %v2280
    %v2306 = vpack.c.bf16 %v2299, %v2298
    %v2307 = vpack.c.bf16 %v2301, %v2300
    %2316 = vrot.lane.b32.xlu0 %v2199, 16
    %v2317 = vpop.permute.xlu0 %2316
    %2318 = vrot.lane.b32.xlu0 %v2200, 16
    %v2319 = vpop.permute.xlu0 %2318
    %2320 = vrot.lane.b32.xlu0 %v2201, 16
    %v2321 = vpop.permute.xlu0 %2320
    %2322 = vrot.lane.b32.xlu0 %v2202, 16
    %v2323 = vpop.permute.xlu0 %2322
    %2324 = vrot.lane.b32.xlu0 %v2203, 16
    %v2325 = vpop.permute.xlu0 %2324
    %2326 = vrot.lane.b32.xlu0 %v2204, 16
    %v2327 = vpop.permute.xlu0 %2326
    %2328 = vrot.lane.b32.xlu0 %v2205, 16
    %v2329 = vpop.permute.xlu0 %2328
    %2330 = vrot.lane.b32.xlu0 %v2206, 16
    %v2331 = vpop.permute.xlu0 %2330
    %v2332 = vsel %vm2231, %v2317, %v2319
    %v2333 = vsel %vm2231, %v2321, %v2323
    %v2334 = vsel %vm2231, %v2325, %v2327
    %v2335 = vsel %vm2231, %v2329, %v2331
    %v2348 = vsel %vm2231, 0.0, %v2317
    %v2349 = vsel %vm2231, 0.0, %v2321
    %v2350 = vsel %vm2231, 0.0, %v2325
    %v2351 = vsel %vm2231, 0.0, %v2329
    %v2352 = vsel %vm2231, %v2319, 0.0
    %v2353 = vsel %vm2231, %v2323, 0.0
    %v2354 = vsel %vm2231, %v2327, 0.0
    %v2355 = vsel %vm2231, %v2331, 0.0
    %v2356 = vpack.c.bf16 %v2349, %v2348
    %v2357 = vpack.c.bf16 %v2333, %v2332
    %v2358 = vpack.c.bf16 %v2351, %v2350
    %v2359 = vpack.c.bf16 %v2335, %v2334
    %v2360 = vpack.c.bf16 %v2353, %v2352
    %v2361 = vpack.c.bf16 %v2355, %v2354
    %v2362 = vpack.c.bf16 %v164, %v163
    %v2363 = vpack.c.bf16 %v166, %v165
    %2370 = vrot.lane.b32.xlu0 %v2256, 112
    %v2371 = vpop.permute.xlu0 %2370
    %2372 = vrot.lane.b32.xlu0 %v2257, 112
    %v2373 = vpop.permute.xlu0 %2372
    %2374 = vrot.lane.b32.xlu0 %v2260, 112
    %v2375 = vpop.permute.xlu0 %2374
    %2376 = vrot.lane.b32.xlu0 %v2258, 112
    %v2377 = vpop.permute.xlu0 %2376
    %2378 = vrot.lane.b32.xlu0 %v2259, 112
    %v2379 = vpop.permute.xlu0 %2378
    %2380 = vrot.lane.b32.xlu0 %v2261, 112
    %v2381 = vpop.permute.xlu0 %2380
    %v2382 = vsel %vm599, %v2371, %v2373
    %v2383 = vsel %vm599, %v2373, %v2375
    %v2384 = vsel %vm599, %v2377, %v2379
    %v2385 = vsel %vm599, %v2379, %v2381
    %2390 = vrot.lane.b32.xlu0 %v2256, 96
    %v2391 = vpop.permute.xlu0 %2390
    %2392 = vrot.lane.b32.xlu0 %v2257, 96
    %v2393 = vpop.permute.xlu0 %2392
    %2394 = vrot.lane.b32.xlu0 %v2260, 96
    %v2395 = vpop.permute.xlu0 %2394
    %2396 = vrot.lane.b32.xlu0 %v2258, 96
    %v2397 = vpop.permute.xlu0 %2396
    %2398 = vrot.lane.b32.xlu0 %v2259, 96
    %v2399 = vpop.permute.xlu0 %2398
    %2400 = vrot.lane.b32.xlu0 %v2261, 96
    %v2401 = vpop.permute.xlu0 %2400
    %vm2402 = vcmask 785408
    %v2403 = vsel %vm2402, %v2391, %v2393
    %v2404 = vsel %vm2402, %v2393, %v2395
    %v2405 = vsel %vm2402, %v2397, %v2399
    %v2406 = vsel %vm2402, %v2399, %v2401
    %2417 = vrot.lane.b32.xlu0 %v2302, 112
    %v2418 = vpop.permute.xlu0 %2417
    %2419 = vrot.lane.b32.xlu0 %v2303, 112
    %v2420 = vpop.permute.xlu0 %2419
    %2421 = vrot.lane.b32.xlu0 %v2306, 112
    %v2422 = vpop.permute.xlu0 %2421
    %2423 = vrot.lane.b32.xlu0 %v2304, 112
    %v2424 = vpop.permute.xlu0 %2423
    %2425 = vrot.lane.b32.xlu0 %v2305, 112
    %v2426 = vpop.permute.xlu0 %2425
    %2427 = vrot.lane.b32.xlu0 %v2307, 112
    %v2428 = vpop.permute.xlu0 %2427
    %v2429 = vsel %vm599, %v2418, %v2420
    %v2430 = vsel %vm599, %v2420, %v2422
    %v2431 = vsel %vm599, %v2424, %v2426
    %v2432 = vsel %vm599, %v2426, %v2428
    %2437 = vrot.lane.b32.xlu0 %v2302, 96
    %v2438 = vpop.permute.xlu0 %2437
    %2439 = vrot.lane.b32.xlu0 %v2303, 96
    %v2440 = vpop.permute.xlu0 %2439
    %2441 = vrot.lane.b32.xlu0 %v2306, 96
    %v2442 = vpop.permute.xlu0 %2441
    %2443 = vrot.lane.b32.xlu0 %v2304, 96
    %v2444 = vpop.permute.xlu0 %2443
    %2445 = vrot.lane.b32.xlu0 %v2305, 96
    %v2446 = vpop.permute.xlu0 %2445
    %2447 = vrot.lane.b32.xlu0 %v2307, 96
    %v2448 = vpop.permute.xlu0 %2447
    %v2449 = vsel %vm2402, %v2438, %v2440
    %v2450 = vsel %vm2402, %v2440, %v2442
    %v2451 = vsel %vm2402, %v2444, %v2446
    %v2452 = vsel %vm2402, %v2446, %v2448
    %2463 = vrot.lane.b32.xlu0 %v2356, 112
    %v2464 = vpop.permute.xlu0 %2463
    %2465 = vrot.lane.b32.xlu0 %v2357, 112
    %v2466 = vpop.permute.xlu0 %2465
    %2467 = vrot.lane.b32.xlu0 %v2360, 112
    %v2468 = vpop.permute.xlu0 %2467
    %2469 = vrot.lane.b32.xlu0 %v2358, 112
    %v2470 = vpop.permute.xlu0 %2469
    %2471 = vrot.lane.b32.xlu0 %v2359, 112
    %v2472 = vpop.permute.xlu0 %2471
    %2473 = vrot.lane.b32.xlu0 %v2361, 112
    %v2474 = vpop.permute.xlu0 %2473
    %v2475 = vsel %vm599, %v2464, %v2466
    %v2476 = vsel %vm599, %v2466, %v2468
    %v2477 = vsel %vm599, %v2470, %v2472
    %v2478 = vsel %vm599, %v2472, %v2474
    %2483 = vrot.lane.b32.xlu0 %v2356, 96
    %v2484 = vpop.permute.xlu0 %2483
    %2485 = vrot.lane.b32.xlu0 %v2357, 96
    %v2486 = vpop.permute.xlu0 %2485
    %2487 = vrot.lane.b32.xlu0 %v2360, 96
    %v2488 = vpop.permute.xlu0 %2487
    %2489 = vrot.lane.b32.xlu0 %v2358, 96
    %v2490 = vpop.permute.xlu0 %2489
    %2491 = vrot.lane.b32.xlu0 %v2359, 96
    %v2492 = vpop.permute.xlu0 %2491
    %2493 = vrot.lane.b32.xlu0 %v2361, 96
    %v2494 = vpop.permute.xlu0 %2493
    %v2495 = vsel %vm2402, %v2484, %v2486
    %v2496 = vsel %vm2402, %v2486, %v2488
    %v2497 = vsel %vm2402, %v2490, %v2492
    %v2498 = vsel %vm2402, %v2492, %v2494
    %v2503 = vld [vmem:[#allocation7] sm:$0xff]
    %v2504 = vld [vmem:[#allocation7 + $0x8] sm:$0xff]
    %v2505 = vld [vmem:[#allocation7 + $0x10] sm:$0xff]
    %v2506 = vld [vmem:[#allocation7 + $0x18] sm:$0xff]
    %v2507 = vld [vmem:[#allocation7 + $0x20] sm:$0xff]
    %v2508 = vld [vmem:[#allocation7 + $0x28] sm:$0xff]
    %v2509 = vld [vmem:[#allocation7 + $0x30] sm:$0xff]
    %v2510 = vld [vmem:[#allocation7 + $0x38] sm:$0xff]
    %v2511 = vld [vmem:[#allocation7 + $0x40] sm:$0xff]
    %v2512 = vld [vmem:[#allocation7 + $0x48] sm:$0xff]
    %v2513 = vld [vmem:[#allocation7 + $0x50] sm:$0xff]
    %v2514 = vld [vmem:[#allocation7 + $0x58] sm:$0xff]
    %v2515 = vld [vmem:[#allocation7 + $0x60] sm:$0xff]
    %v2516 = vld [vmem:[#allocation7 + $0x68] sm:$0xff]
    %v2517 = vld [vmem:[#allocation7 + $0x70] sm:$0xff]
    %v2518 = vld [vmem:[#allocation7 + $0x78] sm:$0xff]
    %v2519 = vld [vmem:[#allocation7 + $0x80] sm:$0xff]
    %v2520 = vld [vmem:[#allocation7 + $0x88] sm:$0xff]
    %v2521 = vld [vmem:[#allocation7 + $0x90] sm:$0xff]
    %v2522 = vld [vmem:[#allocation7 + $0x98] sm:$0xff]
    %v2523 = vld [vmem:[#allocation7 + $0xa0] sm:$0xff]
    %v2524 = vld [vmem:[#allocation7 + $0xa8] sm:$0xff]
    %v2525 = vld [vmem:[#allocation7 + $0xb0] sm:$0xff]
    %v2526 = vld [vmem:[#allocation7 + $0xb8] sm:$0xff]
    %v2527 = vld [vmem:[#allocation7 + $0xc0] sm:$0xff]
    %v2528 = vld [vmem:[#allocation7 + $0xc8] sm:$0xff]
    %v2529 = vld [vmem:[#allocation7 + $0xd0] sm:$0xff]
    %v2530 = vld [vmem:[#allocation7 + $0xd8] sm:$0xff]
    %v2531 = vld [vmem:[#allocation7 + $0xe0] sm:$0xff]
    %v2532 = vld [vmem:[#allocation7 + $0xe8] sm:$0xff]
    %v2533 = vld [vmem:[#allocation7 + $0xf0] sm:$0xff]
    %v2534 = vld [vmem:[#allocation7 + $0xf8] sm:$0xff]
    %v2535 = vld [vmem:[#allocation7 + $0x100] sm:$0xff]
    %v2536 = vld [vmem:[#allocation7 + $0x108] sm:$0xff]
    %v2537 = vld [vmem:[#allocation7 + $0x110] sm:$0xff]
    %v2538 = vld [vmem:[#allocation7 + $0x118] sm:$0xff]
    %v2539 = vld [vmem:[#allocation7 + $0x120] sm:$0xff]
    %v2540 = vld [vmem:[#allocation7 + $0x128] sm:$0xff]
    %v2541 = vld [vmem:[#allocation7 + $0x130] sm:$0xff]
    %v2542 = vld [vmem:[#allocation7 + $0x138] sm:$0xff]
    %v2543 = vld [vmem:[#allocation7 + $0x140] sm:$0xff]
    %v2544 = vld [vmem:[#allocation7 + $0x148] sm:$0xff]
    %v2545 = vld [vmem:[#allocation7 + $0x150] sm:$0xff]
    %v2546 = vld [vmem:[#allocation7 + $0x158] sm:$0xff]
    %v2547 = vld [vmem:[#allocation7 + $0x160] sm:$0xff]
    %v2548 = vld [vmem:[#allocation7 + $0x168] sm:$0xff]
    %v2549 = vld [vmem:[#allocation7 + $0x170] sm:$0xff]
    %v2550 = vld [vmem:[#allocation7 + $0x178] sm:$0xff]
    %v2551 = vld [vmem:[#allocation7 + $0x180] sm:$0xff]
    %v2552 = vld [vmem:[#allocation7 + $0x188] sm:$0xff]
    %v2553 = vld [vmem:[#allocation7 + $0x190] sm:$0xff]
    %v2554 = vld [vmem:[#allocation7 + $0x198] sm:$0xff]
    %v2555 = vld [vmem:[#allocation7 + $0x1a0] sm:$0xff]
    %v2556 = vld [vmem:[#allocation7 + $0x1a8] sm:$0xff]
    %v2557 = vld [vmem:[#allocation7 + $0x1b0] sm:$0xff]
    %v2558 = vld [vmem:[#allocation7 + $0x1b8] sm:$0xff]
    %v2559 = vld [vmem:[#allocation7 + $0x1c0] sm:$0xff]
    %v2560 = vld [vmem:[#allocation7 + $0x1c8] sm:$0xff]
    %v2561 = vld [vmem:[#allocation7 + $0x1d0] sm:$0xff]
    %v2562 = vld [vmem:[#allocation7 + $0x1d8] sm:$0xff]
    %v2563 = vld [vmem:[#allocation7 + $0x1e0] sm:$0xff]
    %v2564 = vld [vmem:[#allocation7 + $0x1e8] sm:$0xff]
    %v2565 = vld [vmem:[#allocation7 + $0x1f0] sm:$0xff]
    %v2566 = vld [vmem:[#allocation7 + $0x1f8] sm:$0xff]
    %v2567 = vld [vmem:[#allocation7 + $0x200] sm:$0xff]
    %v2568 = vld [vmem:[#allocation7 + $0x208] sm:$0xff]
    %v2569 = vld [vmem:[#allocation7 + $0x210] sm:$0xff]
    %v2570 = vld [vmem:[#allocation7 + $0x218] sm:$0xff]
    %v2571 = vld [vmem:[#allocation7 + $0x220] sm:$0xff]
    %v2572 = vld [vmem:[#allocation7 + $0x228] sm:$0xff]
    %v2573 = vld [vmem:[#allocation7 + $0x230] sm:$0xff]
    %v2574 = vld [vmem:[#allocation7 + $0x238] sm:$0xff]
    %v2575 = vld [vmem:[#allocation7 + $0x240] sm:$0xff]
    %v2576 = vld [vmem:[#allocation7 + $0x248] sm:$0xff]
    %v2577 = vld [vmem:[#allocation7 + $0x250] sm:$0xff]
    %v2578 = vld [vmem:[#allocation7 + $0x258] sm:$0xff]
    %v2579 = vld [vmem:[#allocation7 + $0x260] sm:$0xff]
    %v2580 = vld [vmem:[#allocation7 + $0x268] sm:$0xff]
    %v2581 = vld [vmem:[#allocation7 + $0x270] sm:$0xff]
    %v2582 = vld [vmem:[#allocation7 + $0x278] sm:$0xff]
    %v2583 = vld [vmem:[#allocation7 + $0x280] sm:$0xff]
    %v2584 = vld [vmem:[#allocation7 + $0x288] sm:$0xff]
    %v2585 = vld [vmem:[#allocation7 + $0x290] sm:$0xff]
    %v2586 = vld [vmem:[#allocation7 + $0x298] sm:$0xff]
    %v2587 = vld [vmem:[#allocation7 + $0x2a0] sm:$0xff]
    %v2588 = vld [vmem:[#allocation7 + $0x2a8] sm:$0xff]
    %v2589 = vld [vmem:[#allocation7 + $0x2b0] sm:$0xff]
    %v2590 = vld [vmem:[#allocation7 + $0x2b8] sm:$0xff]
    %v2591 = vld [vmem:[#allocation7 + $0x2c0] sm:$0xff]
    %v2592 = vld [vmem:[#allocation7 + $0x2c8] sm:$0xff]
    %v2593 = vld [vmem:[#allocation7 + $0x2d0] sm:$0xff]
    %v2594 = vld [vmem:[#allocation7 + $0x2d8] sm:$0xff]
    %v2595 = vld [vmem:[#allocation7 + $0x2e0] sm:$0xff]
    %v2596 = vld [vmem:[#allocation7 + $0x2e8] sm:$0xff]
    %v2597 = vld [vmem:[#allocation7 + $0x2f0] sm:$0xff]
    %v2598 = vld [vmem:[#allocation7 + $0x2f8] sm:$0xff]
    %v2599 = vld [vmem:[#allocation7 + $0x300] sm:$0xff]
    %v2600 = vld [vmem:[#allocation7 + $0x308] sm:$0xff]
    %v2601 = vld [vmem:[#allocation7 + $0x310] sm:$0xff]
    %v2602 = vld [vmem:[#allocation7 + $0x318] sm:$0xff]
    %v2603 = vld [vmem:[#allocation7 + $0x320] sm:$0xff]
    %v2604 = vld [vmem:[#allocation7 + $0x328] sm:$0xff]
    %v2605 = vld [vmem:[#allocation7 + $0x330] sm:$0xff]
    %v2606 = vld [vmem:[#allocation7 + $0x338] sm:$0xff]
    %v2607 = vld [vmem:[#allocation7 + $0x340] sm:$0xff]
    %v2608 = vld [vmem:[#allocation7 + $0x348] sm:$0xff]
    %v2609 = vld [vmem:[#allocation7 + $0x350] sm:$0xff]
    %v2610 = vld [vmem:[#allocation7 + $0x358] sm:$0xff]
    %v2611 = vld [vmem:[#allocation7 + $0x360] sm:$0xff]
    %v2612 = vld [vmem:[#allocation7 + $0x368] sm:$0xff]
    %v2613 = vld [vmem:[#allocation7 + $0x370] sm:$0xff]
    %v2614 = vld [vmem:[#allocation7 + $0x378] sm:$0xff]
    %v2615 = vld [vmem:[#allocation7 + $0x380] sm:$0xff]
    %v2616 = vld [vmem:[#allocation7 + $0x388] sm:$0xff]
    %v2617 = vld [vmem:[#allocation7 + $0x390] sm:$0xff]
    %v2618 = vld [vmem:[#allocation7 + $0x398] sm:$0xff]
    %v2619 = vld [vmem:[#allocation7 + $0x3a0] sm:$0xff]
    %v2620 = vld [vmem:[#allocation7 + $0x3a8] sm:$0xff]
    %v2621 = vld [vmem:[#allocation7 + $0x3b0] sm:$0xff]
    %v2622 = vld [vmem:[#allocation7 + $0x3b8] sm:$0xff]
    %v2623 = vld [vmem:[#allocation7 + $0x3c0] sm:$0xff]
    %v2624 = vld [vmem:[#allocation7 + $0x3c8] sm:$0xff]
    %v2625 = vld [vmem:[#allocation7 + $0x3d0] sm:$0xff]
    %v2626 = vld [vmem:[#allocation7 + $0x3d8] sm:$0xff]
    %v2627 = vld [vmem:[#allocation7 + $0x3e0] sm:$0xff]
    %v2628 = vld [vmem:[#allocation7 + $0x3e8] sm:$0xff]
    %v2629 = vld [vmem:[#allocation7 + $0x3f0] sm:$0xff]
    %v2630 = vld [vmem:[#allocation7 + $0x3f8] sm:$0xff]
    %v2631 = vld [vmem:[#allocation7 + $0x400] sm:$0xff]
    %v2632 = vld [vmem:[#allocation7 + $0x408] sm:$0xff]
    %v2633 = vld [vmem:[#allocation7 + $0x410] sm:$0xff]
    %v2634 = vld [vmem:[#allocation7 + $0x418] sm:$0xff]
    %v2635 = vld [vmem:[#allocation7 + $0x420] sm:$0xff]
    %v2636 = vld [vmem:[#allocation7 + $0x428] sm:$0xff]
    %v2637 = vld [vmem:[#allocation7 + $0x430] sm:$0xff]
    %v2638 = vld [vmem:[#allocation7 + $0x438] sm:$0xff]
    %v2639 = vld [vmem:[#allocation7 + $0x440] sm:$0xff]
    %v2640 = vld [vmem:[#allocation7 + $0x448] sm:$0xff]
    %v2641 = vld [vmem:[#allocation7 + $0x450] sm:$0xff]
    %v2642 = vld [vmem:[#allocation7 + $0x458] sm:$0xff]
    %v2643 = vld [vmem:[#allocation7 + $0x460] sm:$0xff]
    %v2644 = vld [vmem:[#allocation7 + $0x468] sm:$0xff]
    %v2645 = vld [vmem:[#allocation7 + $0x470] sm:$0xff]
    %v2646 = vld [vmem:[#allocation7 + $0x478] sm:$0xff]
    %v2647 = vld [vmem:[#allocation7 + $0x480] sm:$0xff]
    %v2648 = vld [vmem:[#allocation7 + $0x488] sm:$0xff]
    %v2649 = vld [vmem:[#allocation7 + $0x490] sm:$0xff]
    %v2650 = vld [vmem:[#allocation7 + $0x498] sm:$0xff]
    %v2651 = vld [vmem:[#allocation7 + $0x4a0] sm:$0xff]
    %v2652 = vld [vmem:[#allocation7 + $0x4a8] sm:$0xff]
    %v2653 = vld [vmem:[#allocation7 + $0x4b0] sm:$0xff]
    %v2654 = vld [vmem:[#allocation7 + $0x4b8] sm:$0xff]
    %v2655 = vld [vmem:[#allocation7 + $0x4c0] sm:$0xff]
    %v2656 = vld [vmem:[#allocation7 + $0x4c8] sm:$0xff]
    %v2657 = vld [vmem:[#allocation7 + $0x4d0] sm:$0xff]
    %v2658 = vld [vmem:[#allocation7 + $0x4d8] sm:$0xff]
    %v2659 = vld [vmem:[#allocation7 + $0x4e0] sm:$0xff]
    %v2660 = vld [vmem:[#allocation7 + $0x4e8] sm:$0xff]
    %v2661 = vld [vmem:[#allocation7 + $0x4f0] sm:$0xff]
    %v2662 = vld [vmem:[#allocation7 + $0x4f8] sm:$0xff]
    %v2663 = vld [vmem:[#allocation7 + $0x500] sm:$0xff]
    %v2664 = vld [vmem:[#allocation7 + $0x508] sm:$0xff]
    %v2665 = vld [vmem:[#allocation7 + $0x510] sm:$0xff]
    %v2666 = vld [vmem:[#allocation7 + $0x518] sm:$0xff]
    %v2667 = vld [vmem:[#allocation7 + $0x520] sm:$0xff]
    %v2668 = vld [vmem:[#allocation7 + $0x528] sm:$0xff]
    %v2669 = vld [vmem:[#allocation7 + $0x530] sm:$0xff]
    %v2670 = vld [vmem:[#allocation7 + $0x538] sm:$0xff]
    %v2671 = vld [vmem:[#allocation7 + $0x540] sm:$0xff]
    %v2672 = vld [vmem:[#allocation7 + $0x548] sm:$0xff]
    %v2673 = vld [vmem:[#allocation7 + $0x550] sm:$0xff]
    %v2674 = vld [vmem:[#allocation7 + $0x558] sm:$0xff]
    %v2675 = vld [vmem:[#allocation7 + $0x560] sm:$0xff]
    %v2676 = vld [vmem:[#allocation7 + $0x568] sm:$0xff]
    %v2677 = vld [vmem:[#allocation7 + $0x570] sm:$0xff]
    %v2678 = vld [vmem:[#allocation7 + $0x578] sm:$0xff]
    %v2679 = vld [vmem:[#allocation7 + $0x580] sm:$0xff]
    %v2680 = vld [vmem:[#allocation7 + $0x588] sm:$0xff]
    %v2681 = vld [vmem:[#allocation7 + $0x590] sm:$0xff]
    %v2682 = vld [vmem:[#allocation7 + $0x598] sm:$0xff]
    %v2683 = vld [vmem:[#allocation7 + $0x5a0] sm:$0xff]
    %v2684 = vld [vmem:[#allocation7 + $0x5a8] sm:$0xff]
    %v2685 = vld [vmem:[#allocation7 + $0x5b0] sm:$0xff]
    %v2686 = vld [vmem:[#allocation7 + $0x5b8] sm:$0xff]
    %v2687 = vld [vmem:[#allocation7 + $0x5c0] sm:$0xff]
    %v2688 = vld [vmem:[#allocation7 + $0x5c8] sm:$0xff]
    %v2689 = vld [vmem:[#allocation7 + $0x5d0] sm:$0xff]
    %v2690 = vld [vmem:[#allocation7 + $0x5d8] sm:$0xff]
    %v2691 = vld [vmem:[#allocation7 + $0x5e0] sm:$0xff]
    %v2692 = vld [vmem:[#allocation7 + $0x5e8] sm:$0xff]
    %v2693 = vld [vmem:[#allocation7 + $0x5f0] sm:$0xff]
    %v2694 = vld [vmem:[#allocation7 + $0x5f8] sm:$0xff]
    %v2695 = vld [vmem:[#allocation7 + $0x600] sm:$0xff]
    %v2696 = vld [vmem:[#allocation7 + $0x608] sm:$0xff]
    %v2697 = vld [vmem:[#allocation7 + $0x610] sm:$0xff]
    %v2698 = vld [vmem:[#allocation7 + $0x618] sm:$0xff]
    %v2699 = vld [vmem:[#allocation7 + $0x620] sm:$0xff]
    %v2700 = vld [vmem:[#allocation7 + $0x628] sm:$0xff]
    %v2701 = vld [vmem:[#allocation7 + $0x630] sm:$0xff]
    %v2702 = vld [vmem:[#allocation7 + $0x638] sm:$0xff]
    %v2703 = vld [vmem:[#allocation7 + $0x640] sm:$0xff]
    %v2704 = vld [vmem:[#allocation7 + $0x648] sm:$0xff]
    %v2705 = vld [vmem:[#allocation7 + $0x650] sm:$0xff]
    %v2706 = vld [vmem:[#allocation7 + $0x658] sm:$0xff]
    %v2707 = vld [vmem:[#allocation7 + $0x660] sm:$0xff]
    %v2708 = vld [vmem:[#allocation7 + $0x668] sm:$0xff]
    %v2709 = vld [vmem:[#allocation7 + $0x670] sm:$0xff]
    %v2710 = vld [vmem:[#allocation7 + $0x678] sm:$0xff]
    %v2711 = vld [vmem:[#allocation7 + $0x680] sm:$0xff]
    %v2712 = vld [vmem:[#allocation7 + $0x688] sm:$0xff]
    %v2713 = vld [vmem:[#allocation7 + $0x690] sm:$0xff]
    %v2714 = vld [vmem:[#allocation7 + $0x698] sm:$0xff]
    %v2715 = vld [vmem:[#allocation7 + $0x6a0] sm:$0xff]
    %v2716 = vld [vmem:[#allocation7 + $0x6a8] sm:$0xff]
    %v2717 = vld [vmem:[#allocation7 + $0x6b0] sm:$0xff]
    %v2718 = vld [vmem:[#allocation7 + $0x6b8] sm:$0xff]
    %v2719 = vld [vmem:[#allocation7 + $0x6c0] sm:$0xff]
    %v2720 = vld [vmem:[#allocation7 + $0x6c8] sm:$0xff]
    %v2721 = vld [vmem:[#allocation7 + $0x6d0] sm:$0xff]
    %v2722 = vld [vmem:[#allocation7 + $0x6d8] sm:$0xff]
    %v2723 = vld [vmem:[#allocation7 + $0x6e0] sm:$0xff]
    %v2724 = vld [vmem:[#allocation7 + $0x6e8] sm:$0xff]
    %v2725 = vld [vmem:[#allocation7 + $0x6f0] sm:$0xff]
    %v2726 = vld [vmem:[#allocation7 + $0x6f8] sm:$0xff]
    %v2727 = vld [vmem:[#allocation7 + $0x700] sm:$0xff]
    %v2728 = vld [vmem:[#allocation7 + $0x708] sm:$0xff]
    %v2729 = vld [vmem:[#allocation7 + $0x710] sm:$0xff]
    %v2730 = vld [vmem:[#allocation7 + $0x718] sm:$0xff]
    %v2731 = vld [vmem:[#allocation7 + $0x720] sm:$0xff]
    %v2732 = vld [vmem:[#allocation7 + $0x728] sm:$0xff]
    %v2733 = vld [vmem:[#allocation7 + $0x730] sm:$0xff]
    %v2734 = vld [vmem:[#allocation7 + $0x738] sm:$0xff]
    %v2735 = vld [vmem:[#allocation7 + $0x740] sm:$0xff]
    %v2736 = vld [vmem:[#allocation7 + $0x748] sm:$0xff]
    %v2737 = vld [vmem:[#allocation7 + $0x750] sm:$0xff]
    %v2738 = vld [vmem:[#allocation7 + $0x758] sm:$0xff]
    %v2739 = vld [vmem:[#allocation7 + $0x760] sm:$0xff]
    %v2740 = vld [vmem:[#allocation7 + $0x768] sm:$0xff]
    %v2741 = vld [vmem:[#allocation7 + $0x770] sm:$0xff]
    %v2742 = vld [vmem:[#allocation7 + $0x778] sm:$0xff]
    %v2743 = vld [vmem:[#allocation7 + $0x780] sm:$0xff]
    %v2744 = vld [vmem:[#allocation7 + $0x788] sm:$0xff]
    %v2745 = vld [vmem:[#allocation7 + $0x790] sm:$0xff]
    %v2746 = vld [vmem:[#allocation7 + $0x798] sm:$0xff]
    %v2747 = vld [vmem:[#allocation7 + $0x7a0] sm:$0xff]
    %v2748 = vld [vmem:[#allocation7 + $0x7a8] sm:$0xff]
    %v2749 = vld [vmem:[#allocation7 + $0x7b0] sm:$0xff]
    %v2750 = vld [vmem:[#allocation7 + $0x7b8] sm:$0xff]
    %v2751 = vld [vmem:[#allocation7 + $0x7c0] sm:$0xff]
    %v2752 = vld [vmem:[#allocation7 + $0x7c8] sm:$0xff]
    %v2753 = vld [vmem:[#allocation7 + $0x7d0] sm:$0xff]
    %v2754 = vld [vmem:[#allocation7 + $0x7d8] sm:$0xff]
    %v2755 = vld [vmem:[#allocation7 + $0x7e0] sm:$0xff]
    %v2756 = vld [vmem:[#allocation7 + $0x7e8] sm:$0xff]
    %v2757 = vld [vmem:[#allocation7 + $0x7f0] sm:$0xff]
    %v2758 = vld [vmem:[#allocation7 + $0x7f8] sm:$0xff]
    %v2759 = vld [vmem:[#allocation7 + $0x800] sm:$0xff]
    %v2760 = vld [vmem:[#allocation7 + $0x808] sm:$0xff]
    %v2761 = vld [vmem:[#allocation7 + $0x810] sm:$0xff]
    %v2762 = vld [vmem:[#allocation7 + $0x818] sm:$0xff]
    %v2763 = vld [vmem:[#allocation7 + $0x820] sm:$0xff]
    %v2764 = vld [vmem:[#allocation7 + $0x828] sm:$0xff]
    %v2765 = vld [vmem:[#allocation7 + $0x830] sm:$0xff]
    %v2766 = vld [vmem:[#allocation7 + $0x838] sm:$0xff]
    %v2767 = vld [vmem:[#allocation7 + $0x840] sm:$0xff]
    %v2768 = vld [vmem:[#allocation7 + $0x848] sm:$0xff]
    %v2769 = vld [vmem:[#allocation7 + $0x850] sm:$0xff]
    %v2770 = vld [vmem:[#allocation7 + $0x858] sm:$0xff]
    %v2771 = vld [vmem:[#allocation7 + $0x860] sm:$0xff]
    %v2772 = vld [vmem:[#allocation7 + $0x868] sm:$0xff]
    %v2773 = vld [vmem:[#allocation7 + $0x870] sm:$0xff]
    %v2774 = vld [vmem:[#allocation7 + $0x878] sm:$0xff]
    %v2775 = vld [vmem:[#allocation7 + $0x880] sm:$0xff]
    %v2776 = vld [vmem:[#allocation7 + $0x888] sm:$0xff]
    %v2777 = vld [vmem:[#allocation7 + $0x890] sm:$0xff]
    %v2778 = vld [vmem:[#allocation7 + $0x898] sm:$0xff]
    %v2779 = vld [vmem:[#allocation7 + $0x8a0] sm:$0xff]
    %v2780 = vld [vmem:[#allocation7 + $0x8a8] sm:$0xff]
    %v2781 = vld [vmem:[#allocation7 + $0x8b0] sm:$0xff]
    %v2782 = vld [vmem:[#allocation7 + $0x8b8] sm:$0xff]
    %v2783 = vld [vmem:[#allocation7 + $0x8c0] sm:$0xff]
    %v2784 = vld [vmem:[#allocation7 + $0x8c8] sm:$0xff]
    %v2785 = vld [vmem:[#allocation7 + $0x8d0] sm:$0xff]
    %v2786 = vld [vmem:[#allocation7 + $0x8d8] sm:$0xff]
    %v2787 = vld [vmem:[#allocation7 + $0x8e0] sm:$0xff]
    %v2788 = vld [vmem:[#allocation7 + $0x8e8] sm:$0xff]
    %v2789 = vld [vmem:[#allocation7 + $0x8f0] sm:$0xff]
    %v2790 = vld [vmem:[#allocation7 + $0x8f8] sm:$0xff]
    %v2791 = vld [vmem:[#allocation7 + $0x900] sm:$0xff]
    %v2792 = vld [vmem:[#allocation7 + $0x908] sm:$0xff]
    %v2793 = vld [vmem:[#allocation7 + $0x910] sm:$0xff]
    %v2794 = vld [vmem:[#allocation7 + $0x918] sm:$0xff]
    %v2795 = vld [vmem:[#allocation7 + $0x920] sm:$0xff]
    %v2796 = vld [vmem:[#allocation7 + $0x928] sm:$0xff]
    %v2797 = vld [vmem:[#allocation7 + $0x930] sm:$0xff]
    %v2798 = vld [vmem:[#allocation7 + $0x938] sm:$0xff]
    %v2799 = vld [vmem:[#allocation7 + $0x940] sm:$0xff]
    %v2800 = vld [vmem:[#allocation7 + $0x948] sm:$0xff]
    %v2801 = vld [vmem:[#allocation7 + $0x950] sm:$0xff]
    %v2802 = vld [vmem:[#allocation7 + $0x958] sm:$0xff]
    %v2803 = vld [vmem:[#allocation7 + $0x960] sm:$0xff]
    %v2804 = vld [vmem:[#allocation7 + $0x968] sm:$0xff]
    %v2805 = vld [vmem:[#allocation7 + $0x970] sm:$0xff]
    %v2806 = vld [vmem:[#allocation7 + $0x978] sm:$0xff]
    %v2807 = vld [vmem:[#allocation17] sm:$0x3]
    %v2809 = vlaneseq
    %v2810 = vshrl.u32 %v2809, 7
    %v2811 = vsub.s32 0, %v2810
    %v2812 = vrot.slane %v2807, %v2811
    %v2813 = vlaneseq
    %v2814 = vshrl.u32 %v2813, 7
    %v2815 = vsub.s32 1, %v2814
    %v2816 = vrot.slane %v2807, %v2815
    %v3123 = vunpack.c.l.b16 %v2503
    %v3124 = vunpack.c.h.b16 %v2503
    %v3125 = vunpack.c.l.b16 %v2504
    %v3126 = vunpack.c.h.b16 %v2504
    %v3127 = vunpack.c.l.b16 %v2505
    %v3128 = vunpack.c.h.b16 %v2505
    %v3129 = vunpack.c.l.b16 %v2506
    %v3130 = vunpack.c.h.b16 %v2506
    %v3131 = vunpack.c.l.b16 %v2507
    %v3132 = vunpack.c.h.b16 %v2507
    %v3133 = vunpack.c.l.b16 %v2508
    %v3134 = vunpack.c.h.b16 %v2508
    %v3135 = vunpack.c.l.b16 %v2509
    %v3136 = vunpack.c.h.b16 %v2509
    %v3137 = vunpack.c.l.b16 %v2510
    %v3138 = vunpack.c.h.b16 %v2510
    %v3139 = vunpack.c.l.b16 %v2511
    %v3140 = vunpack.c.h.b16 %v2511
    %v3141 = vunpack.c.l.b16 %v2512
    %v3142 = vunpack.c.h.b16 %v2512
    %v3143 = vunpack.c.l.b16 %v2513
    %v3144 = vunpack.c.h.b16 %v2513
    %v3145 = vunpack.c.l.b16 %v2514
    %v3146 = vunpack.c.h.b16 %v2514
    %v3147 = vunpack.c.l.b16 %v2515
    %v3148 = vunpack.c.h.b16 %v2515
    %v3149 = vunpack.c.l.b16 %v2516
    %v3150 = vunpack.c.h.b16 %v2516
    %v3151 = vunpack.c.l.b16 %v2517
    %v3152 = vunpack.c.h.b16 %v2517
    %v3153 = vunpack.c.l.b16 %v2518
    %v3154 = vunpack.c.h.b16 %v2518
    %v3155 = vunpack.c.l.b16 %v2519
    %v3156 = vunpack.c.h.b16 %v2519
    %v3157 = vunpack.c.l.b16 %v2520
    %v3158 = vunpack.c.h.b16 %v2520
    %v3159 = vunpack.c.l.b16 %v2521
    %v3160 = vunpack.c.h.b16 %v2521
    %v3161 = vunpack.c.l.b16 %v2522
    %v3162 = vunpack.c.h.b16 %v2522
    %v3163 = vunpack.c.l.b16 %v2523
    %v3164 = vunpack.c.h.b16 %v2523
    %v3165 = vunpack.c.l.b16 %v2524
    %v3166 = vunpack.c.h.b16 %v2524
    %v3167 = vunpack.c.l.b16 %v2525
    %v3168 = vunpack.c.h.b16 %v2525
    %v3169 = vunpack.c.l.b16 %v2526
    %v3170 = vunpack.c.h.b16 %v2526
    %v3171 = vunpack.c.l.b16 %v2527
    %v3172 = vunpack.c.h.b16 %v2527
    %v3173 = vunpack.c.l.b16 %v2528
    %v3174 = vunpack.c.h.b16 %v2528
    %v3175 = vunpack.c.l.b16 %v2529
    %v3176 = vunpack.c.h.b16 %v2529
    %v3177 = vunpack.c.l.b16 %v2530
    %v3178 = vunpack.c.h.b16 %v2530
    %v3179 = vunpack.c.l.b16 %v2531
    %v3180 = vunpack.c.h.b16 %v2531
    %v3181 = vunpack.c.l.b16 %v2532
    %v3182 = vunpack.c.h.b16 %v2532
    %v3183 = vunpack.c.l.b16 %v2533
    %v3184 = vunpack.c.h.b16 %v2533
    %v3185 = vunpack.c.l.b16 %v2534
    %v3186 = vunpack.c.h.b16 %v2534
    %v3187 = vunpack.c.l.b16 %v2535
    %v3188 = vunpack.c.h.b16 %v2535
    %v3189 = vunpack.c.l.b16 %v2536
    %v3190 = vunpack.c.h.b16 %v2536
    %v3191 = vunpack.c.l.b16 %v2537
    %v3192 = vunpack.c.h.b16 %v2537
    %v3193 = vunpack.c.l.b16 %v2538
    %v3194 = vunpack.c.h.b16 %v2538
    %v3195 = vunpack.c.l.b16 %v2539
    %v3196 = vunpack.c.h.b16 %v2539
    %v3197 = vunpack.c.l.b16 %v2540
    %v3198 = vunpack.c.h.b16 %v2540
    %v3199 = vunpack.c.l.b16 %v2541
    %v3200 = vunpack.c.h.b16 %v2541
    %v3201 = vunpack.c.l.b16 %v2542
    %v3202 = vunpack.c.h.b16 %v2542
    %v3203 = vunpack.c.l.b16 %v2543
    %v3204 = vunpack.c.h.b16 %v2543
    %v3205 = vunpack.c.l.b16 %v2544
    %v3206 = vunpack.c.h.b16 %v2544
    %v3207 = vunpack.c.l.b16 %v2545
    %v3208 = vunpack.c.h.b16 %v2545
    %v3209 = vunpack.c.l.b16 %v2546
    %v3210 = vunpack.c.h.b16 %v2546
    %v3211 = vunpack.c.l.b16 %v2547
    %v3212 = vunpack.c.h.b16 %v2547
    %v3213 = vunpack.c.l.b16 %v2548
    %v3214 = vunpack.c.h.b16 %v2548
    %v3215 = vunpack.c.l.b16 %v2549
    %v3216 = vunpack.c.h.b16 %v2549
    %v3217 = vunpack.c.l.b16 %v2550
    %v3218 = vunpack.c.h.b16 %v2550
    %v3219 = vunpack.c.l.b16 %v2551
    %v3220 = vunpack.c.h.b16 %v2551
    %v3221 = vunpack.c.l.b16 %v2552
    %v3222 = vunpack.c.h.b16 %v2552
    %v3223 = vunpack.c.l.b16 %v2553
    %v3224 = vunpack.c.h.b16 %v2553
    %v3225 = vunpack.c.l.b16 %v2554
    %v3226 = vunpack.c.h.b16 %v2554
    %v3227 = vunpack.c.l.b16 %v2555
    %v3228 = vunpack.c.h.b16 %v2555
    %v3229 = vunpack.c.l.b16 %v2556
    %v3230 = vunpack.c.h.b16 %v2556
    %v3231 = vunpack.c.l.b16 %v2557
    %v3232 = vunpack.c.h.b16 %v2557
    %v3233 = vunpack.c.l.b16 %v2558
    %v3234 = vunpack.c.h.b16 %v2558
    %v3235 = vunpack.c.l.b16 %v2559
    %v3236 = vunpack.c.h.b16 %v2559
    %v3237 = vunpack.c.l.b16 %v2560
    %v3238 = vunpack.c.h.b16 %v2560
    %v3239 = vunpack.c.l.b16 %v2561
    %v3240 = vunpack.c.h.b16 %v2561
    %v3241 = vunpack.c.l.b16 %v2562
    %v3242 = vunpack.c.h.b16 %v2562
    %v3243 = vunpack.c.l.b16 %v2563
    %v3244 = vunpack.c.h.b16 %v2563
    %v3245 = vunpack.c.l.b16 %v2564
    %v3246 = vunpack.c.h.b16 %v2564
    %v3247 = vunpack.c.l.b16 %v2565
    %v3248 = vunpack.c.h.b16 %v2565
    %v3249 = vunpack.c.l.b16 %v2566
    %v3250 = vunpack.c.h.b16 %v2566
    %v3251 = vunpack.c.l.b16 %v2567
    %v3252 = vunpack.c.h.b16 %v2567
    %v3253 = vunpack.c.l.b16 %v2568
    %v3254 = vunpack.c.h.b16 %v2568
    %v3255 = vunpack.c.l.b16 %v2569
    %v3256 = vunpack.c.h.b16 %v2569
    %v3257 = vunpack.c.l.b16 %v2570
    %v3258 = vunpack.c.h.b16 %v2570
    %v3259 = vunpack.c.l.b16 %v2571
    %v3260 = vunpack.c.h.b16 %v2571
    %v3261 = vunpack.c.l.b16 %v2572
    %v3262 = vunpack.c.h.b16 %v2572
    %v3263 = vunpack.c.l.b16 %v2573
    %v3264 = vunpack.c.h.b16 %v2573
    %v3265 = vunpack.c.l.b16 %v2574
    %v3266 = vunpack.c.h.b16 %v2574
    %v3267 = vunpack.c.l.b16 %v2575
    %v3268 = vunpack.c.h.b16 %v2575
    %v3269 = vunpack.c.l.b16 %v2576
    %v3270 = vunpack.c.h.b16 %v2576
    %v3271 = vunpack.c.l.b16 %v2577
    %v3272 = vunpack.c.h.b16 %v2577
    %v3273 = vunpack.c.l.b16 %v2578
    %v3274 = vunpack.c.h.b16 %v2578
    %v3275 = vunpack.c.l.b16 %v2579
    %v3276 = vunpack.c.h.b16 %v2579
    %v3277 = vunpack.c.l.b16 %v2580
    %v3278 = vunpack.c.h.b16 %v2580
    %v3279 = vunpack.c.l.b16 %v2581
    %v3280 = vunpack.c.h.b16 %v2581
    %v3281 = vunpack.c.l.b16 %v2582
    %v3282 = vunpack.c.h.b16 %v2582
    %v3283 = vunpack.c.l.b16 %v2583
    %v3284 = vunpack.c.h.b16 %v2583
    %v3285 = vunpack.c.l.b16 %v2584
    %v3286 = vunpack.c.h.b16 %v2584
    %v3287 = vunpack.c.l.b16 %v2585
    %v3288 = vunpack.c.h.b16 %v2585
    %v3289 = vunpack.c.l.b16 %v2586
    %v3290 = vunpack.c.h.b16 %v2586
    %v3291 = vunpack.c.l.b16 %v2587
    %v3292 = vunpack.c.h.b16 %v2587
    %v3293 = vunpack.c.l.b16 %v2588
    %v3294 = vunpack.c.h.b16 %v2588
    %v3295 = vunpack.c.l.b16 %v2589
    %v3296 = vunpack.c.h.b16 %v2589
    %v3297 = vunpack.c.l.b16 %v2590
    %v3298 = vunpack.c.h.b16 %v2590
    %v3299 = vunpack.c.l.b16 %v2591
    %v3300 = vunpack.c.h.b16 %v2591
    %v3301 = vunpack.c.l.b16 %v2592
    %v3302 = vunpack.c.h.b16 %v2592
    %v3303 = vunpack.c.l.b16 %v2593
    %v3304 = vunpack.c.h.b16 %v2593
    %v3305 = vunpack.c.l.b16 %v2594
    %v3306 = vunpack.c.h.b16 %v2594
    %v3307 = vunpack.c.l.b16 %v2595
    %v3308 = vunpack.c.h.b16 %v2595
    %v3309 = vunpack.c.l.b16 %v2596
    %v3310 = vunpack.c.h.b16 %v2596
    %v3311 = vunpack.c.l.b16 %v2597
    %v3312 = vunpack.c.h.b16 %v2597
    %v3313 = vunpack.c.l.b16 %v2598
    %v3314 = vunpack.c.h.b16 %v2598
    %v3315 = vunpack.c.l.b16 %v2599
    %v3316 = vunpack.c.h.b16 %v2599
    %v3317 = vunpack.c.l.b16 %v2600
    %v3318 = vunpack.c.h.b16 %v2600
    %v3319 = vunpack.c.l.b16 %v2601
    %v3320 = vunpack.c.h.b16 %v2601
    %v3321 = vunpack.c.l.b16 %v2602
    %v3322 = vunpack.c.h.b16 %v2602
    %v3323 = vunpack.c.l.b16 %v2603
    %v3324 = vunpack.c.h.b16 %v2603
    %v3325 = vunpack.c.l.b16 %v2604
    %v3326 = vunpack.c.h.b16 %v2604
    %v3327 = vunpack.c.l.b16 %v2605
    %v3328 = vunpack.c.h.b16 %v2605
    %v3329 = vunpack.c.l.b16 %v2606
    %v3330 = vunpack.c.h.b16 %v2606
    %v3331 = vunpack.c.l.b16 %v2607
    %v3332 = vunpack.c.h.b16 %v2607
    %v3333 = vunpack.c.l.b16 %v2608
    %v3334 = vunpack.c.h.b16 %v2608
    %v3335 = vunpack.c.l.b16 %v2609
    %v3336 = vunpack.c.h.b16 %v2609
    %v3337 = vunpack.c.l.b16 %v2610
    %v3338 = vunpack.c.h.b16 %v2610
    %v3339 = vunpack.c.l.b16 %v2611
    %v3340 = vunpack.c.h.b16 %v2611
    %v3341 = vunpack.c.l.b16 %v2612
    %v3342 = vunpack.c.h.b16 %v2612
    %v3343 = vunpack.c.l.b16 %v2613
    %v3344 = vunpack.c.h.b16 %v2613
    %v3345 = vunpack.c.l.b16 %v2614
    %v3346 = vunpack.c.h.b16 %v2614
    %v3347 = vunpack.c.l.b16 %v2615
    %v3348 = vunpack.c.h.b16 %v2615
    %v3349 = vunpack.c.l.b16 %v2616
    %v3350 = vunpack.c.h.b16 %v2616
    %v3351 = vunpack.c.l.b16 %v2617
    %v3352 = vunpack.c.h.b16 %v2617
    %v3353 = vunpack.c.l.b16 %v2618
    %v3354 = vunpack.c.h.b16 %v2618
    %v3355 = vunpack.c.l.b16 %v2619
    %v3356 = vunpack.c.h.b16 %v2619
    %v3357 = vunpack.c.l.b16 %v2620
    %v3358 = vunpack.c.h.b16 %v2620
    %v3359 = vunpack.c.l.b16 %v2621
    %v3360 = vunpack.c.h.b16 %v2621
    %v3361 = vunpack.c.l.b16 %v2622
    %v3362 = vunpack.c.h.b16 %v2622
    %v3363 = vunpack.c.l.b16 %v2623
    %v3364 = vunpack.c.h.b16 %v2623
    %v3365 = vunpack.c.l.b16 %v2624
    %v3366 = vunpack.c.h.b16 %v2624
    %v3367 = vunpack.c.l.b16 %v2625
    %v3368 = vunpack.c.h.b16 %v2625
    %v3369 = vunpack.c.l.b16 %v2626
    %v3370 = vunpack.c.h.b16 %v2626
    %v3371 = vunpack.c.l.b16 %v2627
    %v3372 = vunpack.c.h.b16 %v2627
    %v3373 = vunpack.c.l.b16 %v2628
    %v3374 = vunpack.c.h.b16 %v2628
    %v3375 = vunpack.c.l.b16 %v2629
    %v3376 = vunpack.c.h.b16 %v2629
    %v3377 = vunpack.c.l.b16 %v2630
    %v3378 = vunpack.c.h.b16 %v2630
    %v3379 = vunpack.c.l.b16 %v2631
    %v3380 = vunpack.c.h.b16 %v2631
    %v3381 = vunpack.c.l.b16 %v2632
    %v3382 = vunpack.c.h.b16 %v2632
    %v3383 = vunpack.c.l.b16 %v2633
    %v3384 = vunpack.c.h.b16 %v2633
    %v3385 = vunpack.c.l.b16 %v2634
    %v3386 = vunpack.c.h.b16 %v2634
    %v3387 = vunpack.c.l.b16 %v2635
    %v3388 = vunpack.c.h.b16 %v2635
    %v3389 = vunpack.c.l.b16 %v2636
    %v3390 = vunpack.c.h.b16 %v2636
    %v3391 = vunpack.c.l.b16 %v2637
    %v3392 = vunpack.c.h.b16 %v2637
    %v3393 = vunpack.c.l.b16 %v2638
    %v3394 = vunpack.c.h.b16 %v2638
    %v3395 = vunpack.c.l.b16 %v2639
    %v3396 = vunpack.c.h.b16 %v2639
    %v3397 = vunpack.c.l.b16 %v2640
    %v3398 = vunpack.c.h.b16 %v2640
    %v3399 = vunpack.c.l.b16 %v2641
    %v3400 = vunpack.c.h.b16 %v2641
    %v3401 = vunpack.c.l.b16 %v2642
    %v3402 = vunpack.c.h.b16 %v2642
    %v3403 = vunpack.c.l.b16 %v2643
    %v3404 = vunpack.c.h.b16 %v2643
    %v3405 = vunpack.c.l.b16 %v2644
    %v3406 = vunpack.c.h.b16 %v2644
    %v3407 = vunpack.c.l.b16 %v2645
    %v3408 = vunpack.c.h.b16 %v2645
    %v3409 = vunpack.c.l.b16 %v2646
    %v3410 = vunpack.c.h.b16 %v2646
    %v3411 = vunpack.c.l.b16 %v2647
    %v3412 = vunpack.c.h.b16 %v2647
    %v3413 = vunpack.c.l.b16 %v2648
    %v3414 = vunpack.c.h.b16 %v2648
    %v3415 = vunpack.c.l.b16 %v2649
    %v3416 = vunpack.c.h.b16 %v2649
    %v3417 = vunpack.c.l.b16 %v2650
    %v3418 = vunpack.c.h.b16 %v2650
    %v3419 = vunpack.c.l.b16 %v2651
    %v3420 = vunpack.c.h.b16 %v2651
    %v3421 = vunpack.c.l.b16 %v2652
    %v3422 = vunpack.c.h.b16 %v2652
    %v3423 = vunpack.c.l.b16 %v2653
    %v3424 = vunpack.c.h.b16 %v2653
    %v3425 = vunpack.c.l.b16 %v2654
    %v3426 = vunpack.c.h.b16 %v2654
    %v3427 = vunpack.c.l.b16 %v2655
    %v3428 = vunpack.c.h.b16 %v2655
    %v3429 = vunpack.c.l.b16 %v2656
    %v3430 = vunpack.c.h.b16 %v2656
    %v3431 = vunpack.c.l.b16 %v2657
    %v3432 = vunpack.c.h.b16 %v2657
    %v3433 = vunpack.c.l.b16 %v2658
    %v3434 = vunpack.c.h.b16 %v2658
    %v3435 = vunpack.c.l.b16 %v2659
    %v3436 = vunpack.c.h.b16 %v2659
    %v3437 = vunpack.c.l.b16 %v2660
    %v3438 = vunpack.c.h.b16 %v2660
    %v3439 = vunpack.c.l.b16 %v2661
    %v3440 = vunpack.c.h.b16 %v2661
    %v3441 = vunpack.c.l.b16 %v2662
    %v3442 = vunpack.c.h.b16 %v2662
    %v3443 = vunpack.c.l.b16 %v2663
    %v3444 = vunpack.c.h.b16 %v2663
    %v3445 = vunpack.c.l.b16 %v2664
    %v3446 = vunpack.c.h.b16 %v2664
    %v3447 = vunpack.c.l.b16 %v2665
    %v3448 = vunpack.c.h.b16 %v2665
    %v3449 = vunpack.c.l.b16 %v2666
    %v3450 = vunpack.c.h.b16 %v2666
    %v3451 = vunpack.c.l.b16 %v2667
    %v3452 = vunpack.c.h.b16 %v2667
    %v3453 = vunpack.c.l.b16 %v2668
    %v3454 = vunpack.c.h.b16 %v2668
    %v3455 = vunpack.c.l.b16 %v2669
    %v3456 = vunpack.c.h.b16 %v2669
    %v3457 = vunpack.c.l.b16 %v2670
    %v3458 = vunpack.c.h.b16 %v2670
    %v3459 = vunpack.c.l.b16 %v2671
    %v3460 = vunpack.c.h.b16 %v2671
    %v3461 = vunpack.c.l.b16 %v2672
    %v3462 = vunpack.c.h.b16 %v2672
    %v3463 = vunpack.c.l.b16 %v2673
    %v3464 = vunpack.c.h.b16 %v2673
    %v3465 = vunpack.c.l.b16 %v2674
    %v3466 = vunpack.c.h.b16 %v2674
    %v3467 = vunpack.c.l.b16 %v2675
    %v3468 = vunpack.c.h.b16 %v2675
    %v3469 = vunpack.c.l.b16 %v2676
    %v3470 = vunpack.c.h.b16 %v2676
    %v3471 = vunpack.c.l.b16 %v2677
    %v3472 = vunpack.c.h.b16 %v2677
    %v3473 = vunpack.c.l.b16 %v2678
    %v3474 = vunpack.c.h.b16 %v2678
    %v3475 = vunpack.c.l.b16 %v2679
    %v3476 = vunpack.c.h.b16 %v2679
    %v3477 = vunpack.c.l.b16 %v2680
    %v3478 = vunpack.c.h.b16 %v2680
    %v3479 = vunpack.c.l.b16 %v2681
    %v3480 = vunpack.c.h.b16 %v2681
    %v3481 = vunpack.c.l.b16 %v2682
    %v3482 = vunpack.c.h.b16 %v2682
    %v3483 = vunpack.c.l.b16 %v2683
    %v3484 = vunpack.c.h.b16 %v2683
    %v3485 = vunpack.c.l.b16 %v2684
    %v3486 = vunpack.c.h.b16 %v2684
    %v3487 = vunpack.c.l.b16 %v2685
    %v3488 = vunpack.c.h.b16 %v2685
    %v3489 = vunpack.c.l.b16 %v2686
    %v3490 = vunpack.c.h.b16 %v2686
    %v3491 = vunpack.c.l.b16 %v2687
    %v3492 = vunpack.c.h.b16 %v2687
    %v3493 = vunpack.c.l.b16 %v2688
    %v3494 = vunpack.c.h.b16 %v2688
    %v3495 = vunpack.c.l.b16 %v2689
    %v3496 = vunpack.c.h.b16 %v2689
    %v3497 = vunpack.c.l.b16 %v2690
    %v3498 = vunpack.c.h.b16 %v2690
    %v3499 = vunpack.c.l.b16 %v2691
    %v3500 = vunpack.c.h.b16 %v2691
    %v3501 = vunpack.c.l.b16 %v2692
    %v3502 = vunpack.c.h.b16 %v2692
    %v3503 = vunpack.c.l.b16 %v2693
    %v3504 = vunpack.c.h.b16 %v2693
    %v3505 = vunpack.c.l.b16 %v2694
    %v3506 = vunpack.c.h.b16 %v2694
    %v3507 = vunpack.c.l.b16 %v2695
    %v3508 = vunpack.c.h.b16 %v2695
    %v3509 = vunpack.c.l.b16 %v2696
    %v3510 = vunpack.c.h.b16 %v2696
    %v3511 = vunpack.c.l.b16 %v2697
    %v3512 = vunpack.c.h.b16 %v2697
    %v3513 = vunpack.c.l.b16 %v2698
    %v3514 = vunpack.c.h.b16 %v2698
    %v3515 = vunpack.c.l.b16 %v2699
    %v3516 = vunpack.c.h.b16 %v2699
    %v3517 = vunpack.c.l.b16 %v2700
    %v3518 = vunpack.c.h.b16 %v2700
    %v3519 = vunpack.c.l.b16 %v2701
    %v3520 = vunpack.c.h.b16 %v2701
    %v3521 = vunpack.c.l.b16 %v2702
    %v3522 = vunpack.c.h.b16 %v2702
    %v3523 = vunpack.c.l.b16 %v2703
    %v3524 = vunpack.c.h.b16 %v2703
    %v3525 = vunpack.c.l.b16 %v2704
    %v3526 = vunpack.c.h.b16 %v2704
    %v3527 = vunpack.c.l.b16 %v2705
    %v3528 = vunpack.c.h.b16 %v2705
    %v3529 = vunpack.c.l.b16 %v2706
    %v3530 = vunpack.c.h.b16 %v2706
    %v3531 = vunpack.c.l.b16 %v2707
    %v3532 = vunpack.c.h.b16 %v2707
    %v3533 = vunpack.c.l.b16 %v2708
    %v3534 = vunpack.c.h.b16 %v2708
    %v3535 = vunpack.c.l.b16 %v2709
    %v3536 = vunpack.c.h.b16 %v2709
    %v3537 = vunpack.c.l.b16 %v2710
    %v3538 = vunpack.c.h.b16 %v2710
    %v3539 = vunpack.c.l.b16 %v2711
    %v3540 = vunpack.c.h.b16 %v2711
    %v3541 = vunpack.c.l.b16 %v2712
    %v3542 = vunpack.c.h.b16 %v2712
    %v3543 = vunpack.c.l.b16 %v2713
    %v3544 = vunpack.c.h.b16 %v2713
    %v3545 = vunpack.c.l.b16 %v2714
    %v3546 = vunpack.c.h.b16 %v2714
    %v3547 = vunpack.c.l.b16 %v2715
    %v3548 = vunpack.c.h.b16 %v2715
    %v3549 = vunpack.c.l.b16 %v2716
    %v3550 = vunpack.c.h.b16 %v2716
    %v3551 = vunpack.c.l.b16 %v2717
    %v3552 = vunpack.c.h.b16 %v2717
    %v3553 = vunpack.c.l.b16 %v2718
    %v3554 = vunpack.c.h.b16 %v2718
    %v3555 = vunpack.c.l.b16 %v2719
    %v3556 = vunpack.c.h.b16 %v2719
    %v3557 = vunpack.c.l.b16 %v2720
    %v3558 = vunpack.c.h.b16 %v2720
    %v3559 = vunpack.c.l.b16 %v2721
    %v3560 = vunpack.c.h.b16 %v2721
    %v3561 = vunpack.c.l.b16 %v2722
    %v3562 = vunpack.c.h.b16 %v2722
    %v3563 = vunpack.c.l.b16 %v2723
    %v3564 = vunpack.c.h.b16 %v2723
    %v3565 = vunpack.c.l.b16 %v2724
    %v3566 = vunpack.c.h.b16 %v2724
    %v3567 = vunpack.c.l.b16 %v2725
    %v3568 = vunpack.c.h.b16 %v2725
    %v3569 = vunpack.c.l.b16 %v2726
    %v3570 = vunpack.c.h.b16 %v2726
    %v3571 = vunpack.c.l.b16 %v2727
    %v3572 = vunpack.c.h.b16 %v2727
    %v3573 = vunpack.c.l.b16 %v2728
    %v3574 = vunpack.c.h.b16 %v2728
    %v3575 = vunpack.c.l.b16 %v2729
    %v3576 = vunpack.c.h.b16 %v2729
    %v3577 = vunpack.c.l.b16 %v2730
    %v3578 = vunpack.c.h.b16 %v2730
    %v3579 = vunpack.c.l.b16 %v2731
    %v3580 = vunpack.c.h.b16 %v2731
    %v3581 = vunpack.c.l.b16 %v2732
    %v3582 = vunpack.c.h.b16 %v2732
    %v3583 = vunpack.c.l.b16 %v2733
    %v3584 = vunpack.c.h.b16 %v2733
    %v3585 = vunpack.c.l.b16 %v2734
    %v3586 = vunpack.c.h.b16 %v2734
    %v3587 = vunpack.c.l.b16 %v2735
    %v3588 = vunpack.c.h.b16 %v2735
    %v3589 = vunpack.c.l.b16 %v2736
    %v3590 = vunpack.c.h.b16 %v2736
    %v3591 = vunpack.c.l.b16 %v2737
    %v3592 = vunpack.c.h.b16 %v2737
    %v3593 = vunpack.c.l.b16 %v2738
    %v3594 = vunpack.c.h.b16 %v2738
    %v3595 = vunpack.c.l.b16 %v2739
    %v3596 = vunpack.c.h.b16 %v2739
    %v3597 = vunpack.c.l.b16 %v2740
    %v3598 = vunpack.c.h.b16 %v2740
    %v3599 = vunpack.c.l.b16 %v2741
    %v3600 = vunpack.c.h.b16 %v2741
    %v3601 = vunpack.c.l.b16 %v2742
    %v3602 = vunpack.c.h.b16 %v2742
    %v3603 = vunpack.c.l.b16 %v2743
    %v3604 = vunpack.c.h.b16 %v2743
    %v3605 = vunpack.c.l.b16 %v2744
    %v3606 = vunpack.c.h.b16 %v2744
    %v3607 = vunpack.c.l.b16 %v2745
    %v3608 = vunpack.c.h.b16 %v2745
    %v3609 = vunpack.c.l.b16 %v2746
    %v3610 = vunpack.c.h.b16 %v2746
    %v3611 = vunpack.c.l.b16 %v2747
    %v3612 = vunpack.c.h.b16 %v2747
    %v3613 = vunpack.c.l.b16 %v2748
    %v3614 = vunpack.c.h.b16 %v2748
    %v3615 = vunpack.c.l.b16 %v2749
    %v3616 = vunpack.c.h.b16 %v2749
    %v3617 = vunpack.c.l.b16 %v2750
    %v3618 = vunpack.c.h.b16 %v2750
    %v3619 = vunpack.c.l.b16 %v2751
    %v3620 = vunpack.c.h.b16 %v2751
    %v3621 = vunpack.c.l.b16 %v2752
    %v3622 = vunpack.c.h.b16 %v2752
    %v3623 = vunpack.c.l.b16 %v2753
    %v3624 = vunpack.c.h.b16 %v2753
    %v3625 = vunpack.c.l.b16 %v2754
    %v3626 = vunpack.c.h.b16 %v2754
    %v3627 = vunpack.c.l.b16 %v2755
    %v3628 = vunpack.c.h.b16 %v2755
    %v3629 = vunpack.c.l.b16 %v2756
    %v3630 = vunpack.c.h.b16 %v2756
    %v3631 = vunpack.c.l.b16 %v2757
    %v3632 = vunpack.c.h.b16 %v2757
    %v3633 = vunpack.c.l.b16 %v2758
    %v3634 = vunpack.c.h.b16 %v2758
    %v3635 = vunpack.c.l.b16 %v2759
    %v3636 = vunpack.c.h.b16 %v2759
    %v3637 = vunpack.c.l.b16 %v2760
    %v3638 = vunpack.c.h.b16 %v2760
    %v3639 = vunpack.c.l.b16 %v2761
    %v3640 = vunpack.c.h.b16 %v2761
    %v3641 = vunpack.c.l.b16 %v2762
    %v3642 = vunpack.c.h.b16 %v2762
    %v3643 = vunpack.c.l.b16 %v2763
    %v3644 = vunpack.c.h.b16 %v2763
    %v3645 = vunpack.c.l.b16 %v2764
    %v3646 = vunpack.c.h.b16 %v2764
    %v3647 = vunpack.c.l.b16 %v2765
    %v3648 = vunpack.c.h.b16 %v2765
    %v3649 = vunpack.c.l.b16 %v2766
    %v3650 = vunpack.c.h.b16 %v2766
    %v3651 = vunpack.c.l.b16 %v2767
    %v3652 = vunpack.c.h.b16 %v2767
    %v3653 = vunpack.c.l.b16 %v2768
    %v3654 = vunpack.c.h.b16 %v2768
    %v3655 = vunpack.c.l.b16 %v2769
    %v3656 = vunpack.c.h.b16 %v2769
    %v3657 = vunpack.c.l.b16 %v2770
    %v3658 = vunpack.c.h.b16 %v2770
    %v3659 = vunpack.c.l.b16 %v2771
    %v3660 = vunpack.c.h.b16 %v2771
    %v3661 = vunpack.c.l.b16 %v2772
    %v3662 = vunpack.c.h.b16 %v2772
    %v3663 = vunpack.c.l.b16 %v2773
    %v3664 = vunpack.c.h.b16 %v2773
    %v3665 = vunpack.c.l.b16 %v2774
    %v3666 = vunpack.c.h.b16 %v2774
    %v3667 = vunpack.c.l.b16 %v2775
    %v3668 = vunpack.c.h.b16 %v2775
    %v3669 = vunpack.c.l.b16 %v2776
    %v3670 = vunpack.c.h.b16 %v2776
    %v3671 = vunpack.c.l.b16 %v2777
    %v3672 = vunpack.c.h.b16 %v2777
    %v3673 = vunpack.c.l.b16 %v2778
    %v3674 = vunpack.c.h.b16 %v2778
    %v3675 = vunpack.c.l.b16 %v2779
    %v3676 = vunpack.c.h.b16 %v2779
    %v3677 = vunpack.c.l.b16 %v2780
    %v3678 = vunpack.c.h.b16 %v2780
    %v3679 = vunpack.c.l.b16 %v2781
    %v3680 = vunpack.c.h.b16 %v2781
    %v3681 = vunpack.c.l.b16 %v2782
    %v3682 = vunpack.c.h.b16 %v2782
    %v3683 = vunpack.c.l.b16 %v2783
    %v3684 = vunpack.c.h.b16 %v2783
    %v3685 = vunpack.c.l.b16 %v2784
    %v3686 = vunpack.c.h.b16 %v2784
    %v3687 = vunpack.c.l.b16 %v2785
    %v3688 = vunpack.c.h.b16 %v2785
    %v3689 = vunpack.c.l.b16 %v2786
    %v3690 = vunpack.c.h.b16 %v2786
    %v3691 = vunpack.c.l.b16 %v2787
    %v3692 = vunpack.c.h.b16 %v2787
    %v3693 = vunpack.c.l.b16 %v2788
    %v3694 = vunpack.c.h.b16 %v2788
    %v3695 = vunpack.c.l.b16 %v2789
    %v3696 = vunpack.c.h.b16 %v2789
    %v3697 = vunpack.c.l.b16 %v2790
    %v3698 = vunpack.c.h.b16 %v2790
    %v3699 = vunpack.c.l.b16 %v2791
    %v3700 = vunpack.c.h.b16 %v2791
    %v3701 = vunpack.c.l.b16 %v2792
    %v3702 = vunpack.c.h.b16 %v2792
    %v3703 = vunpack.c.l.b16 %v2793
    %v3704 = vunpack.c.h.b16 %v2793
    %v3705 = vunpack.c.l.b16 %v2794
    %v3706 = vunpack.c.h.b16 %v2794
    %v3707 = vunpack.c.l.b16 %v2795
    %v3708 = vunpack.c.h.b16 %v2795
    %v3709 = vunpack.c.l.b16 %v2796
    %v3710 = vunpack.c.h.b16 %v2796
    %v3711 = vunpack.c.l.b16 %v2797
    %v3712 = vunpack.c.h.b16 %v2797
    %v3713 = vunpack.c.l.b16 %v2798
    %v3714 = vunpack.c.h.b16 %v2798
    %v3715 = vunpack.c.l.b16 %v2799
    %v3716 = vunpack.c.h.b16 %v2799
    %v3717 = vunpack.c.l.b16 %v2800
    %v3718 = vunpack.c.h.b16 %v2800
    %v3719 = vunpack.c.l.b16 %v2801
    %v3720 = vunpack.c.h.b16 %v2801
    %v3721 = vunpack.c.l.b16 %v2802
    %v3722 = vunpack.c.h.b16 %v2802
    %v3723 = vunpack.c.l.b16 %v2803
    %v3724 = vunpack.c.h.b16 %v2803
    %v3725 = vunpack.c.l.b16 %v2804
    %v3726 = vunpack.c.h.b16 %v2804
    %v3727 = vunpack.c.l.b16 %v2805
    %v3728 = vunpack.c.h.b16 %v2805
    %v3729 = vunpack.c.l.b16 %v2806
    %v3730 = vunpack.c.h.b16 %v2806
    %v3731 = vpack.c.b16 %v3125, %v3123
    %v3732 = vpack.c.b16 %v3126, %v3124
    %v3733 = vpack.c.b16 %v3129, %v3127
    %v3734 = vpack.c.b16 %v3130, %v3128
    %v3735 = vpack.c.b16 %v3133, %v3131
    %v3736 = vpack.c.b16 %v3134, %v3132
    %v3737 = vpack.c.b16 %v3137, %v3135
    %v3738 = vpack.c.b16 %v3138, %v3136
    %v3739 = vpack.c.b16 %v3141, %v3139
    %v3740 = vpack.c.b16 %v3142, %v3140
    %v3741 = vpack.c.b16 %v3145, %v3143
    %v3742 = vpack.c.b16 %v3146, %v3144
    %v3743 = vpack.c.b16 %v3149, %v3147
    %v3744 = vpack.c.b16 %v3150, %v3148
    %v3745 = vpack.c.b16 %v3153, %v3151
    %v3746 = vpack.c.b16 %v3154, %v3152
    %v3747 = vpack.c.b16 %v3157, %v3155
    %v3748 = vpack.c.b16 %v3158, %v3156
    %v3749 = vpack.c.b16 %v3161, %v3159
    %v3750 = vpack.c.b16 %v3162, %v3160
    %v3751 = vpack.c.b16 %v3165, %v3163
    %v3752 = vpack.c.b16 %v3166, %v3164
    %v3753 = vpack.c.b16 %v3169, %v3167
    %v3754 = vpack.c.b16 %v3170, %v3168
    %v3755 = vpack.c.b16 %v3173, %v3171
    %v3756 = vpack.c.b16 %v3174, %v3172
    %v3757 = vpack.c.b16 %v3177, %v3175
    %v3758 = vpack.c.b16 %v3178, %v3176
    %v3759 = vpack.c.b16 %v3181, %v3179
    %v3760 = vpack.c.b16 %v3182, %v3180
    %v3761 = vpack.c.b16 %v3185, %v3183
    %v3762 = vpack.c.b16 %v3186, %v3184
    %v3763 = vpack.c.b16 %v3189, %v3187
    %v3764 = vpack.c.b16 %v3190, %v3188
    %v3765 = vpack.c.b16 %v3193, %v3191
    %v3766 = vpack.c.b16 %v3194, %v3192
    %v3767 = vpack.c.b16 %v3197, %v3195
    %v3768 = vpack.c.b16 %v3198, %v3196
    %v3769 = vpack.c.b16 %v3201, %v3199
    %v3770 = vpack.c.b16 %v3202, %v3200
    %v3771 = vpack.c.b16 %v3205, %v3203
    %v3772 = vpack.c.b16 %v3206, %v3204
    %v3773 = vpack.c.b16 %v3209, %v3207
    %v3774 = vpack.c.b16 %v3210, %v3208
    %v3775 = vpack.c.b16 %v3213, %v3211
    %v3776 = vpack.c.b16 %v3214, %v3212
    %v3777 = vpack.c.b16 %v3217, %v3215
    %v3778 = vpack.c.b16 %v3218, %v3216
    %v3779 = vpack.c.b16 %v3221, %v3219
    %v3780 = vpack.c.b16 %v3222, %v3220
    %v3781 = vpack.c.b16 %v3225, %v3223
    %v3782 = vpack.c.b16 %v3226, %v3224
    %v3783 = vpack.c.b16 %v3229, %v3227
    %v3784 = vpack.c.b16 %v3230, %v3228
    %v3785 = vpack.c.b16 %v3233, %v3231
    %v3786 = vpack.c.b16 %v3234, %v3232
    %v3787 = vpack.c.b16 %v3237, %v3235
    %v3788 = vpack.c.b16 %v3238, %v3236
    %v3789 = vpack.c.b16 %v3241, %v3239
    %v3790 = vpack.c.b16 %v3242, %v3240
    %v3791 = vpack.c.b16 %v3245, %v3243
    %v3792 = vpack.c.b16 %v3246, %v3244
    %v3793 = vpack.c.b16 %v3249, %v3247
    %v3794 = vpack.c.b16 %v3250, %v3248
    %v3795 = vpack.c.b16 %v3253, %v3251
    %v3796 = vpack.c.b16 %v3254, %v3252
    %v3797 = vpack.c.b16 %v3257, %v3255
    %v3798 = vpack.c.b16 %v3258, %v3256
    %v3799 = vpack.c.b16 %v3261, %v3259
    %v3800 = vpack.c.b16 %v3262, %v3260
    %v3801 = vpack.c.b16 %v3265, %v3263
    %v3802 = vpack.c.b16 %v3266, %v3264
    %v3803 = vpack.c.b16 %v3269, %v3267
    %v3804 = vpack.c.b16 %v3270, %v3268
    %v3805 = vpack.c.b16 %v3273, %v3271
    %v3806 = vpack.c.b16 %v3274, %v3272
    %v3807 = vpack.c.b16 %v3277, %v3275
    %v3808 = vpack.c.b16 %v3278, %v3276
    %v3809 = vpack.c.b16 %v3281, %v3279
    %v3810 = vpack.c.b16 %v3282, %v3280
    %v3811 = vpack.c.b16 %v3285, %v3283
    %v3812 = vpack.c.b16 %v3286, %v3284
    %v3813 = vpack.c.b16 %v3289, %v3287
    %v3814 = vpack.c.b16 %v3290, %v3288
    %v3815 = vpack.c.b16 %v3293, %v3291
    %v3816 = vpack.c.b16 %v3294, %v3292
    %v3817 = vpack.c.b16 %v3297, %v3295
    %v3818 = vpack.c.b16 %v3298, %v3296
    %v3819 = vpack.c.b16 %v3301, %v3299
    %v3820 = vpack.c.b16 %v3302, %v3300
    %v3821 = vpack.c.b16 %v3305, %v3303
    %v3822 = vpack.c.b16 %v3306, %v3304
    %v3823 = vpack.c.b16 %v3309, %v3307
    %v3824 = vpack.c.b16 %v3310, %v3308
    %v3825 = vpack.c.b16 %v3313, %v3311
    %v3826 = vpack.c.b16 %v3314, %v3312
    %v3827 = vpack.c.b16 %v3317, %v3315
    %v3828 = vpack.c.b16 %v3318, %v3316
    %v3829 = vpack.c.b16 %v3321, %v3319
    %v3830 = vpack.c.b16 %v3322, %v3320
    %v3831 = vpack.c.b16 %v3325, %v3323
    %v3832 = vpack.c.b16 %v3326, %v3324
    %v3833 = vpack.c.b16 %v3329, %v3327
    %v3834 = vpack.c.b16 %v3330, %v3328
    %v3835 = vpack.c.b16 %v3333, %v3331
    %v3836 = vpack.c.b16 %v3334, %v3332
    %v3837 = vpack.c.b16 %v3337, %v3335
    %v3838 = vpack.c.b16 %v3338, %v3336
    %v3839 = vpack.c.b16 %v3341, %v3339
    %v3840 = vpack.c.b16 %v3342, %v3340
    %v3841 = vpack.c.b16 %v3345, %v3343
    %v3842 = vpack.c.b16 %v3346, %v3344
    %v3843 = vpack.c.b16 %v3349, %v3347
    %v3844 = vpack.c.b16 %v3350, %v3348
    %v3845 = vpack.c.b16 %v3353, %v3351
    %v3846 = vpack.c.b16 %v3354, %v3352
    %v3847 = vpack.c.b16 %v3357, %v3355
    %v3848 = vpack.c.b16 %v3358, %v3356
    %v3849 = vpack.c.b16 %v3361, %v3359
    %v3850 = vpack.c.b16 %v3362, %v3360
    %v3851 = vpack.c.b16 %v3365, %v3363
    %v3852 = vpack.c.b16 %v3366, %v3364
    %v3853 = vpack.c.b16 %v3369, %v3367
    %v3854 = vpack.c.b16 %v3370, %v3368
    %v3855 = vpack.c.b16 %v3373, %v3371
    %v3856 = vpack.c.b16 %v3374, %v3372
    %v3857 = vpack.c.b16 %v3377, %v3375
    %v3858 = vpack.c.b16 %v3378, %v3376
    %v3859 = vpack.c.b16 %v3381, %v3379
    %v3860 = vpack.c.b16 %v3382, %v3380
    %v3861 = vpack.c.b16 %v3385, %v3383
    %v3862 = vpack.c.b16 %v3386, %v3384
    %v3863 = vpack.c.b16 %v3389, %v3387
    %v3864 = vpack.c.b16 %v3390, %v3388
    %v3865 = vpack.c.b16 %v3393, %v3391
    %v3866 = vpack.c.b16 %v3394, %v3392
    %v3867 = vpack.c.b16 %v3397, %v3395
    %v3868 = vpack.c.b16 %v3398, %v3396
    %v3869 = vpack.c.b16 %v3401, %v3399
    %v3870 = vpack.c.b16 %v3402, %v3400
    %v3871 = vpack.c.b16 %v3405, %v3403
    %v3872 = vpack.c.b16 %v3406, %v3404
    %v3873 = vpack.c.b16 %v3409, %v3407
    %v3874 = vpack.c.b16 %v3410, %v3408
    %v3875 = vpack.c.b16 %v3413, %v3411
    %v3876 = vpack.c.b16 %v3414, %v3412
    %v3877 = vpack.c.b16 %v3417, %v3415
    %v3878 = vpack.c.b16 %v3418, %v3416
    %v3879 = vpack.c.b16 %v3421, %v3419
    %v3880 = vpack.c.b16 %v3422, %v3420
    %v3881 = vpack.c.b16 %v3425, %v3423
    %v3882 = vpack.c.b16 %v3426, %v3424
    %v3883 = vpack.c.b16 %v3429, %v3427
    %v3884 = vpack.c.b16 %v3430, %v3428
    %v3885 = vpack.c.b16 %v3433, %v3431
    %v3886 = vpack.c.b16 %v3434, %v3432
    %v3887 = vpack.c.b16 %v3437, %v3435
    %v3888 = vpack.c.b16 %v3438, %v3436
    %v3889 = vpack.c.b16 %v3441, %v3439
    %v3890 = vpack.c.b16 %v3442, %v3440
    %v3891 = vpack.c.b16 %v3445, %v3443
    %v3892 = vpack.c.b16 %v3446, %v3444
    %v3893 = vpack.c.b16 %v3449, %v3447
    %v3894 = vpack.c.b16 %v3450, %v3448
    %v3895 = vpack.c.b16 %v3453, %v3451
    %v3896 = vpack.c.b16 %v3454, %v3452
    %v3897 = vpack.c.b16 %v3457, %v3455
    %v3898 = vpack.c.b16 %v3458, %v3456
    %v3899 = vpack.c.b16 %v3461, %v3459
    %v3900 = vpack.c.b16 %v3462, %v3460
    %v3901 = vpack.c.b16 %v3465, %v3463
    %v3902 = vpack.c.b16 %v3466, %v3464
    %v3903 = vpack.c.b16 %v3469, %v3467
    %v3904 = vpack.c.b16 %v3470, %v3468
    %v3905 = vpack.c.b16 %v3473, %v3471
    %v3906 = vpack.c.b16 %v3474, %v3472
    %v3907 = vpack.c.b16 %v3477, %v3475
    %v3908 = vpack.c.b16 %v3478, %v3476
    %v3909 = vpack.c.b16 %v3481, %v3479
    %v3910 = vpack.c.b16 %v3482, %v3480
    %v3911 = vpack.c.b16 %v3485, %v3483
    %v3912 = vpack.c.b16 %v3486, %v3484
    %v3913 = vpack.c.b16 %v3489, %v3487
    %v3914 = vpack.c.b16 %v3490, %v3488
    %v3915 = vpack.c.b16 %v3493, %v3491
    %v3916 = vpack.c.b16 %v3494, %v3492
    %v3917 = vpack.c.b16 %v3497, %v3495
    %v3918 = vpack.c.b16 %v3498, %v3496
    %v3919 = vpack.c.b16 %v3501, %v3499
    %v3920 = vpack.c.b16 %v3502, %v3500
    %v3921 = vpack.c.b16 %v3505, %v3503
    %v3922 = vpack.c.b16 %v3506, %v3504
    %v3923 = vpack.c.b16 %v3509, %v3507
    %v3924 = vpack.c.b16 %v3510, %v3508
    %v3925 = vpack.c.b16 %v3513, %v3511
    %v3926 = vpack.c.b16 %v3514, %v3512
    %v3927 = vpack.c.b16 %v3517, %v3515
    %v3928 = vpack.c.b16 %v3518, %v3516
    %v3929 = vpack.c.b16 %v3521, %v3519
    %v3930 = vpack.c.b16 %v3522, %v3520
    %v3931 = vpack.c.b16 %v3525, %v3523
    %v3932 = vpack.c.b16 %v3526, %v3524
    %v3933 = vpack.c.b16 %v3529, %v3527
    %v3934 = vpack.c.b16 %v3530, %v3528
    %v3935 = vpack.c.b16 %v3533, %v3531
    %v3936 = vpack.c.b16 %v3534, %v3532
    %v3937 = vpack.c.b16 %v3537, %v3535
    %v3938 = vpack.c.b16 %v3538, %v3536
    %v3939 = vpack.c.b16 %v3541, %v3539
    %v3940 = vpack.c.b16 %v3542, %v3540
    %v3941 = vpack.c.b16 %v3545, %v3543
    %v3942 = vpack.c.b16 %v3546, %v3544
    %v3943 = vpack.c.b16 %v3549, %v3547
    %v3944 = vpack.c.b16 %v3550, %v3548
    %v3945 = vpack.c.b16 %v3553, %v3551
    %v3946 = vpack.c.b16 %v3554, %v3552
    %v3947 = vpack.c.b16 %v3557, %v3555
    %v3948 = vpack.c.b16 %v3558, %v3556
    %v3949 = vpack.c.b16 %v3561, %v3559
    %v3950 = vpack.c.b16 %v3562, %v3560
    %v3951 = vpack.c.b16 %v3565, %v3563
    %v3952 = vpack.c.b16 %v3566, %v3564
    %v3953 = vpack.c.b16 %v3569, %v3567
    %v3954 = vpack.c.b16 %v3570, %v3568
    %v3955 = vpack.c.b16 %v3573, %v3571
    %v3956 = vpack.c.b16 %v3574, %v3572
    %v3957 = vpack.c.b16 %v3577, %v3575
    %v3958 = vpack.c.b16 %v3578, %v3576
    %v3959 = vpack.c.b16 %v3581, %v3579
    %v3960 = vpack.c.b16 %v3582, %v3580
    %v3961 = vpack.c.b16 %v3585, %v3583
    %v3962 = vpack.c.b16 %v3586, %v3584
    %v3963 = vpack.c.b16 %v3589, %v3587
    %v3964 = vpack.c.b16 %v3590, %v3588
    %v3965 = vpack.c.b16 %v3593, %v3591
    %v3966 = vpack.c.b16 %v3594, %v3592
    %v3967 = vpack.c.b16 %v3597, %v3595
    %v3968 = vpack.c.b16 %v3598, %v3596
    %v3969 = vpack.c.b16 %v3601, %v3599
    %v3970 = vpack.c.b16 %v3602, %v3600
    %v3971 = vpack.c.b16 %v3605, %v3603
    %v3972 = vpack.c.b16 %v3606, %v3604
    %v3973 = vpack.c.b16 %v3609, %v3607
    %v3974 = vpack.c.b16 %v3610, %v3608
    %v3975 = vpack.c.b16 %v3613, %v3611
    %v3976 = vpack.c.b16 %v3614, %v3612
    %v3977 = vpack.c.b16 %v3617, %v3615
    %v3978 = vpack.c.b16 %v3618, %v3616
    %v3979 = vpack.c.b16 %v3621, %v3619
    %v3980 = vpack.c.b16 %v3622, %v3620
    %v3981 = vpack.c.b16 %v3625, %v3623
    %v3982 = vpack.c.b16 %v3626, %v3624
    %v3983 = vpack.c.b16 %v3629, %v3627
    %v3984 = vpack.c.b16 %v3630, %v3628
    %v3985 = vpack.c.b16 %v3633, %v3631
    %v3986 = vpack.c.b16 %v3634, %v3632
    %v3987 = vpack.c.b16 %v3637, %v3635
    %v3988 = vpack.c.b16 %v3638, %v3636
    %v3989 = vpack.c.b16 %v3641, %v3639
    %v3990 = vpack.c.b16 %v3642, %v3640
    %v3991 = vpack.c.b16 %v3645, %v3643
    %v3992 = vpack.c.b16 %v3646, %v3644
    %v3993 = vpack.c.b16 %v3649, %v3647
    %v3994 = vpack.c.b16 %v3650, %v3648
    %v3995 = vpack.c.b16 %v3653, %v3651
    %v3996 = vpack.c.b16 %v3654, %v3652
    %v3997 = vpack.c.b16 %v3657, %v3655
    %v3998 = vpack.c.b16 %v3658, %v3656
    %v3999 = vpack.c.b16 %v3661, %v3659
    %v4000 = vpack.c.b16 %v3662, %v3660
    %v4001 = vpack.c.b16 %v3665, %v3663
    %v4002 = vpack.c.b16 %v3666, %v3664
    %v4003 = vpack.c.b16 %v3669, %v3667
    %v4004 = vpack.c.b16 %v3670, %v3668
    %v4005 = vpack.c.b16 %v3673, %v3671
    %v4006 = vpack.c.b16 %v3674, %v3672
    %v4007 = vpack.c.b16 %v3677, %v3675
    %v4008 = vpack.c.b16 %v3678, %v3676
    %v4009 = vpack.c.b16 %v3681, %v3679
    %v4010 = vpack.c.b16 %v3682, %v3680
    %v4011 = vpack.c.b16 %v3685, %v3683
    %v4012 = vpack.c.b16 %v3686, %v3684
    %v4013 = vpack.c.b16 %v3689, %v3687
    %v4014 = vpack.c.b16 %v3690, %v3688
    %v4015 = vpack.c.b16 %v3693, %v3691
    %v4016 = vpack.c.b16 %v3694, %v3692
    %v4017 = vpack.c.b16 %v3697, %v3695
    %v4018 = vpack.c.b16 %v3698, %v3696
    %v4019 = vpack.c.b16 %v3701, %v3699
    %v4020 = vpack.c.b16 %v3702, %v3700
    %v4021 = vpack.c.b16 %v3705, %v3703
    %v4022 = vpack.c.b16 %v3706, %v3704
    %v4023 = vpack.c.b16 %v3709, %v3707
    %v4024 = vpack.c.b16 %v3710, %v3708
    %v4025 = vpack.c.b16 %v3713, %v3711
    %v4026 = vpack.c.b16 %v3714, %v3712
    %v4027 = vpack.c.b16 %v3717, %v3715
    %v4028 = vpack.c.b16 %v3718, %v3716
    %v4029 = vpack.c.b16 %v3721, %v3719
    %v4030 = vpack.c.b16 %v3722, %v3720
    %v4031 = vpack.c.b16 %v3725, %v3723
    %v4032 = vpack.c.b16 %v3726, %v3724
    %v4033 = vpack.c.b16 %v3729, %v3727
    %v4034 = vpack.c.b16 %v3730, %v3728
    %4339 = vmatprep.subr.bf16.mxu0 %v3746
    %4340 = vmatpush1.bf16.msra.mxu0 %v3745
    %4341 = vmatprep.subr.bf16.mxu0 %v3744
    %4342 = vmatpush1.bf16.msra.mxu0 %v3743
    %4343 = vmatprep.subr.bf16.mxu0 %v3742
    %4344 = vmatpush1.bf16.msra.mxu0 %v3741
    %4345 = vmatprep.subr.bf16.mxu0 %v3740
    %4346 = vmatpush1.bf16.msra.mxu0 %v3739
    %4347 = vmatprep.subr.bf16.mxu0 %v3738
    %4348 = vmatpush1.bf16.msra.mxu0 %v3737
    %4349 = vmatprep.subr.bf16.mxu0 %v3736
    %4350 = vmatpush1.bf16.msra.mxu0 %v3735
    %4351 = vmatprep.subr.bf16.mxu0 %v3734
    %4352 = vmatpush1.bf16.msra.mxu0 %v3733
    %4353 = vmatprep.subr.bf16.mxu0 %v3732
    %4354 = vmatpush1.bf16.msra.mxu0 %v3731
    %4355 = vmatprep.subr.bf16.mxu0 %v3762
    %4356 = vmatpush2.bf16.msra.mxu0 %v3761
    %4357 = vmatprep.subr.bf16.mxu0 %v3760
    %4358 = vmatpush2.bf16.msra.mxu0 %v3759
    %4359 = vmatprep.subr.bf16.mxu0 %v3758
    %4360 = vmatpush2.bf16.msra.mxu0 %v3757
    %4361 = vmatprep.subr.bf16.mxu0 %v3756
    %4362 = vmatpush2.bf16.msra.mxu0 %v3755
    %4363 = vmatprep.subr.bf16.mxu0 %v3754
    %4364 = vmatpush2.bf16.msra.mxu0 %v3753
    %4365 = vmatprep.subr.bf16.mxu0 %v3752
    %4366 = vmatpush2.bf16.msra.mxu0 %v3751
    %4367 = vmatprep.subr.bf16.mxu0 %v3750
    %4368 = vmatpush2.bf16.msra.mxu0 %v3749
    %4369 = vmatprep.subr.bf16.mxu0 %v3748
    %4370 = vmatpush2.bf16.msra.mxu0 %v3747
    %4371 = vmatprep.mubr.bf16.mxu0 %v2257
    %4372 = vmatmul.mubr.bf16.gmra.mxu0 %v2256
    %v4373 = vpop.f32.mrf.mxu0
    %v4374 = vadd.f32 %v2812, %v4373
    %v4375 = vpop.f32.mrf.mxu0
    %v4376 = vadd.f32 %v2816, %v4375
    %v4377 = vpop.f32.mrf.mxu0
    %v4378 = vadd.f32 %v2812, %v4377
    %v4379 = vpop.f32.mrf.mxu0
    %v4380 = vadd.f32 %v2816, %v4379
    %4381 = vmatprep.mubr.bf16.mxu0 %v2259
    %4382 = vmatmul.mubr.bf16.gmra.mxu0 %v2258
    %v4383 = vpop.f32.mrf.mxu0
    %v4384 = vadd.f32 %v2812, %v4383
    %v4385 = vpop.f32.mrf.mxu0
    %v4386 = vadd.f32 %v2816, %v4385
    %v4387 = vpop.f32.mrf.mxu0
    %v4388 = vadd.f32 %v2812, %v4387
    %v4389 = vpop.f32.mrf.mxu0
    %v4390 = vadd.f32 %v2816, %v4389
    %4391 = vdwg.mxu0
    %4392 = vmatprep.subr.bf16.mxu0 %v3778
    %4393 = vmatpush1.bf16.msra.mxu0 %v3777
    %4394 = vmatprep.subr.bf16.mxu0 %v3776
    %4395 = vmatpush1.bf16.msra.mxu0 %v3775
    %4396 = vmatprep.subr.bf16.mxu0 %v3774
    %4397 = vmatpush1.bf16.msra.mxu0 %v3773
    %4398 = vmatprep.subr.bf16.mxu0 %v3772
    %4399 = vmatpush1.bf16.msra.mxu0 %v3771
    %4400 = vmatprep.subr.bf16.mxu0 %v3770
    %4401 = vmatpush1.bf16.msra.mxu0 %v3769
    %4402 = vmatprep.subr.bf16.mxu0 %v3768
    %4403 = vmatpush1.bf16.msra.mxu0 %v3767
    %4404 = vmatprep.subr.bf16.mxu0 %v3766
    %4405 = vmatpush1.bf16.msra.mxu0 %v3765
    %4406 = vmatprep.subr.bf16.mxu0 %v3764
    %4407 = vmatpush1.bf16.msra.mxu0 %v3763
    %4408 = vmatprep.subr.bf16.mxu0 %v3794
    %4409 = vmatpush2.bf16.msra.mxu0 %v3793
    %4410 = vmatprep.subr.bf16.mxu0 %v3792
    %4411 = vmatpush2.bf16.msra.mxu0 %v3791
    %4412 = vmatprep.subr.bf16.mxu0 %v3790
    %4413 = vmatpush2.bf16.msra.mxu0 %v3789
    %4414 = vmatprep.subr.bf16.mxu0 %v3788
    %4415 = vmatpush2.bf16.msra.mxu0 %v3787
    %4416 = vmatprep.subr.bf16.mxu0 %v3786
    %4417 = vmatpush2.bf16.msra.mxu0 %v3785
    %4418 = vmatprep.subr.bf16.mxu0 %v3784
    %4419 = vmatpush2.bf16.msra.mxu0 %v3783
    %4420 = vmatprep.subr.bf16.mxu0 %v3782
    %4421 = vmatpush2.bf16.msra.mxu0 %v3781
    %4422 = vmatprep.subr.bf16.mxu0 %v3780
    %4423 = vmatpush2.bf16.msra.mxu0 %v3779
    %4424 = vmatprep.mubr.bf16.mxu0 %v2383
    %4425 = vmatmul.mubr.bf16.gmra.mxu0 %v2382
    %v4426 = vpop.f32.mrf.mxu0
    %v4427 = vadd.f32 %v4374, %v4426
    %v4428 = vpop.f32.mrf.mxu0
    %v4429 = vadd.f32 %v4376, %v4428
    %v4430 = vpop.f32.mrf.mxu0
    %v4431 = vadd.f32 %v4378, %v4430
    %v4432 = vpop.f32.mrf.mxu0
    %v4433 = vadd.f32 %v4380, %v4432
    %4434 = vmatprep.mubr.bf16.mxu0 %v2385
    %4435 = vmatmul.mubr.bf16.gmra.mxu0 %v2384
    %v4436 = vpop.f32.mrf.mxu0
    %v4437 = vadd.f32 %v4384, %v4436
    %v4438 = vpop.f32.mrf.mxu0
    %v4439 = vadd.f32 %v4386, %v4438
    %v4440 = vpop.f32.mrf.mxu0
    %v4441 = vadd.f32 %v4388, %v4440
    %v4442 = vpop.f32.mrf.mxu0
    %v4443 = vadd.f32 %v4390, %v4442
    %4444 = vdwg.mxu0
    %4445 = vmatprep.subr.bf16.mxu0 %v3810
    %4446 = vmatpush1.bf16.msra.mxu0 %v3809
    %4447 = vmatprep.subr.bf16.mxu0 %v3808
    %4448 = vmatpush1.bf16.msra.mxu0 %v3807
    %4449 = vmatprep.subr.bf16.mxu0 %v3806
    %4450 = vmatpush1.bf16.msra.mxu0 %v3805
    %4451 = vmatprep.subr.bf16.mxu0 %v3804
    %4452 = vmatpush1.bf16.msra.mxu0 %v3803
    %4453 = vmatprep.subr.bf16.mxu0 %v3802
    %4454 = vmatpush1.bf16.msra.mxu0 %v3801
    %4455 = vmatprep.subr.bf16.mxu0 %v3800
    %4456 = vmatpush1.bf16.msra.mxu0 %v3799
    %4457 = vmatprep.subr.bf16.mxu0 %v3798
    %4458 = vmatpush1.bf16.msra.mxu0 %v3797
    %4459 = vmatprep.subr.bf16.mxu0 %v3796
    %4460 = vmatpush1.bf16.msra.mxu0 %v3795
    %4461 = vmatprep.subr.bf16.mxu0 %v3826
    %4462 = vmatpush2.bf16.msra.mxu0 %v3825
    %4463 = vmatprep.subr.bf16.mxu0 %v3824
    %4464 = vmatpush2.bf16.msra.mxu0 %v3823
    %4465 = vmatprep.subr.bf16.mxu0 %v3822
    %4466 = vmatpush2.bf16.msra.mxu0 %v3821
    %4467 = vmatprep.subr.bf16.mxu0 %v3820
    %4468 = vmatpush2.bf16.msra.mxu0 %v3819
    %4469 = vmatprep.subr.bf16.mxu0 %v3818
    %4470 = vmatpush2.bf16.msra.mxu0 %v3817
    %4471 = vmatprep.subr.bf16.mxu0 %v3816
    %4472 = vmatpush2.bf16.msra.mxu0 %v3815
    %4473 = vmatprep.subr.bf16.mxu0 %v3814
    %4474 = vmatpush2.bf16.msra.mxu0 %v3813
    %4475 = vmatprep.subr.bf16.mxu0 %v3812
    %4476 = vmatpush2.bf16.msra.mxu0 %v3811
    %4477 = vmatprep.mubr.bf16.mxu0 %v2404
    %4478 = vmatmul.mubr.bf16.gmra.mxu0 %v2403
    %v4479 = vpop.f32.mrf.mxu0
    %v4480 = vadd.f32 %v4427, %v4479
    %v4481 = vpop.f32.mrf.mxu0
    %v4482 = vadd.f32 %v4429, %v4481
    %v4483 = vpop.f32.mrf.mxu0
    %v4484 = vadd.f32 %v4431, %v4483
    %v4485 = vpop.f32.mrf.mxu0
    %v4486 = vadd.f32 %v4433, %v4485
    %4487 = vmatprep.mubr.bf16.mxu0 %v2406
    %4488 = vmatmul.mubr.bf16.gmra.mxu0 %v2405
    %v4489 = vpop.f32.mrf.mxu0
    %v4490 = vadd.f32 %v4437, %v4489
    %v4491 = vpop.f32.mrf.mxu0
    %v4492 = vadd.f32 %v4439, %v4491
    %v4493 = vpop.f32.mrf.mxu0
    %v4494 = vadd.f32 %v4441, %v4493
    %v4495 = vpop.f32.mrf.mxu0
    %v4496 = vadd.f32 %v4443, %v4495
    %4497 = vdwg.mxu0
    %4498 = vmatprep.subr.bf16.mxu0 %v3842
    %4499 = vmatpush1.bf16.msra.mxu0 %v3841
    %4500 = vmatprep.subr.bf16.mxu0 %v3840
    %4501 = vmatpush1.bf16.msra.mxu0 %v3839
    %4502 = vmatprep.subr.bf16.mxu0 %v3838
    %4503 = vmatpush1.bf16.msra.mxu0 %v3837
    %4504 = vmatprep.subr.bf16.mxu0 %v3836
    %4505 = vmatpush1.bf16.msra.mxu0 %v3835
    %4506 = vmatprep.subr.bf16.mxu0 %v3834
    %4507 = vmatpush1.bf16.msra.mxu0 %v3833
    %4508 = vmatprep.subr.bf16.mxu0 %v3832
    %4509 = vmatpush1.bf16.msra.mxu0 %v3831
    %4510 = vmatprep.subr.bf16.mxu0 %v3830
    %4511 = vmatpush1.bf16.msra.mxu0 %v3829
    %4512 = vmatprep.subr.bf16.mxu0 %v3828
    %4513 = vmatpush1.bf16.msra.mxu0 %v3827
    %4514 = vmatprep.subr.bf16.mxu0 %v3858
    %4515 = vmatpush2.bf16.msra.mxu0 %v3857
    %4516 = vmatprep.subr.bf16.mxu0 %v3856
    %4517 = vmatpush2.bf16.msra.mxu0 %v3855
    %4518 = vmatprep.subr.bf16.mxu0 %v3854
    %4519 = vmatpush2.bf16.msra.mxu0 %v3853
    %4520 = vmatprep.subr.bf16.mxu0 %v3852
    %4521 = vmatpush2.bf16.msra.mxu0 %v3851
    %4522 = vmatprep.subr.bf16.mxu0 %v3850
    %4523 = vmatpush2.bf16.msra.mxu0 %v3849
    %4524 = vmatprep.subr.bf16.mxu0 %v3848
    %4525 = vmatpush2.bf16.msra.mxu0 %v3847
    %4526 = vmatprep.subr.bf16.mxu0 %v3846
    %4527 = vmatpush2.bf16.msra.mxu0 %v3845
    %4528 = vmatprep.subr.bf16.mxu0 %v3844
    %4529 = vmatpush2.bf16.msra.mxu0 %v3843
    %4530 = vmatprep.mubr.bf16.mxu0 %v2303
    %4531 = vmatmul.mubr.bf16.gmra.mxu0 %v2302
    %v4532 = vpop.f32.mrf.mxu0
    %v4533 = vadd.f32 %v4480, %v4532
    %v4534 = vpop.f32.mrf.mxu0
    %v4535 = vadd.f32 %v4482, %v4534
    %v4536 = vpop.f32.mrf.mxu0
    %v4537 = vadd.f32 %v4484, %v4536
    %v4538 = vpop.f32.mrf.mxu0
    %v4539 = vadd.f32 %v4486, %v4538
    %4540 = vmatprep.mubr.bf16.mxu0 %v2305
    %4541 = vmatmul.mubr.bf16.gmra.mxu0 %v2304
    %v4542 = vpop.f32.mrf.mxu0
    %v4543 = vadd.f32 %v4490, %v4542
    %v4544 = vpop.f32.mrf.mxu0
    %v4545 = vadd.f32 %v4492, %v4544
    %v4546 = vpop.f32.mrf.mxu0
    %v4547 = vadd.f32 %v4494, %v4546
    %v4548 = vpop.f32.mrf.mxu0
    %v4549 = vadd.f32 %v4496, %v4548
    %4550 = vdwg.mxu0
    %4551 = vmatprep.subr.bf16.mxu0 %v3874
    %4552 = vmatpush1.bf16.msra.mxu0 %v3873
    %4553 = vmatprep.subr.bf16.mxu0 %v3872
    %4554 = vmatpush1.bf16.msra.mxu0 %v3871
    %4555 = vmatprep.subr.bf16.mxu0 %v3870
    %4556 = vmatpush1.bf16.msra.mxu0 %v3869
    %4557 = vmatprep.subr.bf16.mxu0 %v3868
    %4558 = vmatpush1.bf16.msra.mxu0 %v3867
    %4559 = vmatprep.subr.bf16.mxu0 %v3866
    %4560 = vmatpush1.bf16.msra.mxu0 %v3865
    %4561 = vmatprep.subr.bf16.mxu0 %v3864
    %4562 = vmatpush1.bf16.msra.mxu0 %v3863
    %4563 = vmatprep.subr.bf16.mxu0 %v3862
    %4564 = vmatpush1.bf16.msra.mxu0 %v3861
    %4565 = vmatprep.subr.bf16.mxu0 %v3860
    %4566 = vmatpush1.bf16.msra.mxu0 %v3859
    %4567 = vmatprep.subr.bf16.mxu0 %v3890
    %4568 = vmatpush2.bf16.msra.mxu0 %v3889
    %4569 = vmatprep.subr.bf16.mxu0 %v3888
    %4570 = vmatpush2.bf16.msra.mxu0 %v3887
    %4571 = vmatprep.subr.bf16.mxu0 %v3886
    %4572 = vmatpush2.bf16.msra.mxu0 %v3885
    %4573 = vmatprep.subr.bf16.mxu0 %v3884
    %4574 = vmatpush2.bf16.msra.mxu0 %v3883
    %4575 = vmatprep.subr.bf16.mxu0 %v3882
    %4576 = vmatpush2.bf16.msra.mxu0 %v3881
    %4577 = vmatprep.subr.bf16.mxu0 %v3880
    %4578 = vmatpush2.bf16.msra.mxu0 %v3879
    %4579 = vmatprep.subr.bf16.mxu0 %v3878
    %4580 = vmatpush2.bf16.msra.mxu0 %v3877
    %4581 = vmatprep.subr.bf16.mxu0 %v3876
    %4582 = vmatpush2.bf16.msra.mxu0 %v3875
    %4583 = vmatprep.mubr.bf16.mxu0 %v2430
    %4584 = vmatmul.mubr.bf16.gmra.mxu0 %v2429
    %v4585 = vpop.f32.mrf.mxu0
    %v4586 = vadd.f32 %v4533, %v4585
    %v4587 = vpop.f32.mrf.mxu0
    %v4588 = vadd.f32 %v4535, %v4587
    %v4589 = vpop.f32.mrf.mxu0
    %v4590 = vadd.f32 %v4537, %v4589
    %v4591 = vpop.f32.mrf.mxu0
    %v4592 = vadd.f32 %v4539, %v4591
    %4593 = vmatprep.mubr.bf16.mxu0 %v2432
    %4594 = vmatmul.mubr.bf16.gmra.mxu0 %v2431
    %v4595 = vpop.f32.mrf.mxu0
    %v4596 = vadd.f32 %v4543, %v4595
    %v4597 = vpop.f32.mrf.mxu0
    %v4598 = vadd.f32 %v4545, %v4597
    %v4599 = vpop.f32.mrf.mxu0
    %v4600 = vadd.f32 %v4547, %v4599
    %v4601 = vpop.f32.mrf.mxu0
    %v4602 = vadd.f32 %v4549, %v4601
    %4603 = vdwg.mxu0
    %4604 = vmatprep.subr.bf16.mxu0 %v3906
    %4605 = vmatpush1.bf16.msra.mxu0 %v3905
    %4606 = vmatprep.subr.bf16.mxu0 %v3904
    %4607 = vmatpush1.bf16.msra.mxu0 %v3903
    %4608 = vmatprep.subr.bf16.mxu0 %v3902
    %4609 = vmatpush1.bf16.msra.mxu0 %v3901
    %4610 = vmatprep.subr.bf16.mxu0 %v3900
    %4611 = vmatpush1.bf16.msra.mxu0 %v3899
    %4612 = vmatprep.subr.bf16.mxu0 %v3898
    %4613 = vmatpush1.bf16.msra.mxu0 %v3897
    %4614 = vmatprep.subr.bf16.mxu0 %v3896
    %4615 = vmatpush1.bf16.msra.mxu0 %v3895
    %4616 = vmatprep.subr.bf16.mxu0 %v3894
    %4617 = vmatpush1.bf16.msra.mxu0 %v3893
    %4618 = vmatprep.subr.bf16.mxu0 %v3892
    %4619 = vmatpush1.bf16.msra.mxu0 %v3891
    %4620 = vmatprep.subr.bf16.mxu0 %v3922
    %4621 = vmatpush2.bf16.msra.mxu0 %v3921
    %4622 = vmatprep.subr.bf16.mxu0 %v3920
    %4623 = vmatpush2.bf16.msra.mxu0 %v3919
    %4624 = vmatprep.subr.bf16.mxu0 %v3918
    %4625 = vmatpush2.bf16.msra.mxu0 %v3917
    %4626 = vmatprep.subr.bf16.mxu0 %v3916
    %4627 = vmatpush2.bf16.msra.mxu0 %v3915
    %4628 = vmatprep.subr.bf16.mxu0 %v3914
    %4629 = vmatpush2.bf16.msra.mxu0 %v3913
    %4630 = vmatprep.subr.bf16.mxu0 %v3912
    %4631 = vmatpush2.bf16.msra.mxu0 %v3911
    %4632 = vmatprep.subr.bf16.mxu0 %v3910
    %4633 = vmatpush2.bf16.msra.mxu0 %v3909
    %4634 = vmatprep.subr.bf16.mxu0 %v3908
    %4635 = vmatpush2.bf16.msra.mxu0 %v3907
    %4636 = vmatprep.mubr.bf16.mxu0 %v2450
    %4637 = vmatmul.mubr.bf16.gmra.mxu0 %v2449
    %v4638 = vpop.f32.mrf.mxu0
    %v4639 = vadd.f32 %v4586, %v4638
    %v4640 = vpop.f32.mrf.mxu0
    %v4641 = vadd.f32 %v4588, %v4640
    %v4642 = vpop.f32.mrf.mxu0
    %v4643 = vadd.f32 %v4590, %v4642
    %v4644 = vpop.f32.mrf.mxu0
    %v4645 = vadd.f32 %v4592, %v4644
    %4646 = vmatprep.mubr.bf16.mxu0 %v2452
    %4647 = vmatmul.mubr.bf16.gmra.mxu0 %v2451
    %v4648 = vpop.f32.mrf.mxu0
    %v4649 = vadd.f32 %v4596, %v4648
    %v4650 = vpop.f32.mrf.mxu0
    %v4651 = vadd.f32 %v4598, %v4650
    %v4652 = vpop.f32.mrf.mxu0
    %v4653 = vadd.f32 %v4600, %v4652
    %v4654 = vpop.f32.mrf.mxu0
    %v4655 = vadd.f32 %v4602, %v4654
    %4656 = vdwg.mxu0
    %4657 = vmatprep.subr.bf16.mxu0 %v3938
    %4658 = vmatpush1.bf16.msra.mxu0 %v3937
    %4659 = vmatprep.subr.bf16.mxu0 %v3936
    %4660 = vmatpush1.bf16.msra.mxu0 %v3935
    %4661 = vmatprep.subr.bf16.mxu0 %v3934
    %4662 = vmatpush1.bf16.msra.mxu0 %v3933
    %4663 = vmatprep.subr.bf16.mxu0 %v3932
    %4664 = vmatpush1.bf16.msra.mxu0 %v3931
    %4665 = vmatprep.subr.bf16.mxu0 %v3930
    %4666 = vmatpush1.bf16.msra.mxu0 %v3929
    %4667 = vmatprep.subr.bf16.mxu0 %v3928
    %4668 = vmatpush1.bf16.msra.mxu0 %v3927
    %4669 = vmatprep.subr.bf16.mxu0 %v3926
    %4670 = vmatpush1.bf16.msra.mxu0 %v3925
    %4671 = vmatprep.subr.bf16.mxu0 %v3924
    %4672 = vmatpush1.bf16.msra.mxu0 %v3923
    %4673 = vmatprep.subr.bf16.mxu0 %v3954
    %4674 = vmatpush2.bf16.msra.mxu0 %v3953
    %4675 = vmatprep.subr.bf16.mxu0 %v3952
    %4676 = vmatpush2.bf16.msra.mxu0 %v3951
    %4677 = vmatprep.subr.bf16.mxu0 %v3950
    %4678 = vmatpush2.bf16.msra.mxu0 %v3949
    %4679 = vmatprep.subr.bf16.mxu0 %v3948
    %4680 = vmatpush2.bf16.msra.mxu0 %v3947
    %4681 = vmatprep.subr.bf16.mxu0 %v3946
    %4682 = vmatpush2.bf16.msra.mxu0 %v3945
    %4683 = vmatprep.subr.bf16.mxu0 %v3944
    %4684 = vmatpush2.bf16.msra.mxu0 %v3943
    %4685 = vmatprep.subr.bf16.mxu0 %v3942
    %4686 = vmatpush2.bf16.msra.mxu0 %v3941
    %4687 = vmatprep.subr.bf16.mxu0 %v3940
    %4688 = vmatpush2.bf16.msra.mxu0 %v3939
    %4689 = vmatprep.mubr.bf16.mxu0 %v2357
    %4690 = vmatmul.mubr.bf16.gmra.mxu0 %v2356
    %v4691 = vpop.f32.mrf.mxu0
    %v4692 = vadd.f32 %v4639, %v4691
    %v4693 = vpop.f32.mrf.mxu0
    %v4694 = vadd.f32 %v4641, %v4693
    %v4695 = vpop.f32.mrf.mxu0
    %v4696 = vadd.f32 %v4643, %v4695
    %v4697 = vpop.f32.mrf.mxu0
    %v4698 = vadd.f32 %v4645, %v4697
    %4699 = vmatprep.mubr.bf16.mxu0 %v2359
    %4700 = vmatmul.mubr.bf16.gmra.mxu0 %v2358
    %v4701 = vpop.f32.mrf.mxu0
    %v4702 = vadd.f32 %v4649, %v4701
    %v4703 = vpop.f32.mrf.mxu0
    %v4704 = vadd.f32 %v4651, %v4703
    %v4705 = vpop.f32.mrf.mxu0
    %v4706 = vadd.f32 %v4653, %v4705
    %v4707 = vpop.f32.mrf.mxu0
    %v4708 = vadd.f32 %v4655, %v4707
    %4709 = vdwg.mxu0
    %4710 = vmatprep.subr.bf16.mxu0 %v3970
    %4711 = vmatpush1.bf16.msra.mxu0 %v3969
    %4712 = vmatprep.subr.bf16.mxu0 %v3968
    %4713 = vmatpush1.bf16.msra.mxu0 %v3967
    %4714 = vmatprep.subr.bf16.mxu0 %v3966
    %4715 = vmatpush1.bf16.msra.mxu0 %v3965
    %4716 = vmatprep.subr.bf16.mxu0 %v3964
    %4717 = vmatpush1.bf16.msra.mxu0 %v3963
    %4718 = vmatprep.subr.bf16.mxu0 %v3962
    %4719 = vmatpush1.bf16.msra.mxu0 %v3961
    %4720 = vmatprep.subr.bf16.mxu0 %v3960
    %4721 = vmatpush1.bf16.msra.mxu0 %v3959
    %4722 = vmatprep.subr.bf16.mxu0 %v3958
    %4723 = vmatpush1.bf16.msra.mxu0 %v3957
    %4724 = vmatprep.subr.bf16.mxu0 %v3956
    %4725 = vmatpush1.bf16.msra.mxu0 %v3955
    %4726 = vmatprep.subr.bf16.mxu0 %v3986
    %4727 = vmatpush2.bf16.msra.mxu0 %v3985
    %4728 = vmatprep.subr.bf16.mxu0 %v3984
    %4729 = vmatpush2.bf16.msra.mxu0 %v3983
    %4730 = vmatprep.subr.bf16.mxu0 %v3982
    %4731 = vmatpush2.bf16.msra.mxu0 %v3981
    %4732 = vmatprep.subr.bf16.mxu0 %v3980
    %4733 = vmatpush2.bf16.msra.mxu0 %v3979
    %4734 = vmatprep.subr.bf16.mxu0 %v3978
    %4735 = vmatpush2.bf16.msra.mxu0 %v3977
    %4736 = vmatprep.subr.bf16.mxu0 %v3976
    %4737 = vmatpush2.bf16.msra.mxu0 %v3975
    %4738 = vmatprep.subr.bf16.mxu0 %v3974
    %4739 = vmatpush2.bf16.msra.mxu0 %v3973
    %4740 = vmatprep.subr.bf16.mxu0 %v3972
    %4741 = vmatpush2.bf16.msra.mxu0 %v3971
    %4742 = vmatprep.mubr.bf16.mxu0 %v2476
    %4743 = vmatmul.mubr.bf16.gmra.mxu0 %v2475
    %v4744 = vpop.f32.mrf.mxu0
    %v4745 = vadd.f32 %v4692, %v4744
    %v4746 = vpop.f32.mrf.mxu0
    %v4747 = vadd.f32 %v4694, %v4746
    %v4748 = vpop.f32.mrf.mxu0
    %v4749 = vadd.f32 %v4696, %v4748
    %v4750 = vpop.f32.mrf.mxu0
    %v4751 = vadd.f32 %v4698, %v4750
    %4752 = vmatprep.mubr.bf16.mxu0 %v2478
    %4753 = vmatmul.mubr.bf16.gmra.mxu0 %v2477
    %v4754 = vpop.f32.mrf.mxu0
    %v4755 = vadd.f32 %v4702, %v4754
    %v4756 = vpop.f32.mrf.mxu0
    %v4757 = vadd.f32 %v4704, %v4756
    %v4758 = vpop.f32.mrf.mxu0
    %v4759 = vadd.f32 %v4706, %v4758
    %v4760 = vpop.f32.mrf.mxu0
    %v4761 = vadd.f32 %v4708, %v4760
    %4762 = vdwg.mxu0
    %4763 = vmatprep.subr.bf16.mxu0 %v4002
    %4764 = vmatpush1.bf16.msra.mxu0 %v4001
    %4765 = vmatprep.subr.bf16.mxu0 %v4000
    %4766 = vmatpush1.bf16.msra.mxu0 %v3999
    %4767 = vmatprep.subr.bf16.mxu0 %v3998
    %4768 = vmatpush1.bf16.msra.mxu0 %v3997
    %4769 = vmatprep.subr.bf16.mxu0 %v3996
    %4770 = vmatpush1.bf16.msra.mxu0 %v3995
    %4771 = vmatprep.subr.bf16.mxu0 %v3994
    %4772 = vmatpush1.bf16.msra.mxu0 %v3993
    %4773 = vmatprep.subr.bf16.mxu0 %v3992
    %4774 = vmatpush1.bf16.msra.mxu0 %v3991
    %4775 = vmatprep.subr.bf16.mxu0 %v3990
    %4776 = vmatpush1.bf16.msra.mxu0 %v3989
    %4777 = vmatprep.subr.bf16.mxu0 %v3988
    %4778 = vmatpush1.bf16.msra.mxu0 %v3987
    %4779 = vmatprep.subr.bf16.mxu0 %v4018
    %4780 = vmatpush2.bf16.msra.mxu0 %v4017
    %4781 = vmatprep.subr.bf16.mxu0 %v4016
    %4782 = vmatpush2.bf16.msra.mxu0 %v4015
    %4783 = vmatprep.subr.bf16.mxu0 %v4014
    %4784 = vmatpush2.bf16.msra.mxu0 %v4013
    %4785 = vmatprep.subr.bf16.mxu0 %v4012
    %4786 = vmatpush2.bf16.msra.mxu0 %v4011
    %4787 = vmatprep.subr.bf16.mxu0 %v4010
    %4788 = vmatpush2.bf16.msra.mxu0 %v4009
    %4789 = vmatprep.subr.bf16.mxu0 %v4008
    %4790 = vmatpush2.bf16.msra.mxu0 %v4007
    %4791 = vmatprep.subr.bf16.mxu0 %v4006
    %4792 = vmatpush2.bf16.msra.mxu0 %v4005
    %4793 = vmatprep.subr.bf16.mxu0 %v4004
    %4794 = vmatpush2.bf16.msra.mxu0 %v4003
    %4795 = vmatprep.mubr.bf16.mxu0 %v2496
    %4796 = vmatmul.mubr.bf16.gmra.mxu0 %v2495
    %v4797 = vpop.f32.mrf.mxu0
    %v4798 = vadd.f32 %v4745, %v4797
    %v4799 = vpop.f32.mrf.mxu0
    %v4800 = vadd.f32 %v4747, %v4799
    %v4801 = vpop.f32.mrf.mxu0
    %v4802 = vadd.f32 %v4749, %v4801
    %v4803 = vpop.f32.mrf.mxu0
    %v4804 = vadd.f32 %v4751, %v4803
    %4805 = vmatprep.mubr.bf16.mxu0 %v2498
    %4806 = vmatmul.mubr.bf16.gmra.mxu0 %v2497
    %v4807 = vpop.f32.mrf.mxu0
    %v4808 = vadd.f32 %v4755, %v4807
    %v4809 = vpop.f32.mrf.mxu0
    %v4810 = vadd.f32 %v4757, %v4809
    %v4811 = vpop.f32.mrf.mxu0
    %v4812 = vadd.f32 %v4759, %v4811
    %v4813 = vpop.f32.mrf.mxu0
    %v4814 = vadd.f32 %v4761, %v4813
    %4815 = vdwg.mxu0
    %4816 = vmatprep.subr.bf16.mxu0 %v4034
    %4817 = vmatpush1.bf16.msra.mxu0 %v4033
    %4818 = vmatprep.subr.bf16.mxu0 %v4032
    %4819 = vmatpush1.bf16.msra.mxu0 %v4031
    %4820 = vmatprep.subr.bf16.mxu0 %v4030
    %4821 = vmatpush1.bf16.msra.mxu0 %v4029
    %4822 = vmatprep.subr.bf16.mxu0 %v4028
    %4823 = vmatpush1.bf16.msra.mxu0 %v4027
    %4824 = vmatprep.subr.bf16.mxu0 %v4026
    %4825 = vmatpush1.bf16.msra.mxu0 %v4025
    %4826 = vmatprep.subr.bf16.mxu0 %v4024
    %4827 = vmatpush1.bf16.msra.mxu0 %v4023
    %4828 = vmatprep.subr.bf16.mxu0 %v4022
    %4829 = vmatpush1.bf16.msra.mxu0 %v4021
    %4830 = vmatprep.subr.bf16.mxu0 %v4020
    %4831 = vmatpush1.bf16.msra.mxu0 %v4019
    %4832 = vmatprep.subr.bf16.mxu0 0
    %4833 = vmatpush2.bf16.msra.mxu0 0
    %4834 = vmatprep.subr.bf16.mxu0 0
    %4835 = vmatpush2.bf16.msra.mxu0 0
    %4836 = vmatprep.subr.bf16.mxu0 0
    %4837 = vmatpush2.bf16.msra.mxu0 0
    %4838 = vmatprep.subr.bf16.mxu0 0
    %4839 = vmatpush2.bf16.msra.mxu0 0
    %4840 = vmatprep.subr.bf16.mxu0 0
    %4841 = vmatpush2.bf16.msra.mxu0 0
    %4842 = vmatprep.subr.bf16.mxu0 0
    %4843 = vmatpush2.bf16.msra.mxu0 0
    %4844 = vmatprep.subr.bf16.mxu0 0
    %4845 = vmatpush2.bf16.msra.mxu0 0
    %4846 = vmatprep.subr.bf16.mxu0 0
    %4847 = vmatpush2.bf16.msra.mxu0 0
    %4848 = vmatprep.mubr.bf16.mxu0 0
    %4849 = vmatmul.mubr.bf16.gmra.mxu0 %v2362
    %v4850 = vpop.f32.mrf.mxu0
    %v4851 = vadd.f32 %v4798, %v4850
    %v4852 = vpop.f32.mrf.mxu0
    %v4853 = vadd.f32 %v4800, %v4852
    %v4854 = vpop.f32.mrf.mxu0
    %v4855 = vadd.f32 %v4802, %v4854
    %v4856 = vpop.f32.mrf.mxu0
    %v4857 = vadd.f32 %v4804, %v4856
    %4858 = vmatprep.mubr.bf16.mxu0 0
    %4859 = vmatmul.mubr.bf16.gmra.mxu0 %v2363
    %v4860 = vpop.f32.mrf.mxu0
    %v4861 = vadd.f32 %v4808, %v4860
    %v4862 = vpop.f32.mrf.mxu0
    %v4863 = vadd.f32 %v4810, %v4862
    %v4864 = vpop.f32.mrf.mxu0
    %v4865 = vadd.f32 %v4812, %v4864
    %v4866 = vpop.f32.mrf.mxu0
    %v4867 = vadd.f32 %v4814, %v4866
    %4868 = vdwg.mxu0
    %4869 = vst [vmem:[#allocation19] sm:$0xff] %v4851
    %4870 = vst [vmem:[#allocation19 + $0x8] sm:$0xff] %v4853
    %4871 = vst [vmem:[#allocation19 + $0x10] sm:$0xff] %v4855
    %4872 = vst [vmem:[#allocation19 + $0x18] sm:$0xff] %v4857
    %4873 = vst [vmem:[#allocation19 + $0x20] sm:$0xff] %v4861
    %4874 = vst [vmem:[#allocation19 + $0x28] sm:$0xff] %v4863
    %4875 = vst [vmem:[#allocation19 + $0x30] sm:$0xff] %v4865
    %4876 = vst [vmem:[#allocation19 + $0x38] sm:$0xff] %v4867
    // Predicated region
    $region82: #{tpu_custom_call.1} parent=1 // pred_check
      _
    $region83: #{tpu_custom_call.1} parent=1 // pred_check_branch
      %4878 = sbr.rel (0) target = $region85
    $region84: #{tpu_custom_call.1} parent=1 // pred_region
      %s4880 = ssub.s32 1024, 1024
      %4881 = vsyncadd [#allocation4], %s4880
      %s4882 = sshll.u32 [#allocation19], 4
      %s4883 = int_to_ptr.vmem [resolvable:$true] %s4882
      %4888 = dma.vmem_to_hbm [thread:$0]  %s4883, 1024, %s10, [#allocation4], 256, 256, 16
    $region85: #{tpu_custom_call.1} parent=1 // pred_fallthru
      _
    // Predicated region
    $region86: #{tpu_custom_call.1} parent=1 // pred_check
      _
    $region87: #{tpu_custom_call.1} parent=1 // pred_check_branch
      %4890 = sbr.rel (0) target = $region89
    $region88: #{tpu_custom_call.1} parent=1 // pred_region
      %4891 = dma.done [#allocation4], 1024
    $region89: #{tpu_custom_call.1} parent=1 // pred_fallthru
      _
    %4892 = vsyncpa [#allocation3], 1
    %4893 = vsyncpa [#allocation6], 1
    %4894 = vsyncpa [#allocation9], 1
    %4895 = vsyncpa [#allocation12], 1
    %4896 = vsyncpa [#allocation15], 1
    %4897 = vsyncpa [#allocation18], 1
    %4898 = vsyncpa [#allocation4], 1

</llo_original>
